<compile_context>
chip_gen: v7x
topology: tpu7x:2x2x1
jax: 0.10.0
libtpu: 0.0.40
codegen_flags: <defaults>
</compile_context>

<pallas_src>
import functools

import jax
import jax.numpy as jnp
from jax import lax
from jax.experimental import pallas as pl
from jax.experimental.pallas import tpu as pltpu


_GATE_PERM = (0, 1, 3, 2)   # torch gate order [i, f, g, o] -> kernel [i, f, o, g]


def _round_up(x, m):
    return (x + m - 1) // m * m


def _pick_time_chunk(T, max_chunk=128):
    """Largest divisor of T that is <= max_chunk (time-chunk length)."""
    for tc in range(min(T, max_chunk), 0, -1):
        if T % tc == 0:
            return tc
    return 1


def _pad_gates(w_t, H, Hp, in_pad):
    """(in_dim, 4H) torch-order -> (in_pad, 4*Hp): gates reordered to
    [i, f, o, g], gate k at 128-aligned cols [k*Hp, k*Hp+H), zero padding."""
    in_dim = w_t.shape[0]
    w4 = w_t.reshape(in_dim, 4, H)[:, _GATE_PERM, :]
    out = jnp.zeros((in_pad, 4, Hp), w_t.dtype)
    out = out.at[:in_dim, :, :H].set(w4)
    return out.reshape(in_pad, 4 * Hp)


def _pad_gate_bias(b, H, Hp):
    """(4H,) torch-order -> (4*Hp,) reordered/padded (padded lanes stay 0)."""
    b4 = b.reshape(4, H)[_GATE_PERM, :]
    out = jnp.zeros((4, Hp), b.dtype).at[:, :H].set(b4)
    return out.reshape(4 * Hp)


def _fused_lstm_kernel(pg0_ref, h0_ref, c0_ref, wih_ref, whh_ref, bias_ref,
                       y_ref, hn_ref, cn_ref,
                       h_scr, c_scr, ybuf, pgbuf,
                       *, hp, bp, tc, num_layers):
    """All-layer LSTM recurrence over one time chunk.

    Grid axis 0 iterates over time chunks (sequential / "arbitrary").

    pg0_ref : (Tc, Bp, 4*Hp)  hoisted layer-0 input projection (no bias)
    h0_ref  : (L, Bp, Hp)     initial hidden states (padded, resident)
    c0_ref  : (L, Bp, Hp)     initial cell states (padded, resident)
    wih_ref : (max(L-1,1), Hp, 4*Hp)  W_ih^T for layers 1..L-1 (resident)
    whh_ref : (L, Hp, 4*Hp)   W_hh^T, gates 128-aligned (resident)
    bias_ref: (L, Bp, 4*Hp)   b_ih + b_hh per layer, row-broadcast (resident)
    y_ref   : (Tc, Bp, Hp)    last layer's hidden states for this chunk
    hn_ref  : (L, Bp, Hp)     final hidden states (written on last chunk only)
    cn_ref  : (L, Bp, Hp)     final cell states (written on last chunk only)
    h_scr/c_scr : (L, Bp, Hp) f32 carries across chunks
    ybuf    : (Tc*Bp, Hp) f32 intermediate layer outputs within the chunk
    pgbuf   : (Tc*Bp, 4*Hp) f32 intermediate layer pre-gates within the chunk
    """
    chunk = pl.program_id(0)

    @pl.when(chunk == 0)
    def _():
        h_scr[...] = h0_ref[...].astype(jnp.float32)
        c_scr[...] = c0_ref[...].astype(jnp.float32)

    def run_layer(layer, read_pre, write_out):
        whh = whh_ref[layer]          # (Hp, 4*Hp), resident in VMEM
        bias = bias_ref[layer]        # (Bp, 4*Hp)

        def step(t, carry):
            h_prev, c_prev = carry
            gates = read_pre(t) + bias + jnp.dot(
                h_prev, whh, preferred_element_type=jnp.float32)
            # Gate order [i, f, o, g]: one sigmoid over a contiguous 3*Hp slab,
            # expressed as tanh so the EUP does 3 tanh per step total.
            sig = 0.5 * jnp.tanh(0.5 * gates[:, :3 * hp]) + 0.5
            i = sig[:, 0 * hp:1 * hp]
            f = sig[:, 1 * hp:2 * hp]
            o = sig[:, 2 * hp:3 * hp]
            g = jnp.tanh(gates[:, 3 * hp:4 * hp])
            c_new = f * c_prev + i * g
            h_new = o * jnp.tanh(c_new)
            write_out(t, h_new)
            return h_new, c_new

        h_fin, c_fin = lax.fori_loop(0, tc, step, (h_scr[layer], c_scr[layer]),
                                     unroll=min(tc, 8))
        h_scr[layer] = h_fin
        c_scr[layer] = c_fin

    def read_pg0(t):
        return pg0_ref[t].astype(jnp.float32)

    def read_pgbuf(t):
        row = pl.multiple_of(t * bp, bp)
        return pgbuf[pl.ds(row, bp), :]

    def write_ybuf(t, h):
        row = pl.multiple_of(t * bp, bp)
        ybuf[pl.ds(row, bp), :] = h

    def write_y(t, h):
        y_ref[t] = h.astype(y_ref.dtype)

    # Layer 0 consumes the hoisted (pipelined) pre-gate chunk.
    run_layer(0, read_pg0, write_y if num_layers == 1 else write_ybuf)

    # Layers 1..L-1: one chunk-wide input projection (off the serial per-step
    # chain), then the sequential recurrence over the chunk.
    for layer in range(1, num_layers):
        pgbuf[...] = jnp.dot(ybuf[...], wih_ref[layer - 1],
                             preferred_element_type=jnp.float32)
        last = layer == num_layers - 1
        run_layer(layer, read_pgbuf, write_y if last else write_ybuf)

    @pl.when(chunk == pl.num_programs(0) - 1)
    def _():
        hn_ref[...] = h_scr[...].astype(hn_ref.dtype)
        cn_ref[...] = c_scr[...].astype(cn_ref.dtype)


def lstm_fused_pallas(pg0, h0p, c0p, wih_rest, whh_all, bias_all,
                      *, hp, bp, num_layers, out_dtype):
    """Run the fused multi-layer LSTM recurrence over (T, Bp, 4*Hp) pre-gates."""
    T = pg0.shape[0]
    L = num_layers
    G = 4 * hp
    tc = _pick_time_chunk(T)

    kernel = functools.partial(_fused_lstm_kernel, hp=hp, bp=bp, tc=tc,
                               num_layers=L)

    # Explicit VMEM budget (pipelined blocks double-buffered, residents once)
    # so the v5e 16 MiB / v7x 32 MiB scoped defaults are never the limiter.
    itemsize = 4
    footprint = (
        2 * tc * bp * G * itemsize            # pg0 chunk (double-buffered)
        + 2 * tc * bp * hp * itemsize         # y chunk (double-buffered)
        + 2 * L * bp * hp * itemsize          # h0, c0 (resident)
        + max(L - 1, 1) * hp * G * itemsize   # W_ih^T layers >= 1 (resident)
        + L * hp * G * itemsize               # W_hh^T (resident)
        + L * bp * G * itemsize               # biases (resident)
        + 2 * L * bp * hp * itemsize          # hn, cn (resident outputs)
        + 2 * L * bp * hp * itemsize          # h/c carry scratch
        + tc * bp * hp * itemsize             # ybuf scratch
        + tc * bp * G * itemsize              # pgbuf scratch
    )
    vmem_limit = int(min(100 * 1024 * 1024, max(32 * 1024 * 1024, 2 * footprint)))

    y, hn, cn = pl.pallas_call(
        kernel,
        out_shape=(jax.ShapeDtypeStruct((T, bp, hp), out_dtype),
                   jax.ShapeDtypeStruct((L, bp, hp), out_dtype),
                   jax.ShapeDtypeStruct((L, bp, hp), out_dtype)),
        grid_spec=pltpu.PrefetchScalarGridSpec(
            num_scalar_prefetch=0,
            grid=(T // tc,),
            in_specs=[
                pl.BlockSpec((tc, bp, G), lambda s: (s, 0, 0)),            # pre-gates L0
                pl.BlockSpec((L, bp, hp), lambda s: (0, 0, 0)),            # h0 (resident)
                pl.BlockSpec((L, bp, hp), lambda s: (0, 0, 0)),            # c0 (resident)
                pl.BlockSpec((max(L - 1, 1), hp, G), lambda s: (0, 0, 0)),  # W_ih^T 1..L-1
                pl.BlockSpec((L, hp, G), lambda s: (0, 0, 0)),             # W_hh^T
                pl.BlockSpec((L, bp, G), lambda s: (0, 0, 0)),             # biases
            ],
            out_specs=[
                pl.BlockSpec((tc, bp, hp), lambda s: (s, 0, 0)),           # y chunk
                pl.BlockSpec((L, bp, hp), lambda s: (0, 0, 0)),            # h_n (resident)
                pl.BlockSpec((L, bp, hp), lambda s: (0, 0, 0)),            # c_n (resident)
            ],
            scratch_shapes=[
                pltpu.VMEM((L, bp, hp), jnp.float32),      # h carry
                pltpu.VMEM((L, bp, hp), jnp.float32),      # c carry
                pltpu.VMEM((tc * bp, hp), jnp.float32),    # intermediate layer y
                pltpu.VMEM((tc * bp, G), jnp.float32),     # intermediate pre-gates
            ],
        ),
        compiler_params=pltpu.CompilerParams(
            dimension_semantics=("arbitrary",),            # time is sequential
            vmem_limit_bytes=vmem_limit),
    )(pg0, h0p, c0p, wih_rest, whh_all, bias_all)
    return y, hn, cn


def _forward_impl(x, wih0_p, wih_rest, whh_all, bias_all, h0, c0,
                  *, H, Hp, B, Bp, L):
    """x: (B, input_size, T) [torch layout]. Returns (out (B,H,T), (h_n, c_n))."""
    T = x.shape[-1]
    dtype = x.dtype

    # Hoisted layer-0 input projection: one einsum over the full sequence,
    # straight from the (B, D, T) layout into time-major pre-gates (no bias --
    # bias is added inside the kernel). Batch rows are padded to Bp with zeros.
    pg0 = jnp.einsum('bdt,dg->tbg', x, wih0_p)                      # (T, B, 4*Hp)
    pg0 = jnp.zeros((T, Bp, 4 * Hp), dtype).at[:, :B].set(pg0.astype(dtype))

    h0p = jnp.zeros((L, Bp, Hp), dtype).at[:, :B, :H].set(h0.astype(dtype))
    c0p = jnp.zeros((L, Bp, Hp), dtype).at[:, :B, :H].set(c0.astype(dtype))

    # Per-layer combined bias, broadcast over the (padded) batch rows.
    bias_b = jnp.broadcast_to(bias_all[:, None, :], (L, Bp, 4 * Hp)).astype(dtype)

    y, hn, cn = lstm_fused_pallas(pg0, h0p, c0p, wih_rest, whh_all, bias_b,
                                  hp=Hp, bp=Bp, num_layers=L, out_dtype=dtype)

    out = jnp.transpose(y[:, :B, :H], (1, 2, 0))                    # (B, H, T)
    return out, (hn[:, :B, :H], cn[:, :B, :H])


class BasicLSTMNetPallas:
    """JAX/Pallas port of BasicLSTMNet (nn.LSTM, batch_first, no Linear head)."""

    def __init__(self, input_size, hidden_size, num_layers, key):
        self.input_size = input_size
        self.hidden_size = hidden_size
        self.num_layers = num_layers
        self.hp = _round_up(hidden_size, 128)      # 128-lane padded hidden size

        H, Hp = hidden_size, self.hp
        bound = 1.0 / (hidden_size ** 0.5)
        self.params = []            # raw PyTorch-layout params (for the reference)
        wih_rest, whh_list, bias_list = [], [], []
        self.wih0_p = None
        for layer in range(num_layers):
            in_sz = input_size if layer == 0 else hidden_size
            key, k1, k2, k3, k4 = jax.random.split(key, 5)
            w_ih = jax.random.uniform(k1, (4 * H, in_sz), jnp.float32, -bound, bound)
            w_hh = jax.random.uniform(k2, (4 * H, H), jnp.float32, -bound, bound)
            b_ih = jax.random.uniform(k3, (4 * H,), jnp.float32, -bound, bound)
            b_hh = jax.random.uniform(k4, (4 * H,), jnp.float32, -bound, bound)
            self.params.append((w_ih, w_hh, b_ih, b_hh))

            if layer == 0:
                self.wih0_p = _pad_gates(w_ih.T, H, Hp, in_sz)       # (D, 4*Hp)
            else:
                wih_rest.append(_pad_gates(w_ih.T, H, Hp, Hp))       # (Hp, 4*Hp)
            whh_list.append(_pad_gates(w_hh.T, H, Hp, Hp))           # (Hp, 4*Hp)
            bias_list.append(_pad_gate_bias(b_ih + b_hh, H, Hp))     # (4*Hp,)

        if wih_rest:
            self.wih_rest = jnp.stack(wih_rest, 0)                   # (L-1, Hp, 4*Hp)
        else:
            self.wih_rest = jnp.zeros((1, Hp, 4 * Hp), jnp.float32)  # dummy (L==1)
        self.whh_all = jnp.stack(whh_list, 0)                        # (L, Hp, 4*Hp)
        self.bias_all = jnp.stack(bias_list, 0)                      # (L, 4*Hp)

        self._fwd_cache = {}

    def _get_forward(self, B):
        if B not in self._fwd_cache:
            Bp = _round_up(B, 8)   # sublane-pad the batch (8 for f32)
            self._fwd_cache[B] = jax.jit(functools.partial(
                _forward_impl, H=self.hidden_size, Hp=self.hp,
                B=B, Bp=Bp, L=self.num_layers))
        return self._fwd_cache[B]

    def __call__(self, x, h0=None, c0=None):
        # x: (B, input_size, T) -- same layout as the torch module's input
        assert x.ndim == 3, "LSTM Input dimension Error"
        B = x.shape[0]
        H, L = self.hidden_size, self.num_layers
        if h0 is None:
            h0 = jnp.zeros((L, B, H), x.dtype)
        if c0 is None:
            c0 = jnp.zeros((L, B, H), x.dtype)
        fwd = self._get_forward(B)
        return fwd(x, self.wih0_p, self.wih_rest, self.whh_all, self.bias_all,
                   h0, c0)


def _reference_lstm(x, params, hidden_size, num_layers):
    """Pure-JAX reference (lax.scan) with identical PyTorch LSTM semantics."""
    x = jnp.swapaxes(x, -2, -1)                 # (B, T, D)
    B, T, _ = x.shape
    H = hidden_size
    seq = jnp.transpose(x, (1, 0, 2))           # (T, B, D)
    hns, cns = [], []
    for layer in range(num_layers):
        w_ih, w_hh, b_ih, b_hh = params[layer]

        def step(carry, x_t):
            h, c = carry
            gates = x_t @ w_ih.T + h @ w_hh.T + b_ih + b_hh
            i = jax.nn.sigmoid(gates[:, 0 * H:1 * H])
            f = jax.nn.sigmoid(gates[:, 1 * H:2 * H])
            g = jnp.tanh(gates[:, 2 * H:3 * H])
            o = jax.nn.sigmoid(gates[:, 3 * H:4 * H])
            c_new = f * c + i * g
            h_new = o * jnp.tanh(c_new)
            return (h_new, c_new), h_new

        (hn, cn), seq = jax.lax.scan(
            step, (jnp.zeros((B, H), x.dtype), jnp.zeros((B, H), x.dtype)), seq)
        hns.append(hn)
        cns.append(cn)
    out = jnp.swapaxes(jnp.transpose(seq, (1, 0, 2)), -2, -1)
    return out, (jnp.stack(hns, 0), jnp.stack(cns, 0))


if __name__ == "__main__":
    INPUT_SIZE = 4
    HIDDEN_SIZE = 32
    NUM_LAYERS = 2
    BATCH = 2
    SEQ = 8

    key = jax.random.PRNGKey(0)
    key, k_param, k_x = jax.random.split(key, 3)

    model = BasicLSTMNetPallas(INPUT_SIZE, HIDDEN_SIZE, NUM_LAYERS, k_param)

    # x in the torch module's layout: (batch, input_size, seq_len)
    x = jax.random.normal(k_x, (BATCH, INPUT_SIZE, SEQ), jnp.float32)

    out, (hn, cn) = model(x)
    out, hn, cn = jax.block_until_ready((out, hn, cn))

    assert out.shape == (BATCH, HIDDEN_SIZE, SEQ)
    assert hn.shape == (NUM_LAYERS, BATCH, HIDDEN_SIZE)
    assert cn.shape == (NUM_LAYERS, BATCH, HIDDEN_SIZE)

    # Correctness check against pure-JAX reference.
    ref_out, (ref_hn, ref_cn) = _reference_lstm(x, model.params,
                                                HIDDEN_SIZE, NUM_LAYERS)
    assert jnp.allclose(out, ref_out, atol=1e-3, rtol=1e-3), \
        float(jnp.max(jnp.abs(out - ref_out)))
    assert jnp.allclose(hn, ref_hn, atol=1e-3, rtol=1e-3)
    assert jnp.allclose(cn, ref_cn, atol=1e-3, rtol=1e-3)

    print("KERNEL_OK")
</pallas_src>

<mosaic_0001>
module attributes {stable_mosaic.version = 11 : i64} {
  func.func @_fused_lstm_kernel(%arg0: i32, %arg1: memref<8x8x512xf32, #tpu.memory_space<vmem>>, %arg2: memref<2x8x128xf32, #tpu.memory_space<vmem>>, %arg3: memref<2x8x128xf32, #tpu.memory_space<vmem>>, %arg4: memref<1x128x512xf32, #tpu.memory_space<vmem>>, %arg5: memref<2x128x512xf32, #tpu.memory_space<vmem>>, %arg6: memref<2x8x512xf32, #tpu.memory_space<vmem>>, %arg7: memref<8x8x128xf32, #tpu.memory_space<vmem>>, %arg8: memref<2x8x128xf32, #tpu.memory_space<vmem>>, %arg9: memref<2x8x128xf32, #tpu.memory_space<vmem>>, %arg10: memref<2x8x128xf32, #tpu.memory_space<vmem>>, %arg11: memref<2x8x128xf32, #tpu.memory_space<vmem>>, %arg12: memref<64x128xf32, #tpu.memory_space<vmem>>, %arg13: memref<64x512xf32, #tpu.memory_space<vmem>>) attributes {dimension_semantics = [#tpu.dimension_semantics<arbitrary>], iteration_bounds = array<i64: 1>, scalar_prefetch = 0 : i64, scratch_operands = 4 : i64, tpu.core_type = #tpu.core_type<tc>, window_params = [{transform_indices = @transform_0, window_bounds = array<i64: 8, 8, 512>}, {pipeline_mode = #tpu.pipeline_mode<synchronous>, transform_indices = @transform_1, window_bounds = array<i64: 2, 8, 128>}, {pipeline_mode = #tpu.pipeline_mode<synchronous>, transform_indices = @transform_2, window_bounds = array<i64: 2, 8, 128>}, {pipeline_mode = #tpu.pipeline_mode<synchronous>, transform_indices = @transform_3, window_bounds = array<i64: 1, 128, 512>}, {pipeline_mode = #tpu.pipeline_mode<synchronous>, transform_indices = @transform_4, window_bounds = array<i64: 2, 128, 512>}, {pipeline_mode = #tpu.pipeline_mode<synchronous>, transform_indices = @transform_5, window_bounds = array<i64: 2, 8, 512>}, {transform_indices = @transform_6, window_bounds = array<i64: 8, 8, 128>}, {pipeline_mode = #tpu.pipeline_mode<synchronous>, transform_indices = @transform_7, window_bounds = array<i64: 2, 8, 128>}, {pipeline_mode = #tpu.pipeline_mode<synchronous>, transform_indices = @transform_8, window_bounds = array<i64: 2, 8, 128>}]} {
    %c0_i32 = arith.constant 0 : i32
    %0 = arith.cmpi eq, %arg0, %c0_i32 : i32
    %1 = arith.extui %0 : i1 to i32
    %c0_i32_0 = arith.constant 0 : i32
    %2 = arith.cmpi ne, %1, %c0_i32_0 : i32
    scf.if %2 {
      %c0_182 = arith.constant 0 : index
      %c0_183 = arith.constant 0 : index
      %c0_184 = arith.constant 0 : index
      %495 = vector.load %arg2[%c0_182, %c0_183, %c0_184] : memref<2x8x128xf32, #tpu.memory_space<vmem>>, vector<2x8x128xf32>
      %c0_185 = arith.constant 0 : index
      %c0_186 = arith.constant 0 : index
      %c0_187 = arith.constant 0 : index
      %496 = vector.load %arg10[%c0_185, %c0_186, %c0_187] : memref<2x8x128xf32, #tpu.memory_space<vmem>>, vector<2x8x128xf32>
      tpu.vector_store %arg10[%c0_185, %c0_186, %c0_187], %495 {strides = array<i32>} : memref<2x8x128xf32, #tpu.memory_space<vmem>>, vector<2x8x128xf32>,
      %c0_188 = arith.constant 0 : index
      %c0_189 = arith.constant 0 : index
      %c0_190 = arith.constant 0 : index
      %497 = vector.load %arg3[%c0_188, %c0_189, %c0_190] : memref<2x8x128xf32, #tpu.memory_space<vmem>>, vector<2x8x128xf32>
      %c0_191 = arith.constant 0 : index
      %c0_192 = arith.constant 0 : index
      %c0_193 = arith.constant 0 : index
      %498 = vector.load %arg11[%c0_191, %c0_192, %c0_193] : memref<2x8x128xf32, #tpu.memory_space<vmem>>, vector<2x8x128xf32>
      tpu.vector_store %arg11[%c0_191, %c0_192, %c0_193], %497 {strides = array<i32>} : memref<2x8x128xf32, #tpu.memory_space<vmem>>, vector<2x8x128xf32>,
    } else {
    }
    %c0 = arith.constant 0 : index
    %c0_1 = arith.constant 0 : index
    %c0_2 = arith.constant 0 : index
    %3 = vector.load %arg5[%c0, %c0_1, %c0_2] : memref<2x128x512xf32, #tpu.memory_space<vmem>>, vector<1x128x512xf32>
    %4 = vector.shape_cast %3 : vector<1x128x512xf32> to vector<128x512xf32>
    %c0_3 = arith.constant 0 : index
    %c0_4 = arith.constant 0 : index
    %c0_5 = arith.constant 0 : index
    %5 = vector.load %arg6[%c0_3, %c0_4, %c0_5] : memref<2x8x512xf32, #tpu.memory_space<vmem>>, vector<1x8x512xf32>
    %6 = vector.shape_cast %5 : vector<1x8x512xf32> to vector<8x512xf32>
    %c0_6 = arith.constant 0 : index
    %c0_7 = arith.constant 0 : index
    %c0_8 = arith.constant 0 : index
    %7 = vector.load %arg10[%c0_6, %c0_7, %c0_8] : memref<2x8x128xf32, #tpu.memory_space<vmem>>, vector<1x8x128xf32>
    %8 = vector.shape_cast %7 : vector<1x8x128xf32> to vector<8x128xf32>
    %c0_9 = arith.constant 0 : index
    %c0_10 = arith.constant 0 : index
    %c0_11 = arith.constant 0 : index
    %9 = vector.load %arg11[%c0_9, %c0_10, %c0_11] : memref<2x8x128xf32, #tpu.memory_space<vmem>>, vector<1x8x128xf32>
    %10 = vector.shape_cast %9 : vector<1x8x128xf32> to vector<8x128xf32>
    %c0_i32_12 = arith.constant 0 : i32
    %11 = arith.index_cast %c0_i32_12 : i32 to index
    %c0_13 = arith.constant 0 : index
    %c0_14 = arith.constant 0 : index
    %12 = vector.load %arg1[%11, %c0_13, %c0_14] : memref<8x8x512xf32, #tpu.memory_space<vmem>>, vector<1x8x512xf32>
    %13 = vector.shape_cast %12 : vector<1x8x512xf32> to vector<8x512xf32>
    %14 = arith.addf %13, %6 : vector<8x512xf32>
    %cst = arith.constant dense<0.000000e+00> : vector<8x512xf32>
    %15 = tpu.matmul %8, %4, %cst {dimension_numbers = #tpu.dot_dimension_numbers<[1], [0], [0], [1], [0, 0, 1, 1], [], []>} : vector<8x128xf32>, vector<128x512xf32>, vector<8x512xf32> -> vector<8x512xf32>
    %16 = arith.addf %14, %15 : vector<8x512xf32>
    %17 = vector.extract_strided_slice %16 {offsets = [0, 0], sizes = [8, 384], strides = [1, 1]} : vector<8x512xf32> to vector<8x384xf32>
    %cst_15 = arith.constant 5.000000e-01 : f32
    %18 = vector.broadcast %cst_15 : f32 to vector<8x384xf32>
    %19 = arith.mulf %18, %17 : vector<8x384xf32>
    %20 = math.tanh %19 : vector<8x384xf32>
    %cst_16 = arith.constant 5.000000e-01 : f32
    %21 = vector.broadcast %cst_16 : f32 to vector<8x384xf32>
    %22 = arith.mulf %21, %20 : vector<8x384xf32>
    %cst_17 = arith.constant 5.000000e-01 : f32
    %23 = vector.broadcast %cst_17 : f32 to vector<8x384xf32>
    %24 = arith.addf %22, %23 : vector<8x384xf32>
    %25 = vector.extract_strided_slice %24 {offsets = [0, 0], sizes = [8, 128], strides = [1, 1]} : vector<8x384xf32> to vector<8x128xf32>
    %26 = vector.extract_strided_slice %24 {offsets = [0, 128], sizes = [8, 128], strides = [1, 1]} : vector<8x384xf32> to vector<8x128xf32>
    %27 = vector.extract_strided_slice %24 {offsets = [0, 256], sizes = [8, 128], strides = [1, 1]} : vector<8x384xf32> to vector<8x128xf32>
    %28 = vector.extract_strided_slice %16 {offsets = [0, 384], sizes = [8, 128], strides = [1, 1]} : vector<8x512xf32> to vector<8x128xf32>
    %29 = math.tanh %28 : vector<8x128xf32>
    %30 = arith.mulf %26, %10 : vector<8x128xf32>
    %31 = arith.mulf %25, %29 : vector<8x128xf32>
    %32 = arith.addf %30, %31 : vector<8x128xf32>
    %33 = math.tanh %32 : vector<8x128xf32>
    %34 = arith.mulf %27, %33 : vector<8x128xf32>
    %c8_i32 = arith.constant 8 : i32
    %35 = arith.muli %c0_i32_12, %c8_i32 : i32
    %36 = tpu.assume_multiple %35, 8 : i32
    %37 = arith.index_cast %36 : i32 to index
    %c0_18 = arith.constant 0 : index
    %38 = vector.load %arg12[%37, %c0_18] : memref<64x128xf32, #tpu.memory_space<vmem>>, vector<8x128xf32>
    tpu.vector_store %arg12[%37, %c0_18], %34 {strides = array<i32>} : memref<64x128xf32, #tpu.memory_space<vmem>>, vector<8x128xf32>,
    %c1_i32 = arith.constant 1 : i32
    %39 = arith.index_cast %c1_i32 : i32 to index
    %c0_19 = arith.constant 0 : index
    %c0_20 = arith.constant 0 : index
    %40 = vector.load %arg1[%39, %c0_19, %c0_20] : memref<8x8x512xf32, #tpu.memory_space<vmem>>, vector<1x8x512xf32>
    %41 = vector.shape_cast %40 : vector<1x8x512xf32> to vector<8x512xf32>
    %42 = arith.addf %41, %6 : vector<8x512xf32>
    %cst_21 = arith.constant dense<0.000000e+00> : vector<8x512xf32>
    %43 = tpu.matmul %34, %4, %cst_21 {dimension_numbers = #tpu.dot_dimension_numbers<[1], [0], [0], [1], [0, 0, 1, 1], [], []>} : vector<8x128xf32>, vector<128x512xf32>, vector<8x512xf32> -> vector<8x512xf32>
    %44 = arith.addf %42, %43 : vector<8x512xf32>
    %45 = vector.extract_strided_slice %44 {offsets = [0, 0], sizes = [8, 384], strides = [1, 1]} : vector<8x512xf32> to vector<8x384xf32>
    %cst_22 = arith.constant 5.000000e-01 : f32
    %46 = vector.broadcast %cst_22 : f32 to vector<8x384xf32>
    %47 = arith.mulf %46, %45 : vector<8x384xf32>
    %48 = math.tanh %47 : vector<8x384xf32>
    %cst_23 = arith.constant 5.000000e-01 : f32
    %49 = vector.broadcast %cst_23 : f32 to vector<8x384xf32>
    %50 = arith.mulf %49, %48 : vector<8x384xf32>
    %cst_24 = arith.constant 5.000000e-01 : f32
    %51 = vector.broadcast %cst_24 : f32 to vector<8x384xf32>
    %52 = arith.addf %50, %51 : vector<8x384xf32>
    %53 = vector.extract_strided_slice %52 {offsets = [0, 0], sizes = [8, 128], strides = [1, 1]} : vector<8x384xf32> to vector<8x128xf32>
    %54 = vector.extract_strided_slice %52 {offsets = [0, 128], sizes = [8, 128], strides = [1, 1]} : vector<8x384xf32> to vector<8x128xf32>
    %55 = vector.extract_strided_slice %52 {offsets = [0, 256], sizes = [8, 128], strides = [1, 1]} : vector<8x384xf32> to vector<8x128xf32>
    %56 = vector.extract_strided_slice %44 {offsets = [0, 384], sizes = [8, 128], strides = [1, 1]} : vector<8x512xf32> to vector<8x128xf32>
    %57 = math.tanh %56 : vector<8x128xf32>
    %58 = arith.mulf %54, %32 : vector<8x128xf32>
    %59 = arith.mulf %53, %57 : vector<8x128xf32>
    %60 = arith.addf %58, %59 : vector<8x128xf32>
    %61 = math.tanh %60 : vector<8x128xf32>
    %62 = arith.mulf %55, %61 : vector<8x128xf32>
    %c8_i32_25 = arith.constant 8 : i32
    %63 = arith.muli %c1_i32, %c8_i32_25 : i32
    %64 = tpu.assume_multiple %63, 8 : i32
    %65 = arith.index_cast %64 : i32 to index
    %c0_26 = arith.constant 0 : index
    %66 = vector.load %arg12[%65, %c0_26] : memref<64x128xf32, #tpu.memory_space<vmem>>, vector<8x128xf32>
    tpu.vector_store %arg12[%65, %c0_26], %62 {strides = array<i32>} : memref<64x128xf32, #tpu.memory_space<vmem>>, vector<8x128xf32>,
    %c2_i32 = arith.constant 2 : i32
    %67 = arith.index_cast %c2_i32 : i32 to index
    %c0_27 = arith.constant 0 : index
    %c0_28 = arith.constant 0 : index
    %68 = vector.load %arg1[%67, %c0_27, %c0_28] : memref<8x8x512xf32, #tpu.memory_space<vmem>>, vector<1x8x512xf32>
    %69 = vector.shape_cast %68 : vector<1x8x512xf32> to vector<8x512xf32>
    %70 = arith.addf %69, %6 : vector<8x512xf32>
    %cst_29 = arith.constant dense<0.000000e+00> : vector<8x512xf32>
    %71 = tpu.matmul %62, %4, %cst_29 {dimension_numbers = #tpu.dot_dimension_numbers<[1], [0], [0], [1], [0, 0, 1, 1], [], []>} : vector<8x128xf32>, vector<128x512xf32>, vector<8x512xf32> -> vector<8x512xf32>
    %72 = arith.addf %70, %71 : vector<8x512xf32>
    %73 = vector.extract_strided_slice %72 {offsets = [0, 0], sizes = [8, 384], strides = [1, 1]} : vector<8x512xf32> to vector<8x384xf32>
    %cst_30 = arith.constant 5.000000e-01 : f32
    %74 = vector.broadcast %cst_30 : f32 to vector<8x384xf32>
    %75 = arith.mulf %74, %73 : vector<8x384xf32>
    %76 = math.tanh %75 : vector<8x384xf32>
    %cst_31 = arith.constant 5.000000e-01 : f32
    %77 = vector.broadcast %cst_31 : f32 to vector<8x384xf32>
    %78 = arith.mulf %77, %76 : vector<8x384xf32>
    %cst_32 = arith.constant 5.000000e-01 : f32
    %79 = vector.broadcast %cst_32 : f32 to vector<8x384xf32>
    %80 = arith.addf %78, %79 : vector<8x384xf32>
    %81 = vector.extract_strided_slice %80 {offsets = [0, 0], sizes = [8, 128], strides = [1, 1]} : vector<8x384xf32> to vector<8x128xf32>
    %82 = vector.extract_strided_slice %80 {offsets = [0, 128], sizes = [8, 128], strides = [1, 1]} : vector<8x384xf32> to vector<8x128xf32>
    %83 = vector.extract_strided_slice %80 {offsets = [0, 256], sizes = [8, 128], strides = [1, 1]} : vector<8x384xf32> to vector<8x128xf32>
    %84 = vector.extract_strided_slice %72 {offsets = [0, 384], sizes = [8, 128], strides = [1, 1]} : vector<8x512xf32> to vector<8x128xf32>
    %85 = math.tanh %84 : vector<8x128xf32>
    %86 = arith.mulf %82, %60 : vector<8x128xf32>
    %87 = arith.mulf %81, %85 : vector<8x128xf32>
    %88 = arith.addf %86, %87 : vector<8x128xf32>
    %89 = math.tanh %88 : vector<8x128xf32>
    %90 = arith.mulf %83, %89 : vector<8x128xf32>
    %c8_i32_33 = arith.constant 8 : i32
    %91 = arith.muli %c2_i32, %c8_i32_33 : i32
    %92 = tpu.assume_multiple %91, 8 : i32
    %93 = arith.index_cast %92 : i32 to index
    %c0_34 = arith.constant 0 : index
    %94 = vector.load %arg12[%93, %c0_34] : memref<64x128xf32, #tpu.memory_space<vmem>>, vector<8x128xf32>
    tpu.vector_store %arg12[%93, %c0_34], %90 {strides = array<i32>} : memref<64x128xf32, #tpu.memory_space<vmem>>, vector<8x128xf32>,
    %c3_i32 = arith.constant 3 : i32
    %95 = arith.index_cast %c3_i32 : i32 to index
    %c0_35 = arith.constant 0 : index
    %c0_36 = arith.constant 0 : index
    %96 = vector.load %arg1[%95, %c0_35, %c0_36] : memref<8x8x512xf32, #tpu.memory_space<vmem>>, vector<1x8x512xf32>
    %97 = vector.shape_cast %96 : vector<1x8x512xf32> to vector<8x512xf32>
    %98 = arith.addf %97, %6 : vector<8x512xf32>
    %cst_37 = arith.constant dense<0.000000e+00> : vector<8x512xf32>
    %99 = tpu.matmul %90, %4, %cst_37 {dimension_numbers = #tpu.dot_dimension_numbers<[1], [0], [0], [1], [0, 0, 1, 1], [], []>} : vector<8x128xf32>, vector<128x512xf32>, vector<8x512xf32> -> vector<8x512xf32>
    %100 = arith.addf %98, %99 : vector<8x512xf32>
    %101 = vector.extract_strided_slice %100 {offsets = [0, 0], sizes = [8, 384], strides = [1, 1]} : vector<8x512xf32> to vector<8x384xf32>
    %cst_38 = arith.constant 5.000000e-01 : f32
    %102 = vector.broadcast %cst_38 : f32 to vector<8x384xf32>
    %103 = arith.mulf %102, %101 : vector<8x384xf32>
    %104 = math.tanh %103 : vector<8x384xf32>
    %cst_39 = arith.constant 5.000000e-01 : f32
    %105 = vector.broadcast %cst_39 : f32 to vector<8x384xf32>
    %106 = arith.mulf %105, %104 : vector<8x384xf32>
    %cst_40 = arith.constant 5.000000e-01 : f32
    %107 = vector.broadcast %cst_40 : f32 to vector<8x384xf32>
    %108 = arith.addf %106, %107 : vector<8x384xf32>
    %109 = vector.extract_strided_slice %108 {offsets = [0, 0], sizes = [8, 128], strides = [1, 1]} : vector<8x384xf32> to vector<8x128xf32>
    %110 = vector.extract_strided_slice %108 {offsets = [0, 128], sizes = [8, 128], strides = [1, 1]} : vector<8x384xf32> to vector<8x128xf32>
    %111 = vector.extract_strided_slice %108 {offsets = [0, 256], sizes = [8, 128], strides = [1, 1]} : vector<8x384xf32> to vector<8x128xf32>
    %112 = vector.extract_strided_slice %100 {offsets = [0, 384], sizes = [8, 128], strides = [1, 1]} : vector<8x512xf32> to vector<8x128xf32>
    %113 = math.tanh %112 : vector<8x128xf32>
    %114 = arith.mulf %110, %88 : vector<8x128xf32>
    %115 = arith.mulf %109, %113 : vector<8x128xf32>
    %116 = arith.addf %114, %115 : vector<8x128xf32>
    %117 = math.tanh %116 : vector<8x128xf32>
    %118 = arith.mulf %111, %117 : vector<8x128xf32>
    %c8_i32_41 = arith.constant 8 : i32
    %119 = arith.muli %c3_i32, %c8_i32_41 : i32
    %120 = tpu.assume_multiple %119, 8 : i32
    %121 = arith.index_cast %120 : i32 to index
    %c0_42 = arith.constant 0 : index
    %122 = vector.load %arg12[%121, %c0_42] : memref<64x128xf32, #tpu.memory_space<vmem>>, vector<8x128xf32>
    tpu.vector_store %arg12[%121, %c0_42], %118 {strides = array<i32>} : memref<64x128xf32, #tpu.memory_space<vmem>>, vector<8x128xf32>,
    %c4_i32 = arith.constant 4 : i32
    %123 = arith.index_cast %c4_i32 : i32 to index
    %c0_43 = arith.constant 0 : index
    %c0_44 = arith.constant 0 : index
    %124 = vector.load %arg1[%123, %c0_43, %c0_44] : memref<8x8x512xf32, #tpu.memory_space<vmem>>, vector<1x8x512xf32>
    %125 = vector.shape_cast %124 : vector<1x8x512xf32> to vector<8x512xf32>
    %126 = arith.addf %125, %6 : vector<8x512xf32>
    %cst_45 = arith.constant dense<0.000000e+00> : vector<8x512xf32>
    %127 = tpu.matmul %118, %4, %cst_45 {dimension_numbers = #tpu.dot_dimension_numbers<[1], [0], [0], [1], [0, 0, 1, 1], [], []>} : vector<8x128xf32>, vector<128x512xf32>, vector<8x512xf32> -> vector<8x512xf32>
    %128 = arith.addf %126, %127 : vector<8x512xf32>
    %129 = vector.extract_strided_slice %128 {offsets = [0, 0], sizes = [8, 384], strides = [1, 1]} : vector<8x512xf32> to vector<8x384xf32>
    %cst_46 = arith.constant 5.000000e-01 : f32
    %130 = vector.broadcast %cst_46 : f32 to vector<8x384xf32>
    %131 = arith.mulf %130, %129 : vector<8x384xf32>
    %132 = math.tanh %131 : vector<8x384xf32>
    %cst_47 = arith.constant 5.000000e-01 : f32
    %133 = vector.broadcast %cst_47 : f32 to vector<8x384xf32>
    %134 = arith.mulf %133, %132 : vector<8x384xf32>
    %cst_48 = arith.constant 5.000000e-01 : f32
    %135 = vector.broadcast %cst_48 : f32 to vector<8x384xf32>
    %136 = arith.addf %134, %135 : vector<8x384xf32>
    %137 = vector.extract_strided_slice %136 {offsets = [0, 0], sizes = [8, 128], strides = [1, 1]} : vector<8x384xf32> to vector<8x128xf32>
    %138 = vector.extract_strided_slice %136 {offsets = [0, 128], sizes = [8, 128], strides = [1, 1]} : vector<8x384xf32> to vector<8x128xf32>
    %139 = vector.extract_strided_slice %136 {offsets = [0, 256], sizes = [8, 128], strides = [1, 1]} : vector<8x384xf32> to vector<8x128xf32>
    %140 = vector.extract_strided_slice %128 {offsets = [0, 384], sizes = [8, 128], strides = [1, 1]} : vector<8x512xf32> to vector<8x128xf32>
    %141 = math.tanh %140 : vector<8x128xf32>
    %142 = arith.mulf %138, %116 : vector<8x128xf32>
    %143 = arith.mulf %137, %141 : vector<8x128xf32>
    %144 = arith.addf %142, %143 : vector<8x128xf32>
    %145 = math.tanh %144 : vector<8x128xf32>
    %146 = arith.mulf %139, %145 : vector<8x128xf32>
    %c8_i32_49 = arith.constant 8 : i32
    %147 = arith.muli %c4_i32, %c8_i32_49 : i32
    %148 = tpu.assume_multiple %147, 8 : i32
    %149 = arith.index_cast %148 : i32 to index
    %c0_50 = arith.constant 0 : index
    %150 = vector.load %arg12[%149, %c0_50] : memref<64x128xf32, #tpu.memory_space<vmem>>, vector<8x128xf32>
    tpu.vector_store %arg12[%149, %c0_50], %146 {strides = array<i32>} : memref<64x128xf32, #tpu.memory_space<vmem>>, vector<8x128xf32>,
    %c5_i32 = arith.constant 5 : i32
    %151 = arith.index_cast %c5_i32 : i32 to index
    %c0_51 = arith.constant 0 : index
    %c0_52 = arith.constant 0 : index
    %152 = vector.load %arg1[%151, %c0_51, %c0_52] : memref<8x8x512xf32, #tpu.memory_space<vmem>>, vector<1x8x512xf32>
    %153 = vector.shape_cast %152 : vector<1x8x512xf32> to vector<8x512xf32>
    %154 = arith.addf %153, %6 : vector<8x512xf32>
    %cst_53 = arith.constant dense<0.000000e+00> : vector<8x512xf32>
    %155 = tpu.matmul %146, %4, %cst_53 {dimension_numbers = #tpu.dot_dimension_numbers<[1], [0], [0], [1], [0, 0, 1, 1], [], []>} : vector<8x128xf32>, vector<128x512xf32>, vector<8x512xf32> -> vector<8x512xf32>
    %156 = arith.addf %154, %155 : vector<8x512xf32>
    %157 = vector.extract_strided_slice %156 {offsets = [0, 0], sizes = [8, 384], strides = [1, 1]} : vector<8x512xf32> to vector<8x384xf32>
    %cst_54 = arith.constant 5.000000e-01 : f32
    %158 = vector.broadcast %cst_54 : f32 to vector<8x384xf32>
    %159 = arith.mulf %158, %157 : vector<8x384xf32>
    %160 = math.tanh %159 : vector<8x384xf32>
    %cst_55 = arith.constant 5.000000e-01 : f32
    %161 = vector.broadcast %cst_55 : f32 to vector<8x384xf32>
    %162 = arith.mulf %161, %160 : vector<8x384xf32>
    %cst_56 = arith.constant 5.000000e-01 : f32
    %163 = vector.broadcast %cst_56 : f32 to vector<8x384xf32>
    %164 = arith.addf %162, %163 : vector<8x384xf32>
    %165 = vector.extract_strided_slice %164 {offsets = [0, 0], sizes = [8, 128], strides = [1, 1]} : vector<8x384xf32> to vector<8x128xf32>
    %166 = vector.extract_strided_slice %164 {offsets = [0, 128], sizes = [8, 128], strides = [1, 1]} : vector<8x384xf32> to vector<8x128xf32>
    %167 = vector.extract_strided_slice %164 {offsets = [0, 256], sizes = [8, 128], strides = [1, 1]} : vector<8x384xf32> to vector<8x128xf32>
    %168 = vector.extract_strided_slice %156 {offsets = [0, 384], sizes = [8, 128], strides = [1, 1]} : vector<8x512xf32> to vector<8x128xf32>
    %169 = math.tanh %168 : vector<8x128xf32>
    %170 = arith.mulf %166, %144 : vector<8x128xf32>
    %171 = arith.mulf %165, %169 : vector<8x128xf32>
    %172 = arith.addf %170, %171 : vector<8x128xf32>
    %173 = math.tanh %172 : vector<8x128xf32>
    %174 = arith.mulf %167, %173 : vector<8x128xf32>
    %c8_i32_57 = arith.constant 8 : i32
    %175 = arith.muli %c5_i32, %c8_i32_57 : i32
    %176 = tpu.assume_multiple %175, 8 : i32
    %177 = arith.index_cast %176 : i32 to index
    %c0_58 = arith.constant 0 : index
    %178 = vector.load %arg12[%177, %c0_58] : memref<64x128xf32, #tpu.memory_space<vmem>>, vector<8x128xf32>
    tpu.vector_store %arg12[%177, %c0_58], %174 {strides = array<i32>} : memref<64x128xf32, #tpu.memory_space<vmem>>, vector<8x128xf32>,
    %c6_i32 = arith.constant 6 : i32
    %179 = arith.index_cast %c6_i32 : i32 to index
    %c0_59 = arith.constant 0 : index
    %c0_60 = arith.constant 0 : index
    %180 = vector.load %arg1[%179, %c0_59, %c0_60] : memref<8x8x512xf32, #tpu.memory_space<vmem>>, vector<1x8x512xf32>
    %181 = vector.shape_cast %180 : vector<1x8x512xf32> to vector<8x512xf32>
    %182 = arith.addf %181, %6 : vector<8x512xf32>
    %cst_61 = arith.constant dense<0.000000e+00> : vector<8x512xf32>
    %183 = tpu.matmul %174, %4, %cst_61 {dimension_numbers = #tpu.dot_dimension_numbers<[1], [0], [0], [1], [0, 0, 1, 1], [], []>} : vector<8x128xf32>, vector<128x512xf32>, vector<8x512xf32> -> vector<8x512xf32>
    %184 = arith.addf %182, %183 : vector<8x512xf32>
    %185 = vector.extract_strided_slice %184 {offsets = [0, 0], sizes = [8, 384], strides = [1, 1]} : vector<8x512xf32> to vector<8x384xf32>
    %cst_62 = arith.constant 5.000000e-01 : f32
    %186 = vector.broadcast %cst_62 : f32 to vector<8x384xf32>
    %187 = arith.mulf %186, %185 : vector<8x384xf32>
    %188 = math.tanh %187 : vector<8x384xf32>
    %cst_63 = arith.constant 5.000000e-01 : f32
    %189 = vector.broadcast %cst_63 : f32 to vector<8x384xf32>
    %190 = arith.mulf %189, %188 : vector<8x384xf32>
    %cst_64 = arith.constant 5.000000e-01 : f32
    %191 = vector.broadcast %cst_64 : f32 to vector<8x384xf32>
    %192 = arith.addf %190, %191 : vector<8x384xf32>
    %193 = vector.extract_strided_slice %192 {offsets = [0, 0], sizes = [8, 128], strides = [1, 1]} : vector<8x384xf32> to vector<8x128xf32>
    %194 = vector.extract_strided_slice %192 {offsets = [0, 128], sizes = [8, 128], strides = [1, 1]} : vector<8x384xf32> to vector<8x128xf32>
    %195 = vector.extract_strided_slice %192 {offsets = [0, 256], sizes = [8, 128], strides = [1, 1]} : vector<8x384xf32> to vector<8x128xf32>
    %196 = vector.extract_strided_slice %184 {offsets = [0, 384], sizes = [8, 128], strides = [1, 1]} : vector<8x512xf32> to vector<8x128xf32>
    %197 = math.tanh %196 : vector<8x128xf32>
    %198 = arith.mulf %194, %172 : vector<8x128xf32>
    %199 = arith.mulf %193, %197 : vector<8x128xf32>
    %200 = arith.addf %198, %199 : vector<8x128xf32>
    %201 = math.tanh %200 : vector<8x128xf32>
    %202 = arith.mulf %195, %201 : vector<8x128xf32>
    %c8_i32_65 = arith.constant 8 : i32
    %203 = arith.muli %c6_i32, %c8_i32_65 : i32
    %204 = tpu.assume_multiple %203, 8 : i32
    %205 = arith.index_cast %204 : i32 to index
    %c0_66 = arith.constant 0 : index
    %206 = vector.load %arg12[%205, %c0_66] : memref<64x128xf32, #tpu.memory_space<vmem>>, vector<8x128xf32>
    tpu.vector_store %arg12[%205, %c0_66], %202 {strides = array<i32>} : memref<64x128xf32, #tpu.memory_space<vmem>>, vector<8x128xf32>,
    %c7_i32 = arith.constant 7 : i32
    %207 = arith.index_cast %c7_i32 : i32 to index
    %c0_67 = arith.constant 0 : index
    %c0_68 = arith.constant 0 : index
    %208 = vector.load %arg1[%207, %c0_67, %c0_68] : memref<8x8x512xf32, #tpu.memory_space<vmem>>, vector<1x8x512xf32>
    %209 = vector.shape_cast %208 : vector<1x8x512xf32> to vector<8x512xf32>
    %210 = arith.addf %209, %6 : vector<8x512xf32>
    %cst_69 = arith.constant dense<0.000000e+00> : vector<8x512xf32>
    %211 = tpu.matmul %202, %4, %cst_69 {dimension_numbers = #tpu.dot_dimension_numbers<[1], [0], [0], [1], [0, 0, 1, 1], [], []>} : vector<8x128xf32>, vector<128x512xf32>, vector<8x512xf32> -> vector<8x512xf32>
    %212 = arith.addf %210, %211 : vector<8x512xf32>
    %213 = vector.extract_strided_slice %212 {offsets = [0, 0], sizes = [8, 384], strides = [1, 1]} : vector<8x512xf32> to vector<8x384xf32>
    %cst_70 = arith.constant 5.000000e-01 : f32
    %214 = vector.broadcast %cst_70 : f32 to vector<8x384xf32>
    %215 = arith.mulf %214, %213 : vector<8x384xf32>
    %216 = math.tanh %215 : vector<8x384xf32>
    %cst_71 = arith.constant 5.000000e-01 : f32
    %217 = vector.broadcast %cst_71 : f32 to vector<8x384xf32>
    %218 = arith.mulf %217, %216 : vector<8x384xf32>
    %cst_72 = arith.constant 5.000000e-01 : f32
    %219 = vector.broadcast %cst_72 : f32 to vector<8x384xf32>
    %220 = arith.addf %218, %219 : vector<8x384xf32>
    %221 = vector.extract_strided_slice %220 {offsets = [0, 0], sizes = [8, 128], strides = [1, 1]} : vector<8x384xf32> to vector<8x128xf32>
    %222 = vector.extract_strided_slice %220 {offsets = [0, 128], sizes = [8, 128], strides = [1, 1]} : vector<8x384xf32> to vector<8x128xf32>
    %223 = vector.extract_strided_slice %220 {offsets = [0, 256], sizes = [8, 128], strides = [1, 1]} : vector<8x384xf32> to vector<8x128xf32>
    %224 = vector.extract_strided_slice %212 {offsets = [0, 384], sizes = [8, 128], strides = [1, 1]} : vector<8x512xf32> to vector<8x128xf32>
    %225 = math.tanh %224 : vector<8x128xf32>
    %226 = arith.mulf %222, %200 : vector<8x128xf32>
    %227 = arith.mulf %221, %225 : vector<8x128xf32>
    %228 = arith.addf %226, %227 : vector<8x128xf32>
    %229 = math.tanh %228 : vector<8x128xf32>
    %230 = arith.mulf %223, %229 : vector<8x128xf32>
    %c8_i32_73 = arith.constant 8 : i32
    %231 = arith.muli %c7_i32, %c8_i32_73 : i32
    %232 = tpu.assume_multiple %231, 8 : i32
    %233 = arith.index_cast %232 : i32 to index
    %c0_74 = arith.constant 0 : index
    %234 = vector.load %arg12[%233, %c0_74] : memref<64x128xf32, #tpu.memory_space<vmem>>, vector<8x128xf32>
    tpu.vector_store %arg12[%233, %c0_74], %230 {strides = array<i32>} : memref<64x128xf32, #tpu.memory_space<vmem>>, vector<8x128xf32>,
    %c8_i32_75 = arith.constant 8 : i32
    %c0_76 = arith.constant 0 : index
    %c0_77 = arith.constant 0 : index
    %c0_78 = arith.constant 0 : index
    %235 = vector.load %arg10[%c0_76, %c0_77, %c0_78] : memref<2x8x128xf32, #tpu.memory_space<vmem>>, vector<1x8x128xf32>
    %236 = vector.shape_cast %235 : vector<1x8x128xf32> to vector<8x128xf32>
    %237 = vector.shape_cast %230 : vector<8x128xf32> to vector<1x8x128xf32>
    tpu.vector_store %arg10[%c0_76, %c0_77, %c0_78], %237 {strides = array<i32>} : memref<2x8x128xf32, #tpu.memory_space<vmem>>, vector<1x8x128xf32>,
    %c0_79 = arith.constant 0 : index
    %c0_80 = arith.constant 0 : index
    %c0_81 = arith.constant 0 : index
    %238 = vector.load %arg11[%c0_79, %c0_80, %c0_81] : memref<2x8x128xf32, #tpu.memory_space<vmem>>, vector<1x8x128xf32>
    %239 = vector.shape_cast %238 : vector<1x8x128xf32> to vector<8x128xf32>
    %240 = vector.shape_cast %228 : vector<8x128xf32> to vector<1x8x128xf32>
    tpu.vector_store %arg11[%c0_79, %c0_80, %c0_81], %240 {strides = array<i32>} : memref<2x8x128xf32, #tpu.memory_space<vmem>>, vector<1x8x128xf32>,
    %c0_82 = arith.constant 0 : index
    %c0_83 = arith.constant 0 : index
    %241 = vector.load %arg12[%c0_82, %c0_83] : memref<64x128xf32, #tpu.memory_space<vmem>>, vector<64x128xf32>
    %c0_84 = arith.constant 0 : index
    %c0_85 = arith.constant 0 : index
    %c0_86 = arith.constant 0 : index
    %242 = vector.load %arg4[%c0_84, %c0_85, %c0_86] : memref<1x128x512xf32, #tpu.memory_space<vmem>>, vector<1x128x512xf32>
    %243 = vector.shape_cast %242 : vector<1x128x512xf32> to vector<128x512xf32>
    %cst_87 = arith.constant dense<0.000000e+00> : vector<64x512xf32>
    %244 = tpu.matmul %241, %243, %cst_87 {dimension_numbers = #tpu.dot_dimension_numbers<[1], [0], [0], [1], [0, 0, 1, 1], [], []>} : vector<64x128xf32>, vector<128x512xf32>, vector<64x512xf32> -> vector<64x512xf32>
    %c0_88 = arith.constant 0 : index
    %c0_89 = arith.constant 0 : index
    %245 = vector.load %arg13[%c0_88, %c0_89] : memref<64x512xf32, #tpu.memory_space<vmem>>, vector<64x512xf32>
    tpu.vector_store %arg13[%c0_88, %c0_89], %244 {strides = array<i32>} : memref<64x512xf32, #tpu.memory_space<vmem>>, vector<64x512xf32>,
    %c1 = arith.constant 1 : index
    %c0_90 = arith.constant 0 : index
    %c0_91 = arith.constant 0 : index
    %246 = vector.load %arg5[%c1, %c0_90, %c0_91] : memref<2x128x512xf32, #tpu.memory_space<vmem>>, vector<1x128x512xf32>
    %247 = vector.shape_cast %246 : vector<1x128x512xf32> to vector<128x512xf32>
    %c1_92 = arith.constant 1 : index
    %c0_93 = arith.constant 0 : index
    %c0_94 = arith.constant 0 : index
    %248 = vector.load %arg6[%c1_92, %c0_93, %c0_94] : memref<2x8x512xf32, #tpu.memory_space<vmem>>, vector<1x8x512xf32>
    %249 = vector.shape_cast %248 : vector<1x8x512xf32> to vector<8x512xf32>
    %c1_95 = arith.constant 1 : index
    %c0_96 = arith.constant 0 : index
    %c0_97 = arith.constant 0 : index
    %250 = vector.load %arg10[%c1_95, %c0_96, %c0_97] : memref<2x8x128xf32, #tpu.memory_space<vmem>>, vector<1x8x128xf32>
    %251 = vector.shape_cast %250 : vector<1x8x128xf32> to vector<8x128xf32>
    %c1_98 = arith.constant 1 : index
    %c0_99 = arith.constant 0 : index
    %c0_100 = arith.constant 0 : index
    %252 = vector.load %arg11[%c1_98, %c0_99, %c0_100] : memref<2x8x128xf32, #tpu.memory_space<vmem>>, vector<1x8x128xf32>
    %253 = vector.shape_cast %252 : vector<1x8x128xf32> to vector<8x128xf32>
    %c0_i32_101 = arith.constant 0 : i32
    %c8_i32_102 = arith.constant 8 : i32
    %254 = arith.muli %c0_i32_101, %c8_i32_102 : i32
    %255 = tpu.assume_multiple %254, 8 : i32
    %256 = arith.index_cast %255 : i32 to index
    %c0_103 = arith.constant 0 : index
    %257 = vector.load %arg13[%256, %c0_103] : memref<64x512xf32, #tpu.memory_space<vmem>>, vector<8x512xf32>
    %258 = arith.addf %257, %249 : vector<8x512xf32>
    %cst_104 = arith.constant dense<0.000000e+00> : vector<8x512xf32>
    %259 = tpu.matmul %251, %247, %cst_104 {dimension_numbers = #tpu.dot_dimension_numbers<[1], [0], [0], [1], [0, 0, 1, 1], [], []>} : vector<8x128xf32>, vector<128x512xf32>, vector<8x512xf32> -> vector<8x512xf32>
    %260 = arith.addf %258, %259 : vector<8x512xf32>
    %261 = vector.extract_strided_slice %260 {offsets = [0, 0], sizes = [8, 384], strides = [1, 1]} : vector<8x512xf32> to vector<8x384xf32>
    %cst_105 = arith.constant 5.000000e-01 : f32
    %262 = vector.broadcast %cst_105 : f32 to vector<8x384xf32>
    %263 = arith.mulf %262, %261 : vector<8x384xf32>
    %264 = math.tanh %263 : vector<8x384xf32>
    %cst_106 = arith.constant 5.000000e-01 : f32
    %265 = vector.broadcast %cst_106 : f32 to vector<8x384xf32>
    %266 = arith.mulf %265, %264 : vector<8x384xf32>
    %cst_107 = arith.constant 5.000000e-01 : f32
    %267 = vector.broadcast %cst_107 : f32 to vector<8x384xf32>
    %268 = arith.addf %266, %267 : vector<8x384xf32>
    %269 = vector.extract_strided_slice %268 {offsets = [0, 0], sizes = [8, 128], strides = [1, 1]} : vector<8x384xf32> to vector<8x128xf32>
    %270 = vector.extract_strided_slice %268 {offsets = [0, 128], sizes = [8, 128], strides = [1, 1]} : vector<8x384xf32> to vector<8x128xf32>
    %271 = vector.extract_strided_slice %268 {offsets = [0, 256], sizes = [8, 128], strides = [1, 1]} : vector<8x384xf32> to vector<8x128xf32>
    %272 = vector.extract_strided_slice %260 {offsets = [0, 384], sizes = [8, 128], strides = [1, 1]} : vector<8x512xf32> to vector<8x128xf32>
    %273 = math.tanh %272 : vector<8x128xf32>
    %274 = arith.mulf %270, %253 : vector<8x128xf32>
    %275 = arith.mulf %269, %273 : vector<8x128xf32>
    %276 = arith.addf %274, %275 : vector<8x128xf32>
    %277 = math.tanh %276 : vector<8x128xf32>
    %278 = arith.mulf %271, %277 : vector<8x128xf32>
    %279 = arith.index_cast %c0_i32_101 : i32 to index
    %c0_108 = arith.constant 0 : index
    %c0_109 = arith.constant 0 : index
    %280 = vector.load %arg7[%279, %c0_108, %c0_109] : memref<8x8x128xf32, #tpu.memory_space<vmem>>, vector<1x8x128xf32>
    %281 = vector.shape_cast %280 : vector<1x8x128xf32> to vector<8x128xf32>
    %282 = vector.shape_cast %278 : vector<8x128xf32> to vector<1x8x128xf32>
    tpu.vector_store %arg7[%279, %c0_108, %c0_109], %282 {strides = array<i32>} : memref<8x8x128xf32, #tpu.memory_space<vmem>>, vector<1x8x128xf32>,
    %c1_i32_110 = arith.constant 1 : i32
    %c8_i32_111 = arith.constant 8 : i32
    %283 = arith.muli %c1_i32_110, %c8_i32_111 : i32
    %284 = tpu.assume_multiple %283, 8 : i32
    %285 = arith.index_cast %284 : i32 to index
    %c0_112 = arith.constant 0 : index
    %286 = vector.load %arg13[%285, %c0_112] : memref<64x512xf32, #tpu.memory_space<vmem>>, vector<8x512xf32>
    %287 = arith.addf %286, %249 : vector<8x512xf32>
    %cst_113 = arith.constant dense<0.000000e+00> : vector<8x512xf32>
    %288 = tpu.matmul %278, %247, %cst_113 {dimension_numbers = #tpu.dot_dimension_numbers<[1], [0], [0], [1], [0, 0, 1, 1], [], []>} : vector<8x128xf32>, vector<128x512xf32>, vector<8x512xf32> -> vector<8x512xf32>
    %289 = arith.addf %287, %288 : vector<8x512xf32>
    %290 = vector.extract_strided_slice %289 {offsets = [0, 0], sizes = [8, 384], strides = [1, 1]} : vector<8x512xf32> to vector<8x384xf32>
    %cst_114 = arith.constant 5.000000e-01 : f32
    %291 = vector.broadcast %cst_114 : f32 to vector<8x384xf32>
    %292 = arith.mulf %291, %290 : vector<8x384xf32>
    %293 = math.tanh %292 : vector<8x384xf32>
    %cst_115 = arith.constant 5.000000e-01 : f32
    %294 = vector.broadcast %cst_115 : f32 to vector<8x384xf32>
    %295 = arith.mulf %294, %293 : vector<8x384xf32>
    %cst_116 = arith.constant 5.000000e-01 : f32
    %296 = vector.broadcast %cst_116 : f32 to vector<8x384xf32>
    %297 = arith.addf %295, %296 : vector<8x384xf32>
    %298 = vector.extract_strided_slice %297 {offsets = [0, 0], sizes = [8, 128], strides = [1, 1]} : vector<8x384xf32> to vector<8x128xf32>
    %299 = vector.extract_strided_slice %297 {offsets = [0, 128], sizes = [8, 128], strides = [1, 1]} : vector<8x384xf32> to vector<8x128xf32>
    %300 = vector.extract_strided_slice %297 {offsets = [0, 256], sizes = [8, 128], strides = [1, 1]} : vector<8x384xf32> to vector<8x128xf32>
    %301 = vector.extract_strided_slice %289 {offsets = [0, 384], sizes = [8, 128], strides = [1, 1]} : vector<8x512xf32> to vector<8x128xf32>
    %302 = math.tanh %301 : vector<8x128xf32>
    %303 = arith.mulf %299, %276 : vector<8x128xf32>
    %304 = arith.mulf %298, %302 : vector<8x128xf32>
    %305 = arith.addf %303, %304 : vector<8x128xf32>
    %306 = math.tanh %305 : vector<8x128xf32>
    %307 = arith.mulf %300, %306 : vector<8x128xf32>
    %308 = arith.index_cast %c1_i32_110 : i32 to index
    %c0_117 = arith.constant 0 : index
    %c0_118 = arith.constant 0 : index
    %309 = vector.load %arg7[%308, %c0_117, %c0_118] : memref<8x8x128xf32, #tpu.memory_space<vmem>>, vector<1x8x128xf32>
    %310 = vector.shape_cast %309 : vector<1x8x128xf32> to vector<8x128xf32>
    %311 = vector.shape_cast %307 : vector<8x128xf32> to vector<1x8x128xf32>
    tpu.vector_store %arg7[%308, %c0_117, %c0_118], %311 {strides = array<i32>} : memref<8x8x128xf32, #tpu.memory_space<vmem>>, vector<1x8x128xf32>,
    %c2_i32_119 = arith.constant 2 : i32
    %c8_i32_120 = arith.constant 8 : i32
    %312 = arith.muli %c2_i32_119, %c8_i32_120 : i32
    %313 = tpu.assume_multiple %312, 8 : i32
    %314 = arith.index_cast %313 : i32 to index
    %c0_121 = arith.constant 0 : index
    %315 = vector.load %arg13[%314, %c0_121] : memref<64x512xf32, #tpu.memory_space<vmem>>, vector<8x512xf32>
    %316 = arith.addf %315, %249 : vector<8x512xf32>
    %cst_122 = arith.constant dense<0.000000e+00> : vector<8x512xf32>
    %317 = tpu.matmul %307, %247, %cst_122 {dimension_numbers = #tpu.dot_dimension_numbers<[1], [0], [0], [1], [0, 0, 1, 1], [], []>} : vector<8x128xf32>, vector<128x512xf32>, vector<8x512xf32> -> vector<8x512xf32>
    %318 = arith.addf %316, %317 : vector<8x512xf32>
    %319 = vector.extract_strided_slice %318 {offsets = [0, 0], sizes = [8, 384], strides = [1, 1]} : vector<8x512xf32> to vector<8x384xf32>
    %cst_123 = arith.constant 5.000000e-01 : f32
    %320 = vector.broadcast %cst_123 : f32 to vector<8x384xf32>
    %321 = arith.mulf %320, %319 : vector<8x384xf32>
    %322 = math.tanh %321 : vector<8x384xf32>
    %cst_124 = arith.constant 5.000000e-01 : f32
    %323 = vector.broadcast %cst_124 : f32 to vector<8x384xf32>
    %324 = arith.mulf %323, %322 : vector<8x384xf32>
    %cst_125 = arith.constant 5.000000e-01 : f32
    %325 = vector.broadcast %cst_125 : f32 to vector<8x384xf32>
    %326 = arith.addf %324, %325 : vector<8x384xf32>
    %327 = vector.extract_strided_slice %326 {offsets = [0, 0], sizes = [8, 128], strides = [1, 1]} : vector<8x384xf32> to vector<8x128xf32>
    %328 = vector.extract_strided_slice %326 {offsets = [0, 128], sizes = [8, 128], strides = [1, 1]} : vector<8x384xf32> to vector<8x128xf32>
    %329 = vector.extract_strided_slice %326 {offsets = [0, 256], sizes = [8, 128], strides = [1, 1]} : vector<8x384xf32> to vector<8x128xf32>
    %330 = vector.extract_strided_slice %318 {offsets = [0, 384], sizes = [8, 128], strides = [1, 1]} : vector<8x512xf32> to vector<8x128xf32>
    %331 = math.tanh %330 : vector<8x128xf32>
    %332 = arith.mulf %328, %305 : vector<8x128xf32>
    %333 = arith.mulf %327, %331 : vector<8x128xf32>
    %334 = arith.addf %332, %333 : vector<8x128xf32>
    %335 = math.tanh %334 : vector<8x128xf32>
    %336 = arith.mulf %329, %335 : vector<8x128xf32>
    %337 = arith.index_cast %c2_i32_119 : i32 to index
    %c0_126 = arith.constant 0 : index
    %c0_127 = arith.constant 0 : index
    %338 = vector.load %arg7[%337, %c0_126, %c0_127] : memref<8x8x128xf32, #tpu.memory_space<vmem>>, vector<1x8x128xf32>
    %339 = vector.shape_cast %338 : vector<1x8x128xf32> to vector<8x128xf32>
    %340 = vector.shape_cast %336 : vector<8x128xf32> to vector<1x8x128xf32>
    tpu.vector_store %arg7[%337, %c0_126, %c0_127], %340 {strides = array<i32>} : memref<8x8x128xf32, #tpu.memory_space<vmem>>, vector<1x8x128xf32>,
    %c3_i32_128 = arith.constant 3 : i32
    %c8_i32_129 = arith.constant 8 : i32
    %341 = arith.muli %c3_i32_128, %c8_i32_129 : i32
    %342 = tpu.assume_multiple %341, 8 : i32
    %343 = arith.index_cast %342 : i32 to index
    %c0_130 = arith.constant 0 : index
    %344 = vector.load %arg13[%343, %c0_130] : memref<64x512xf32, #tpu.memory_space<vmem>>, vector<8x512xf32>
    %345 = arith.addf %344, %249 : vector<8x512xf32>
    %cst_131 = arith.constant dense<0.000000e+00> : vector<8x512xf32>
    %346 = tpu.matmul %336, %247, %cst_131 {dimension_numbers = #tpu.dot_dimension_numbers<[1], [0], [0], [1], [0, 0, 1, 1], [], []>} : vector<8x128xf32>, vector<128x512xf32>, vector<8x512xf32> -> vector<8x512xf32>
    %347 = arith.addf %345, %346 : vector<8x512xf32>
    %348 = vector.extract_strided_slice %347 {offsets = [0, 0], sizes = [8, 384], strides = [1, 1]} : vector<8x512xf32> to vector<8x384xf32>
    %cst_132 = arith.constant 5.000000e-01 : f32
    %349 = vector.broadcast %cst_132 : f32 to vector<8x384xf32>
    %350 = arith.mulf %349, %348 : vector<8x384xf32>
    %351 = math.tanh %350 : vector<8x384xf32>
    %cst_133 = arith.constant 5.000000e-01 : f32
    %352 = vector.broadcast %cst_133 : f32 to vector<8x384xf32>
    %353 = arith.mulf %352, %351 : vector<8x384xf32>
    %cst_134 = arith.constant 5.000000e-01 : f32
    %354 = vector.broadcast %cst_134 : f32 to vector<8x384xf32>
    %355 = arith.addf %353, %354 : vector<8x384xf32>
    %356 = vector.extract_strided_slice %355 {offsets = [0, 0], sizes = [8, 128], strides = [1, 1]} : vector<8x384xf32> to vector<8x128xf32>
    %357 = vector.extract_strided_slice %355 {offsets = [0, 128], sizes = [8, 128], strides = [1, 1]} : vector<8x384xf32> to vector<8x128xf32>
    %358 = vector.extract_strided_slice %355 {offsets = [0, 256], sizes = [8, 128], strides = [1, 1]} : vector<8x384xf32> to vector<8x128xf32>
    %359 = vector.extract_strided_slice %347 {offsets = [0, 384], sizes = [8, 128], strides = [1, 1]} : vector<8x512xf32> to vector<8x128xf32>
    %360 = math.tanh %359 : vector<8x128xf32>
    %361 = arith.mulf %357, %334 : vector<8x128xf32>
    %362 = arith.mulf %356, %360 : vector<8x128xf32>
    %363 = arith.addf %361, %362 : vector<8x128xf32>
    %364 = math.tanh %363 : vector<8x128xf32>
    %365 = arith.mulf %358, %364 : vector<8x128xf32>
    %366 = arith.index_cast %c3_i32_128 : i32 to index
    %c0_135 = arith.constant 0 : index
    %c0_136 = arith.constant 0 : index
    %367 = vector.load %arg7[%366, %c0_135, %c0_136] : memref<8x8x128xf32, #tpu.memory_space<vmem>>, vector<1x8x128xf32>
    %368 = vector.shape_cast %367 : vector<1x8x128xf32> to vector<8x128xf32>
    %369 = vector.shape_cast %365 : vector<8x128xf32> to vector<1x8x128xf32>
    tpu.vector_store %arg7[%366, %c0_135, %c0_136], %369 {strides = array<i32>} : memref<8x8x128xf32, #tpu.memory_space<vmem>>, vector<1x8x128xf32>,
    %c4_i32_137 = arith.constant 4 : i32
    %c8_i32_138 = arith.constant 8 : i32
    %370 = arith.muli %c4_i32_137, %c8_i32_138 : i32
    %371 = tpu.assume_multiple %370, 8 : i32
    %372 = arith.index_cast %371 : i32 to index
    %c0_139 = arith.constant 0 : index
    %373 = vector.load %arg13[%372, %c0_139] : memref<64x512xf32, #tpu.memory_space<vmem>>, vector<8x512xf32>
    %374 = arith.addf %373, %249 : vector<8x512xf32>
    %cst_140 = arith.constant dense<0.000000e+00> : vector<8x512xf32>
    %375 = tpu.matmul %365, %247, %cst_140 {dimension_numbers = #tpu.dot_dimension_numbers<[1], [0], [0], [1], [0, 0, 1, 1], [], []>} : vector<8x128xf32>, vector<128x512xf32>, vector<8x512xf32> -> vector<8x512xf32>
    %376 = arith.addf %374, %375 : vector<8x512xf32>
    %377 = vector.extract_strided_slice %376 {offsets = [0, 0], sizes = [8, 384], strides = [1, 1]} : vector<8x512xf32> to vector<8x384xf32>
    %cst_141 = arith.constant 5.000000e-01 : f32
    %378 = vector.broadcast %cst_141 : f32 to vector<8x384xf32>
    %379 = arith.mulf %378, %377 : vector<8x384xf32>
    %380 = math.tanh %379 : vector<8x384xf32>
    %cst_142 = arith.constant 5.000000e-01 : f32
    %381 = vector.broadcast %cst_142 : f32 to vector<8x384xf32>
    %382 = arith.mulf %381, %380 : vector<8x384xf32>
    %cst_143 = arith.constant 5.000000e-01 : f32
    %383 = vector.broadcast %cst_143 : f32 to vector<8x384xf32>
    %384 = arith.addf %382, %383 : vector<8x384xf32>
    %385 = vector.extract_strided_slice %384 {offsets = [0, 0], sizes = [8, 128], strides = [1, 1]} : vector<8x384xf32> to vector<8x128xf32>
    %386 = vector.extract_strided_slice %384 {offsets = [0, 128], sizes = [8, 128], strides = [1, 1]} : vector<8x384xf32> to vector<8x128xf32>
    %387 = vector.extract_strided_slice %384 {offsets = [0, 256], sizes = [8, 128], strides = [1, 1]} : vector<8x384xf32> to vector<8x128xf32>
    %388 = vector.extract_strided_slice %376 {offsets = [0, 384], sizes = [8, 128], strides = [1, 1]} : vector<8x512xf32> to vector<8x128xf32>
    %389 = math.tanh %388 : vector<8x128xf32>
    %390 = arith.mulf %386, %363 : vector<8x128xf32>
    %391 = arith.mulf %385, %389 : vector<8x128xf32>
    %392 = arith.addf %390, %391 : vector<8x128xf32>
    %393 = math.tanh %392 : vector<8x128xf32>
    %394 = arith.mulf %387, %393 : vector<8x128xf32>
    %395 = arith.index_cast %c4_i32_137 : i32 to index
    %c0_144 = arith.constant 0 : index
    %c0_145 = arith.constant 0 : index
    %396 = vector.load %arg7[%395, %c0_144, %c0_145] : memref<8x8x128xf32, #tpu.memory_space<vmem>>, vector<1x8x128xf32>
    %397 = vector.shape_cast %396 : vector<1x8x128xf32> to vector<8x128xf32>
    %398 = vector.shape_cast %394 : vector<8x128xf32> to vector<1x8x128xf32>
    tpu.vector_store %arg7[%395, %c0_144, %c0_145], %398 {strides = array<i32>} : memref<8x8x128xf32, #tpu.memory_space<vmem>>, vector<1x8x128xf32>,
    %c5_i32_146 = arith.constant 5 : i32
    %c8_i32_147 = arith.constant 8 : i32
    %399 = arith.muli %c5_i32_146, %c8_i32_147 : i32
    %400 = tpu.assume_multiple %399, 8 : i32
    %401 = arith.index_cast %400 : i32 to index
    %c0_148 = arith.constant 0 : index
    %402 = vector.load %arg13[%401, %c0_148] : memref<64x512xf32, #tpu.memory_space<vmem>>, vector<8x512xf32>
    %403 = arith.addf %402, %249 : vector<8x512xf32>
    %cst_149 = arith.constant dense<0.000000e+00> : vector<8x512xf32>
    %404 = tpu.matmul %394, %247, %cst_149 {dimension_numbers = #tpu.dot_dimension_numbers<[1], [0], [0], [1], [0, 0, 1, 1], [], []>} : vector<8x128xf32>, vector<128x512xf32>, vector<8x512xf32> -> vector<8x512xf32>
    %405 = arith.addf %403, %404 : vector<8x512xf32>
    %406 = vector.extract_strided_slice %405 {offsets = [0, 0], sizes = [8, 384], strides = [1, 1]} : vector<8x512xf32> to vector<8x384xf32>
    %cst_150 = arith.constant 5.000000e-01 : f32
    %407 = vector.broadcast %cst_150 : f32 to vector<8x384xf32>
    %408 = arith.mulf %407, %406 : vector<8x384xf32>
    %409 = math.tanh %408 : vector<8x384xf32>
    %cst_151 = arith.constant 5.000000e-01 : f32
    %410 = vector.broadcast %cst_151 : f32 to vector<8x384xf32>
    %411 = arith.mulf %410, %409 : vector<8x384xf32>
    %cst_152 = arith.constant 5.000000e-01 : f32
    %412 = vector.broadcast %cst_152 : f32 to vector<8x384xf32>
    %413 = arith.addf %411, %412 : vector<8x384xf32>
    %414 = vector.extract_strided_slice %413 {offsets = [0, 0], sizes = [8, 128], strides = [1, 1]} : vector<8x384xf32> to vector<8x128xf32>
    %415 = vector.extract_strided_slice %413 {offsets = [0, 128], sizes = [8, 128], strides = [1, 1]} : vector<8x384xf32> to vector<8x128xf32>
    %416 = vector.extract_strided_slice %413 {offsets = [0, 256], sizes = [8, 128], strides = [1, 1]} : vector<8x384xf32> to vector<8x128xf32>
    %417 = vector.extract_strided_slice %405 {offsets = [0, 384], sizes = [8, 128], strides = [1, 1]} : vector<8x512xf32> to vector<8x128xf32>
    %418 = math.tanh %417 : vector<8x128xf32>
    %419 = arith.mulf %415, %392 : vector<8x128xf32>
    %420 = arith.mulf %414, %418 : vector<8x128xf32>
    %421 = arith.addf %419, %420 : vector<8x128xf32>
    %422 = math.tanh %421 : vector<8x128xf32>
    %423 = arith.mulf %416, %422 : vector<8x128xf32>
    %424 = arith.index_cast %c5_i32_146 : i32 to index
    %c0_153 = arith.constant 0 : index
    %c0_154 = arith.constant 0 : index
    %425 = vector.load %arg7[%424, %c0_153, %c0_154] : memref<8x8x128xf32, #tpu.memory_space<vmem>>, vector<1x8x128xf32>
    %426 = vector.shape_cast %425 : vector<1x8x128xf32> to vector<8x128xf32>
    %427 = vector.shape_cast %423 : vector<8x128xf32> to vector<1x8x128xf32>
    tpu.vector_store %arg7[%424, %c0_153, %c0_154], %427 {strides = array<i32>} : memref<8x8x128xf32, #tpu.memory_space<vmem>>, vector<1x8x128xf32>,
    %c6_i32_155 = arith.constant 6 : i32
    %c8_i32_156 = arith.constant 8 : i32
    %428 = arith.muli %c6_i32_155, %c8_i32_156 : i32
    %429 = tpu.assume_multiple %428, 8 : i32
    %430 = arith.index_cast %429 : i32 to index
    %c0_157 = arith.constant 0 : index
    %431 = vector.load %arg13[%430, %c0_157] : memref<64x512xf32, #tpu.memory_space<vmem>>, vector<8x512xf32>
    %432 = arith.addf %431, %249 : vector<8x512xf32>
    %cst_158 = arith.constant dense<0.000000e+00> : vector<8x512xf32>
    %433 = tpu.matmul %423, %247, %cst_158 {dimension_numbers = #tpu.dot_dimension_numbers<[1], [0], [0], [1], [0, 0, 1, 1], [], []>} : vector<8x128xf32>, vector<128x512xf32>, vector<8x512xf32> -> vector<8x512xf32>
    %434 = arith.addf %432, %433 : vector<8x512xf32>
    %435 = vector.extract_strided_slice %434 {offsets = [0, 0], sizes = [8, 384], strides = [1, 1]} : vector<8x512xf32> to vector<8x384xf32>
    %cst_159 = arith.constant 5.000000e-01 : f32
    %436 = vector.broadcast %cst_159 : f32 to vector<8x384xf32>
    %437 = arith.mulf %436, %435 : vector<8x384xf32>
    %438 = math.tanh %437 : vector<8x384xf32>
    %cst_160 = arith.constant 5.000000e-01 : f32
    %439 = vector.broadcast %cst_160 : f32 to vector<8x384xf32>
    %440 = arith.mulf %439, %438 : vector<8x384xf32>
    %cst_161 = arith.constant 5.000000e-01 : f32
    %441 = vector.broadcast %cst_161 : f32 to vector<8x384xf32>
    %442 = arith.addf %440, %441 : vector<8x384xf32>
    %443 = vector.extract_strided_slice %442 {offsets = [0, 0], sizes = [8, 128], strides = [1, 1]} : vector<8x384xf32> to vector<8x128xf32>
    %444 = vector.extract_strided_slice %442 {offsets = [0, 128], sizes = [8, 128], strides = [1, 1]} : vector<8x384xf32> to vector<8x128xf32>
    %445 = vector.extract_strided_slice %442 {offsets = [0, 256], sizes = [8, 128], strides = [1, 1]} : vector<8x384xf32> to vector<8x128xf32>
    %446 = vector.extract_strided_slice %434 {offsets = [0, 384], sizes = [8, 128], strides = [1, 1]} : vector<8x512xf32> to vector<8x128xf32>
    %447 = math.tanh %446 : vector<8x128xf32>
    %448 = arith.mulf %444, %421 : vector<8x128xf32>
    %449 = arith.mulf %443, %447 : vector<8x128xf32>
    %450 = arith.addf %448, %449 : vector<8x128xf32>
    %451 = math.tanh %450 : vector<8x128xf32>
    %452 = arith.mulf %445, %451 : vector<8x128xf32>
    %453 = arith.index_cast %c6_i32_155 : i32 to index
    %c0_162 = arith.constant 0 : index
    %c0_163 = arith.constant 0 : index
    %454 = vector.load %arg7[%453, %c0_162, %c0_163] : memref<8x8x128xf32, #tpu.memory_space<vmem>>, vector<1x8x128xf32>
    %455 = vector.shape_cast %454 : vector<1x8x128xf32> to vector<8x128xf32>
    %456 = vector.shape_cast %452 : vector<8x128xf32> to vector<1x8x128xf32>
    tpu.vector_store %arg7[%453, %c0_162, %c0_163], %456 {strides = array<i32>} : memref<8x8x128xf32, #tpu.memory_space<vmem>>, vector<1x8x128xf32>,
    %c7_i32_164 = arith.constant 7 : i32
    %c8_i32_165 = arith.constant 8 : i32
    %457 = arith.muli %c7_i32_164, %c8_i32_165 : i32
    %458 = tpu.assume_multiple %457, 8 : i32
    %459 = arith.index_cast %458 : i32 to index
    %c0_166 = arith.constant 0 : index
    %460 = vector.load %arg13[%459, %c0_166] : memref<64x512xf32, #tpu.memory_space<vmem>>, vector<8x512xf32>
    %461 = arith.addf %460, %249 : vector<8x512xf32>
    %cst_167 = arith.constant dense<0.000000e+00> : vector<8x512xf32>
    %462 = tpu.matmul %452, %247, %cst_167 {dimension_numbers = #tpu.dot_dimension_numbers<[1], [0], [0], [1], [0, 0, 1, 1], [], []>} : vector<8x128xf32>, vector<128x512xf32>, vector<8x512xf32> -> vector<8x512xf32>
    %463 = arith.addf %461, %462 : vector<8x512xf32>
    %464 = vector.extract_strided_slice %463 {offsets = [0, 0], sizes = [8, 384], strides = [1, 1]} : vector<8x512xf32> to vector<8x384xf32>
    %cst_168 = arith.constant 5.000000e-01 : f32
    %465 = vector.broadcast %cst_168 : f32 to vector<8x384xf32>
    %466 = arith.mulf %465, %464 : vector<8x384xf32>
    %467 = math.tanh %466 : vector<8x384xf32>
    %cst_169 = arith.constant 5.000000e-01 : f32
    %468 = vector.broadcast %cst_169 : f32 to vector<8x384xf32>
    %469 = arith.mulf %468, %467 : vector<8x384xf32>
    %cst_170 = arith.constant 5.000000e-01 : f32
    %470 = vector.broadcast %cst_170 : f32 to vector<8x384xf32>
    %471 = arith.addf %469, %470 : vector<8x384xf32>
    %472 = vector.extract_strided_slice %471 {offsets = [0, 0], sizes = [8, 128], strides = [1, 1]} : vector<8x384xf32> to vector<8x128xf32>
    %473 = vector.extract_strided_slice %471 {offsets = [0, 128], sizes = [8, 128], strides = [1, 1]} : vector<8x384xf32> to vector<8x128xf32>
    %474 = vector.extract_strided_slice %471 {offsets = [0, 256], sizes = [8, 128], strides = [1, 1]} : vector<8x384xf32> to vector<8x128xf32>
    %475 = vector.extract_strided_slice %463 {offsets = [0, 384], sizes = [8, 128], strides = [1, 1]} : vector<8x512xf32> to vector<8x128xf32>
    %476 = math.tanh %475 : vector<8x128xf32>
    %477 = arith.mulf %473, %450 : vector<8x128xf32>
    %478 = arith.mulf %472, %476 : vector<8x128xf32>
    %479 = arith.addf %477, %478 : vector<8x128xf32>
    %480 = math.tanh %479 : vector<8x128xf32>
    %481 = arith.mulf %474, %480 : vector<8x128xf32>
    %482 = arith.index_cast %c7_i32_164 : i32 to index
    %c0_171 = arith.constant 0 : index
    %c0_172 = arith.constant 0 : index
    %483 = vector.load %arg7[%482, %c0_171, %c0_172] : memref<8x8x128xf32, #tpu.memory_space<vmem>>, vector<1x8x128xf32>
    %484 = vector.shape_cast %483 : vector<1x8x128xf32> to vector<8x128xf32>
    %485 = vector.shape_cast %481 : vector<8x128xf32> to vector<1x8x128xf32>
    tpu.vector_store %arg7[%482, %c0_171, %c0_172], %485 {strides = array<i32>} : memref<8x8x128xf32, #tpu.memory_space<vmem>>, vector<1x8x128xf32>,
    %c8_i32_173 = arith.constant 8 : i32
    %c1_174 = arith.constant 1 : index
    %c0_175 = arith.constant 0 : index
    %c0_176 = arith.constant 0 : index
    %486 = vector.load %arg10[%c1_174, %c0_175, %c0_176] : memref<2x8x128xf32, #tpu.memory_space<vmem>>, vector<1x8x128xf32>
    %487 = vector.shape_cast %486 : vector<1x8x128xf32> to vector<8x128xf32>
    %488 = vector.shape_cast %481 : vector<8x128xf32> to vector<1x8x128xf32>
    tpu.vector_store %arg10[%c1_174, %c0_175, %c0_176], %488 {strides = array<i32>} : memref<2x8x128xf32, #tpu.memory_space<vmem>>, vector<1x8x128xf32>,
    %c1_177 = arith.constant 1 : index
    %c0_178 = arith.constant 0 : index
    %c0_179 = arith.constant 0 : index
    %489 = vector.load %arg11[%c1_177, %c0_178, %c0_179] : memref<2x8x128xf32, #tpu.memory_space<vmem>>, vector<1x8x128xf32>
    %490 = vector.shape_cast %489 : vector<1x8x128xf32> to vector<8x128xf32>
    %491 = vector.shape_cast %479 : vector<8x128xf32> to vector<1x8x128xf32>
    tpu.vector_store %arg11[%c1_177, %c0_178, %c0_179], %491 {strides = array<i32>} : memref<2x8x128xf32, #tpu.memory_space<vmem>>, vector<1x8x128xf32>,
    %c0_i32_180 = arith.constant 0 : i32
    %492 = arith.cmpi eq, %arg0, %c0_i32_180 : i32
    %493 = arith.extui %492 : i1 to i32
    %c0_i32_181 = arith.constant 0 : i32
    %494 = arith.cmpi ne, %493, %c0_i32_181 : i32
    scf.if %494 {
      %c0_182 = arith.constant 0 : index
      %c0_183 = arith.constant 0 : index
      %c0_184 = arith.constant 0 : index
      %495 = vector.load %arg10[%c0_182, %c0_183, %c0_184] : memref<2x8x128xf32, #tpu.memory_space<vmem>>, vector<2x8x128xf32>
      %c0_185 = arith.constant 0 : index
      %c0_186 = arith.constant 0 : index
      %c0_187 = arith.constant 0 : index
      %496 = vector.load %arg8[%c0_185, %c0_186, %c0_187] : memref<2x8x128xf32, #tpu.memory_space<vmem>>, vector<2x8x128xf32>
      tpu.vector_store %arg8[%c0_185, %c0_186, %c0_187], %495 {strides = array<i32>} : memref<2x8x128xf32, #tpu.memory_space<vmem>>, vector<2x8x128xf32>,
      %c0_188 = arith.constant 0 : index
      %c0_189 = arith.constant 0 : index
      %c0_190 = arith.constant 0 : index
      %497 = vector.load %arg11[%c0_188, %c0_189, %c0_190] : memref<2x8x128xf32, #tpu.memory_space<vmem>>, vector<2x8x128xf32>
      %c0_191 = arith.constant 0 : index
      %c0_192 = arith.constant 0 : index
      %c0_193 = arith.constant 0 : index
      %498 = vector.load %arg9[%c0_191, %c0_192, %c0_193] : memref<2x8x128xf32, #tpu.memory_space<vmem>>, vector<2x8x128xf32>
      tpu.vector_store %arg9[%c0_191, %c0_192, %c0_193], %497 {strides = array<i32>} : memref<2x8x128xf32, #tpu.memory_space<vmem>>, vector<2x8x128xf32>,
    } else {
    }
    return
  }
  func.func @transform_0(%arg0: i32) -> (i32, i32, i32) {
    %c0_i32 = arith.constant 0 : i32
    %c0_i32_0 = arith.constant 0 : i32
    %c0_i32_1 = arith.constant 0 : i32
    return %arg0, %c0_i32, %c0_i32_0 : i32, i32, i32
  }
  func.func @transform_1(%arg0: i32) -> (i32, i32, i32) {
    %c0_i32 = arith.constant 0 : i32
    %c0_i32_0 = arith.constant 0 : i32
    %c0_i32_1 = arith.constant 0 : i32
    %c0_i32_2 = arith.constant 0 : i32
    return %c0_i32, %c0_i32_0, %c0_i32_1 : i32, i32, i32
  }
  func.func @transform_2(%arg0: i32) -> (i32, i32, i32) {
    %c0_i32 = arith.constant 0 : i32
    %c0_i32_0 = arith.constant 0 : i32
    %c0_i32_1 = arith.constant 0 : i32
    %c0_i32_2 = arith.constant 0 : i32
    return %c0_i32, %c0_i32_0, %c0_i32_1 : i32, i32, i32
  }
  func.func @transform_3(%arg0: i32) -> (i32, i32, i32) {
    %c0_i32 = arith.constant 0 : i32
    %c0_i32_0 = arith.constant 0 : i32
    %c0_i32_1 = arith.constant 0 : i32
    %c0_i32_2 = arith.constant 0 : i32
    return %c0_i32, %c0_i32_0, %c0_i32_1 : i32, i32, i32
  }
  func.func @transform_4(%arg0: i32) -> (i32, i32, i32) {
    %c0_i32 = arith.constant 0 : i32
    %c0_i32_0 = arith.constant 0 : i32
    %c0_i32_1 = arith.constant 0 : i32
    %c0_i32_2 = arith.constant 0 : i32
    return %c0_i32, %c0_i32_0, %c0_i32_1 : i32, i32, i32
  }
  func.func @transform_5(%arg0: i32) -> (i32, i32, i32) {
    %c0_i32 = arith.constant 0 : i32
    %c0_i32_0 = arith.constant 0 : i32
    %c0_i32_1 = arith.constant 0 : i32
    %c0_i32_2 = arith.constant 0 : i32
    return %c0_i32, %c0_i32_0, %c0_i32_1 : i32, i32, i32
  }
  func.func @transform_6(%arg0: i32) -> (i32, i32, i32) {
    %c0_i32 = arith.constant 0 : i32
    %c0_i32_0 = arith.constant 0 : i32
    %c0_i32_1 = arith.constant 0 : i32
    return %arg0, %c0_i32, %c0_i32_0 : i32, i32, i32
  }
  func.func @transform_7(%arg0: i32) -> (i32, i32, i32) {
    %c0_i32 = arith.constant 0 : i32
    %c0_i32_0 = arith.constant 0 : i32
    %c0_i32_1 = arith.constant 0 : i32
    %c0_i32_2 = arith.constant 0 : i32
    return %c0_i32, %c0_i32_0, %c0_i32_1 : i32, i32, i32
  }
  func.func @transform_8(%arg0: i32) -> (i32, i32, i32) {
    %c0_i32 = arith.constant 0 : i32
    %c0_i32_0 = arith.constant 0 : i32
    %c0_i32_1 = arith.constant 0 : i32
    %c0_i32_2 = arith.constant 0 : i32
    return %c0_i32, %c0_i32_0, %c0_i32_1 : i32, i32, i32
  }
}

</mosaic_0001>

<llo_original>
// kernel: _forward_impl.1
$region0: #{_forward_impl.1}
  #allocation0 [shape = 'u32[]', space=smem, size = 0x4, offset = 0x4, fixed_abs, tag = 'smem constant byte address 0x4 - core index']
  #allocation1 [shape = 'u32[144,128]{1,0:T(1,128)}', space=vmem, size = 0x12000, scoped, tag = 'internal scratch']
  #allocation2 [shape = 'f32[2,8,128]{2,1,0:T(8,128)}', space=vmem, size = 0x2000, scoped, tag = 'scratch operand']
  #allocation3 [shape = 'f32[2,8,128]{2,1,0:T(8,128)}', space=vmem, size = 0x2000, scoped, tag = 'scratch operand']
  #allocation4 [shape = 'f32[64,128]{1,0:T(8,128)}', space=vmem, size = 0x8000, scoped, tag = 'scratch operand']
  #allocation5 [shape = 'f32[64,512]{1,0:T(8,128)}', space=vmem, size = 0x20000, scoped, tag = 'scratch operand']
  %s0 = inlined_call_operand.vmem [shape: f32[8,8,512], index: 0, kind: input, shape index: {}]
  %s1 = inlined_call_operand.vmem [shape: f32[2,8,128], index: 1, kind: input, shape index: {}]
  %s2 = inlined_call_operand.vmem [shape: f32[2,8,128], index: 2, kind: input, shape index: {}]
  %s3 = inlined_call_operand.vmem [shape: f32[1,128,512], index: 3, kind: input, shape index: {}]
  %s4 = inlined_call_operand.hbm [shape: f32[2,128,512], index: 4, kind: input, shape index: {}]
  %s5 = inlined_call_operand.vmem [shape: f32[2,8,512], index: 5, kind: input, shape index: {}]
  %s6 = inlined_call_operand.vmem [shape: f32[8,8,128], index: 6, kind: output, shape index: {0}]
  %s7 = inlined_call_operand.vmem [shape: f32[2,8,128], index: 7, kind: output, shape index: {1}]
  %s8 = inlined_call_operand.vmem [shape: f32[2,8,128], index: 8, kind: output, shape index: {2}]
  %9 = xla_tuple %s6, %s7, %s8
  %s10 = sld [smem:[#allocation0]]
  $region62: #{_forward_impl.1} parent=0
    _
  %s12 = ssub.s32 1, %s10
  %s13 = scalar_select 0, %s12, %s10
  $region1: #{_forward_impl.1} parent=0
    #allocation6 [shape = 'u8[524288]{0}', space=vmem, size = 0x80000, scoped, tag = 'input window, operand 4, single buffered']
    #allocation7 [shape = 's32[1]{0}', space=sflag, size = 0x4, scoped, tag = 'scoped memory for _forward_impl.1']
    %14 = vsyncpa [#allocation7], 0
    // Predicated region
    $region2: #{_forward_impl.1} parent=1 // pred_check
      _
    $region3: #{_forward_impl.1} parent=1 // pred_check_branch
      %16 = sbr.rel (0) target = $region5
    $region4: #{_forward_impl.1} parent=1 // pred_region
      _
    $region5: #{_forward_impl.1} parent=1 // pred_fallthru
      _
    // Predicated region
    $region6: #{_forward_impl.1} parent=1 // pred_check
      _
    $region7: #{_forward_impl.1} parent=1 // pred_check_branch
      %18 = sbr.rel (0) target = $region9
    $region8: #{_forward_impl.1} parent=1 // pred_region
      _
    $region9: #{_forward_impl.1} parent=1 // pred_fallthru
      _
    // Predicated region
    $region10: #{_forward_impl.1} parent=1 // pred_check
      _
    $region11: #{_forward_impl.1} parent=1 // pred_check_branch
      %20 = sbr.rel (0) target = $region13
    $region12: #{_forward_impl.1} parent=1 // pred_region
      _
    $region13: #{_forward_impl.1} parent=1 // pred_fallthru
      _
    // Predicated region
    $region14: #{_forward_impl.1} parent=1 // pred_check
      _
    $region15: #{_forward_impl.1} parent=1 // pred_check_branch
      %22 = sbr.rel (0) target = $region17
    $region16: #{_forward_impl.1} parent=1 // pred_region
      _
    $region17: #{_forward_impl.1} parent=1 // pred_fallthru
      _
    // Predicated region
    $region18: #{_forward_impl.1} parent=1 // pred_check
      _
    $region19: #{_forward_impl.1} parent=1 // pred_check_branch
      %24 = sbr.rel (0) target = $region21
    $region20: #{_forward_impl.1} parent=1 // pred_region
      %s26 = ssub.s32 16384, 16384
      %27 = vsyncadd [#allocation7], %s26
      %s28 = sshll.u32 [#allocation6], 4
      %s29 = int_to_ptr.vmem [resolvable:$true] %s28
      %34 = dma.hbm_to_vmem [thread:$0]  %s4, 16384, %s29, [#allocation7], 512, 512, 32
    $region21: #{_forward_impl.1} parent=1 // pred_fallthru
      _
    // Predicated region
    $region22: #{_forward_impl.1} parent=1 // pred_check
      _
    $region23: #{_forward_impl.1} parent=1 // pred_check_branch
      %36 = sbr.rel (0) target = $region25
    $region24: #{_forward_impl.1} parent=1 // pred_region
      _
    $region25: #{_forward_impl.1} parent=1 // pred_fallthru
      _
    // Predicated region
    $region26: #{_forward_impl.1} parent=1 // pred_check
      _
    $region27: #{_forward_impl.1} parent=1 // pred_check_branch
      %38 = sbr.rel (0) target = $region29
    $region28: #{_forward_impl.1} parent=1 // pred_region
      %39 = dma.done [#allocation7], 16384
    $region29: #{_forward_impl.1} parent=1 // pred_fallthru
      _
    %p40 = scmp.eq.s32.totalorder 0, 0
    // Predicated region
    $region30: #{_forward_impl.1} parent=1 // pred_check
      %p41 = pneg %p40
    $region31: #{_forward_impl.1} parent=1 // pred_check_branch
      %43 = sbr.rel (%p41) target = $region33
    $region32: #{_forward_impl.1} parent=1 // pred_region
      %v44 = vld [vmem:[%s1] sm:$0xff]
      %v45 = vld [vmem:[%s1 + $0x8] sm:$0xff]
      %46 = vst [vmem:[#allocation2] sm:$0xff] %v44
      %47 = vst [vmem:[#allocation2 + $0x8] sm:$0xff] %v45
      %v48 = vld [vmem:[%s2] sm:$0xff]
      %v49 = vld [vmem:[%s2 + $0x8] sm:$0xff]
      %50 = vst [vmem:[#allocation3] sm:$0xff] %v48
      %51 = vst [vmem:[#allocation3 + $0x8] sm:$0xff] %v49
    $region33: #{_forward_impl.1} parent=1 // pred_fallthru
      _
    %v52 = vld [vmem:[#allocation6] sm:$0xff]
    %v53 = vld [vmem:[#allocation6 + $0x8] sm:$0xff]
    %v54 = vld [vmem:[#allocation6 + $0x10] sm:$0xff]
    %v55 = vld [vmem:[#allocation6 + $0x18] sm:$0xff]
    %v56 = vld [vmem:[#allocation6 + $0x20] sm:$0xff]
    %v57 = vld [vmem:[#allocation6 + $0x28] sm:$0xff]
    %v58 = vld [vmem:[#allocation6 + $0x30] sm:$0xff]
    %v59 = vld [vmem:[#allocation6 + $0x38] sm:$0xff]
    %v60 = vld [vmem:[#allocation6 + $0x40] sm:$0xff]
    %v61 = vld [vmem:[#allocation6 + $0x48] sm:$0xff]
    %v62 = vld [vmem:[#allocation6 + $0x50] sm:$0xff]
    %v63 = vld [vmem:[#allocation6 + $0x58] sm:$0xff]
    %v64 = vld [vmem:[#allocation6 + $0x60] sm:$0xff]
    %v65 = vld [vmem:[#allocation6 + $0x68] sm:$0xff]
    %v66 = vld [vmem:[#allocation6 + $0x70] sm:$0xff]
    %v67 = vld [vmem:[#allocation6 + $0x78] sm:$0xff]
    %v68 = vld [vmem:[#allocation6 + $0x80] sm:$0xff]
    %v69 = vld [vmem:[#allocation6 + $0x88] sm:$0xff]
    %v70 = vld [vmem:[#allocation6 + $0x90] sm:$0xff]
    %v71 = vld [vmem:[#allocation6 + $0x98] sm:$0xff]
    %v72 = vld [vmem:[#allocation6 + $0xa0] sm:$0xff]
    %v73 = vld [vmem:[#allocation6 + $0xa8] sm:$0xff]
    %v74 = vld [vmem:[#allocation6 + $0xb0] sm:$0xff]
    %v75 = vld [vmem:[#allocation6 + $0xb8] sm:$0xff]
    %v76 = vld [vmem:[#allocation6 + $0xc0] sm:$0xff]
    %v77 = vld [vmem:[#allocation6 + $0xc8] sm:$0xff]
    %v78 = vld [vmem:[#allocation6 + $0xd0] sm:$0xff]
    %v79 = vld [vmem:[#allocation6 + $0xd8] sm:$0xff]
    %v80 = vld [vmem:[#allocation6 + $0xe0] sm:$0xff]
    %v81 = vld [vmem:[#allocation6 + $0xe8] sm:$0xff]
    %v82 = vld [vmem:[#allocation6 + $0xf0] sm:$0xff]
    %v83 = vld [vmem:[#allocation6 + $0xf8] sm:$0xff]
    %v84 = vld [vmem:[#allocation6 + $0x100] sm:$0xff]
    %v85 = vld [vmem:[#allocation6 + $0x108] sm:$0xff]
    %v86 = vld [vmem:[#allocation6 + $0x110] sm:$0xff]
    %v87 = vld [vmem:[#allocation6 + $0x118] sm:$0xff]
    %v88 = vld [vmem:[#allocation6 + $0x120] sm:$0xff]
    %v89 = vld [vmem:[#allocation6 + $0x128] sm:$0xff]
    %v90 = vld [vmem:[#allocation6 + $0x130] sm:$0xff]
    %v91 = vld [vmem:[#allocation6 + $0x138] sm:$0xff]
    %v92 = vld [vmem:[#allocation6 + $0x140] sm:$0xff]
    %v93 = vld [vmem:[#allocation6 + $0x148] sm:$0xff]
    %v94 = vld [vmem:[#allocation6 + $0x150] sm:$0xff]
    %v95 = vld [vmem:[#allocation6 + $0x158] sm:$0xff]
    %v96 = vld [vmem:[#allocation6 + $0x160] sm:$0xff]
    %v97 = vld [vmem:[#allocation6 + $0x168] sm:$0xff]
    %v98 = vld [vmem:[#allocation6 + $0x170] sm:$0xff]
    %v99 = vld [vmem:[#allocation6 + $0x178] sm:$0xff]
    %v100 = vld [vmem:[#allocation6 + $0x180] sm:$0xff]
    %v101 = vld [vmem:[#allocation6 + $0x188] sm:$0xff]
    %v102 = vld [vmem:[#allocation6 + $0x190] sm:$0xff]
    %v103 = vld [vmem:[#allocation6 + $0x198] sm:$0xff]
    %v104 = vld [vmem:[#allocation6 + $0x1a0] sm:$0xff]
    %v105 = vld [vmem:[#allocation6 + $0x1a8] sm:$0xff]
    %v106 = vld [vmem:[#allocation6 + $0x1b0] sm:$0xff]
    %v107 = vld [vmem:[#allocation6 + $0x1b8] sm:$0xff]
    %v108 = vld [vmem:[#allocation6 + $0x1c0] sm:$0xff]
    %v109 = vld [vmem:[#allocation6 + $0x1c8] sm:$0xff]
    %v110 = vld [vmem:[#allocation6 + $0x1d0] sm:$0xff]
    %v111 = vld [vmem:[#allocation6 + $0x1d8] sm:$0xff]
    %v112 = vld [vmem:[#allocation6 + $0x1e0] sm:$0xff]
    %v113 = vld [vmem:[#allocation6 + $0x1e8] sm:$0xff]
    %v114 = vld [vmem:[#allocation6 + $0x1f0] sm:$0xff]
    %v115 = vld [vmem:[#allocation6 + $0x1f8] sm:$0xff]
    %v116 = vld [vmem:[%s5] sm:$0xff]
    %v117 = vld [vmem:[%s5 + $0x8] sm:$0xff]
    %v118 = vld [vmem:[%s5 + $0x10] sm:$0xff]
    %v119 = vld [vmem:[%s5 + $0x18] sm:$0xff]
    %v120 = vld [vmem:[#allocation2] sm:$0xff]
    %v121 = vld [vmem:[#allocation3] sm:$0xff]
    %v122 = vld [vmem:[%s0] sm:$0xff]
    %v123 = vld [vmem:[%s0 + $0x8] sm:$0xff]
    %v124 = vld [vmem:[%s0 + $0x10] sm:$0xff]
    %v125 = vld [vmem:[%s0 + $0x18] sm:$0xff]
    %v126 = vadd.f32 %v122, %v116
    %v127 = vadd.f32 %v123, %v117
    %v128 = vadd.f32 %v124, %v118
    %v129 = vadd.f32 %v125, %v119
    %130 = vmatprep.subr.mxu0 %v53
    %131 = vmatpush1.msra.mxu0 %v52
    %132 = vmatprep.subr.mxu0 %v57
    %133 = vmatpush1.msra.mxu0 %v56
    %134 = vmatprep.subr.mxu0 %v61
    %135 = vmatpush1.msra.mxu0 %v60
    %136 = vmatprep.subr.mxu0 %v65
    %137 = vmatpush1.msra.mxu0 %v64
    %138 = vmatprep.subr.mxu0 %v69
    %139 = vmatpush1.msra.mxu0 %v68
    %140 = vmatprep.subr.mxu0 %v73
    %141 = vmatpush1.msra.mxu0 %v72
    %142 = vmatprep.subr.mxu0 %v77
    %143 = vmatpush1.msra.mxu0 %v76
    %144 = vmatprep.subr.mxu0 %v81
    %145 = vmatpush1.msra.mxu0 %v80
    %146 = vmatprep.subr.mxu0 %v85
    %147 = vmatpush1.msra.mxu0 %v84
    %148 = vmatprep.subr.mxu0 %v89
    %149 = vmatpush1.msra.mxu0 %v88
    %150 = vmatprep.subr.mxu0 %v93
    %151 = vmatpush1.msra.mxu0 %v92
    %152 = vmatprep.subr.mxu0 %v97
    %153 = vmatpush1.msra.mxu0 %v96
    %154 = vmatprep.subr.mxu0 %v101
    %155 = vmatpush1.msra.mxu0 %v100
    %156 = vmatprep.subr.mxu0 %v105
    %157 = vmatpush1.msra.mxu0 %v104
    %158 = vmatprep.subr.mxu0 %v109
    %159 = vmatpush1.msra.mxu0 %v108
    %160 = vmatprep.subr.mxu0 %v113
    %161 = vmatpush1.msra.mxu0 %v112
    %162 = vmatprep.subr.mxu0 0.0
    %163 = vmatpush1.msra.mxu0 0.0
    %164 = vmatprep.subr.mxu0 0.0
    %165 = vmatpush1.msra.mxu0 0.0
    %166 = vmatprep.subr.mxu0 0.0
    %167 = vmatpush1.msra.mxu0 0.0
    %168 = vmatprep.subr.mxu0 0.0
    %169 = vmatpush1.msra.mxu0 0.0
    %170 = vmatprep.subr.mxu0 0.0
    %171 = vmatpush1.msra.mxu0 0.0
    %172 = vmatprep.subr.mxu0 0.0
    %173 = vmatpush1.msra.mxu0 0.0
    %174 = vmatprep.subr.mxu0 0.0
    %175 = vmatpush1.msra.mxu0 0.0
    %176 = vmatprep.subr.mxu0 0.0
    %177 = vmatpush1.msra.mxu0 0.0
    %178 = vmatprep.subr.mxu0 0.0
    %179 = vmatpush1.msra.mxu0 0.0
    %180 = vmatprep.subr.mxu0 0.0
    %181 = vmatpush1.msra.mxu0 0.0
    %182 = vmatprep.subr.mxu0 0.0
    %183 = vmatpush1.msra.mxu0 0.0
    %184 = vmatprep.subr.mxu0 0.0
    %185 = vmatpush1.msra.mxu0 0.0
    %186 = vmatprep.subr.mxu0 0.0
    %187 = vmatpush1.msra.mxu0 0.0
    %188 = vmatprep.subr.mxu0 0.0
    %189 = vmatpush1.msra.mxu0 0.0
    %190 = vmatprep.subr.mxu0 0.0
    %191 = vmatpush1.msra.mxu0 0.0
    %192 = vmatprep.subr.mxu0 0.0
    %193 = vmatpush1.msra.mxu0 0.0
    %194 = vmatprep.mubr.f32.mxu0 0.0
    %195 = vmatmul.mubr.f32.gmra.mrb[0].mxu0 %v120
    %v196 = vpop.f32.mrb[0].mxu0
    %v197 = vadd.f32 0.0, %v196
    %v198 = vpop.f32.mrb[0].mxu0
    %v199 = vadd.f32 0.0, %v198
    %200 = vdwg.mxu0
    %201 = vmatprep.subr.mxu0 %v55
    %202 = vmatpush1.msra.mxu0 %v54
    %203 = vmatprep.subr.mxu0 %v59
    %204 = vmatpush1.msra.mxu0 %v58
    %205 = vmatprep.subr.mxu0 %v63
    %206 = vmatpush1.msra.mxu0 %v62
    %207 = vmatprep.subr.mxu0 %v67
    %208 = vmatpush1.msra.mxu0 %v66
    %209 = vmatprep.subr.mxu0 %v71
    %210 = vmatpush1.msra.mxu0 %v70
    %211 = vmatprep.subr.mxu0 %v75
    %212 = vmatpush1.msra.mxu0 %v74
    %213 = vmatprep.subr.mxu0 %v79
    %214 = vmatpush1.msra.mxu0 %v78
    %215 = vmatprep.subr.mxu0 %v83
    %216 = vmatpush1.msra.mxu0 %v82
    %217 = vmatprep.subr.mxu0 %v87
    %218 = vmatpush1.msra.mxu0 %v86
    %219 = vmatprep.subr.mxu0 %v91
    %220 = vmatpush1.msra.mxu0 %v90
    %221 = vmatprep.subr.mxu0 %v95
    %222 = vmatpush1.msra.mxu0 %v94
    %223 = vmatprep.subr.mxu0 %v99
    %224 = vmatpush1.msra.mxu0 %v98
    %225 = vmatprep.subr.mxu0 %v103
    %226 = vmatpush1.msra.mxu0 %v102
    %227 = vmatprep.subr.mxu0 %v107
    %228 = vmatpush1.msra.mxu0 %v106
    %229 = vmatprep.subr.mxu0 %v111
    %230 = vmatpush1.msra.mxu0 %v110
    %231 = vmatprep.subr.mxu0 %v115
    %232 = vmatpush1.msra.mxu0 %v114
    %233 = vmatprep.subr.mxu0 0.0
    %234 = vmatpush1.msra.mxu0 0.0
    %235 = vmatprep.subr.mxu0 0.0
    %236 = vmatpush1.msra.mxu0 0.0
    %237 = vmatprep.subr.mxu0 0.0
    %238 = vmatpush1.msra.mxu0 0.0
    %239 = vmatprep.subr.mxu0 0.0
    %240 = vmatpush1.msra.mxu0 0.0
    %241 = vmatprep.subr.mxu0 0.0
    %242 = vmatpush1.msra.mxu0 0.0
    %243 = vmatprep.subr.mxu0 0.0
    %244 = vmatpush1.msra.mxu0 0.0
    %245 = vmatprep.subr.mxu0 0.0
    %246 = vmatpush1.msra.mxu0 0.0
    %247 = vmatprep.subr.mxu0 0.0
    %248 = vmatpush1.msra.mxu0 0.0
    %249 = vmatprep.subr.mxu0 0.0
    %250 = vmatpush1.msra.mxu0 0.0
    %251 = vmatprep.subr.mxu0 0.0
    %252 = vmatpush1.msra.mxu0 0.0
    %253 = vmatprep.subr.mxu0 0.0
    %254 = vmatpush1.msra.mxu0 0.0
    %255 = vmatprep.subr.mxu0 0.0
    %256 = vmatpush1.msra.mxu0 0.0
    %257 = vmatprep.subr.mxu0 0.0
    %258 = vmatpush1.msra.mxu0 0.0
    %259 = vmatprep.subr.mxu0 0.0
    %260 = vmatpush1.msra.mxu0 0.0
    %261 = vmatprep.subr.mxu0 0.0
    %262 = vmatpush1.msra.mxu0 0.0
    %263 = vmatprep.subr.mxu0 0.0
    %264 = vmatpush1.msra.mxu0 0.0
    %265 = vmatprep.mubr.f32.mxu0 0.0
    %266 = vmatmul.mubr.f32.gmra.mrb[0].mxu0 %v120
    %v267 = vpop.f32.mrb[0].mxu0
    %v268 = vadd.f32 0.0, %v267
    %v269 = vpop.f32.mrb[0].mxu0
    %v270 = vadd.f32 0.0, %v269
    %271 = vdwg.mxu0
    %v272 = vadd.f32 %v126, %v197
    %v273 = vadd.f32 %v127, %v199
    %v274 = vadd.f32 %v128, %v268
    %v275 = vadd.f32 %v129, %v270
    %v276 = vmul.f32 %v272, 0.5
    %v277 = vmul.f32 %v273, 0.5
    %v278 = vmul.f32 %v274, 0.5
    %v279 = vtanh.pop %v276
    %v280 = vtanh.pop %v277
    %v281 = vtanh.pop %v278
    %v282 = vmul.f32 %v279, 0.5
    %v283 = vmul.f32 %v280, 0.5
    %v284 = vmul.f32 %v281, 0.5
    %v285 = vadd.f32 %v282, 0.5
    %v286 = vadd.f32 %v283, 0.5
    %v287 = vadd.f32 %v284, 0.5
    %v288 = vtanh.pop %v275
    %v289 = vmul.f32 %v286, %v121
    %v290 = vmul.f32 %v285, %v288
    %v291 = vadd.f32 %v289, %v290
    %v292 = vtanh.pop %v291
    %v293 = vmul.f32 %v287, %v292
    %294 = vst [vmem:[#allocation4] sm:$0xff] %v293
    %s295 = scalar_lea.vmem %s0, 32
    %v296 = vld [vmem:[%s295] sm:$0xff]
    %v297 = vld [vmem:[%s295 + $0x8] sm:$0xff]
    %v298 = vld [vmem:[%s295 + $0x10] sm:$0xff]
    %v299 = vld [vmem:[%s295 + $0x18] sm:$0xff]
    %v300 = vadd.f32 %v296, %v116
    %v301 = vadd.f32 %v297, %v117
    %v302 = vadd.f32 %v298, %v118
    %v303 = vadd.f32 %v299, %v119
    %304 = vmatprep.subr.mxu0 %v53
    %305 = vmatpush1.msra.mxu0 %v52
    %306 = vmatprep.subr.mxu0 %v57
    %307 = vmatpush1.msra.mxu0 %v56
    %308 = vmatprep.subr.mxu0 %v61
    %309 = vmatpush1.msra.mxu0 %v60
    %310 = vmatprep.subr.mxu0 %v65
    %311 = vmatpush1.msra.mxu0 %v64
    %312 = vmatprep.subr.mxu0 %v69
    %313 = vmatpush1.msra.mxu0 %v68
    %314 = vmatprep.subr.mxu0 %v73
    %315 = vmatpush1.msra.mxu0 %v72
    %316 = vmatprep.subr.mxu0 %v77
    %317 = vmatpush1.msra.mxu0 %v76
    %318 = vmatprep.subr.mxu0 %v81
    %319 = vmatpush1.msra.mxu0 %v80
    %320 = vmatprep.subr.mxu0 %v85
    %321 = vmatpush1.msra.mxu0 %v84
    %322 = vmatprep.subr.mxu0 %v89
    %323 = vmatpush1.msra.mxu0 %v88
    %324 = vmatprep.subr.mxu0 %v93
    %325 = vmatpush1.msra.mxu0 %v92
    %326 = vmatprep.subr.mxu0 %v97
    %327 = vmatpush1.msra.mxu0 %v96
    %328 = vmatprep.subr.mxu0 %v101
    %329 = vmatpush1.msra.mxu0 %v100
    %330 = vmatprep.subr.mxu0 %v105
    %331 = vmatpush1.msra.mxu0 %v104
    %332 = vmatprep.subr.mxu0 %v109
    %333 = vmatpush1.msra.mxu0 %v108
    %334 = vmatprep.subr.mxu0 %v113
    %335 = vmatpush1.msra.mxu0 %v112
    %336 = vmatprep.subr.mxu0 0.0
    %337 = vmatpush1.msra.mxu0 0.0
    %338 = vmatprep.subr.mxu0 0.0
    %339 = vmatpush1.msra.mxu0 0.0
    %340 = vmatprep.subr.mxu0 0.0
    %341 = vmatpush1.msra.mxu0 0.0
    %342 = vmatprep.subr.mxu0 0.0
    %343 = vmatpush1.msra.mxu0 0.0
    %344 = vmatprep.subr.mxu0 0.0
    %345 = vmatpush1.msra.mxu0 0.0
    %346 = vmatprep.subr.mxu0 0.0
    %347 = vmatpush1.msra.mxu0 0.0
    %348 = vmatprep.subr.mxu0 0.0
    %349 = vmatpush1.msra.mxu0 0.0
    %350 = vmatprep.subr.mxu0 0.0
    %351 = vmatpush1.msra.mxu0 0.0
    %352 = vmatprep.subr.mxu0 0.0
    %353 = vmatpush1.msra.mxu0 0.0
    %354 = vmatprep.subr.mxu0 0.0
    %355 = vmatpush1.msra.mxu0 0.0
    %356 = vmatprep.subr.mxu0 0.0
    %357 = vmatpush1.msra.mxu0 0.0
    %358 = vmatprep.subr.mxu0 0.0
    %359 = vmatpush1.msra.mxu0 0.0
    %360 = vmatprep.subr.mxu0 0.0
    %361 = vmatpush1.msra.mxu0 0.0
    %362 = vmatprep.subr.mxu0 0.0
    %363 = vmatpush1.msra.mxu0 0.0
    %364 = vmatprep.subr.mxu0 0.0
    %365 = vmatpush1.msra.mxu0 0.0
    %366 = vmatprep.subr.mxu0 0.0
    %367 = vmatpush1.msra.mxu0 0.0
    %368 = vmatprep.mubr.f32.mxu0 0.0
    %369 = vmatmul.mubr.f32.gmra.mrb[0].mxu0 %v293
    %v370 = vpop.f32.mrb[0].mxu0
    %v371 = vadd.f32 0.0, %v370
    %v372 = vpop.f32.mrb[0].mxu0
    %v373 = vadd.f32 0.0, %v372
    %374 = vdwg.mxu0
    %375 = vmatprep.subr.mxu0 %v55
    %376 = vmatpush1.msra.mxu0 %v54
    %377 = vmatprep.subr.mxu0 %v59
    %378 = vmatpush1.msra.mxu0 %v58
    %379 = vmatprep.subr.mxu0 %v63
    %380 = vmatpush1.msra.mxu0 %v62
    %381 = vmatprep.subr.mxu0 %v67
    %382 = vmatpush1.msra.mxu0 %v66
    %383 = vmatprep.subr.mxu0 %v71
    %384 = vmatpush1.msra.mxu0 %v70
    %385 = vmatprep.subr.mxu0 %v75
    %386 = vmatpush1.msra.mxu0 %v74
    %387 = vmatprep.subr.mxu0 %v79
    %388 = vmatpush1.msra.mxu0 %v78
    %389 = vmatprep.subr.mxu0 %v83
    %390 = vmatpush1.msra.mxu0 %v82
    %391 = vmatprep.subr.mxu0 %v87
    %392 = vmatpush1.msra.mxu0 %v86
    %393 = vmatprep.subr.mxu0 %v91
    %394 = vmatpush1.msra.mxu0 %v90
    %395 = vmatprep.subr.mxu0 %v95
    %396 = vmatpush1.msra.mxu0 %v94
    %397 = vmatprep.subr.mxu0 %v99
    %398 = vmatpush1.msra.mxu0 %v98
    %399 = vmatprep.subr.mxu0 %v103
    %400 = vmatpush1.msra.mxu0 %v102
    %401 = vmatprep.subr.mxu0 %v107
    %402 = vmatpush1.msra.mxu0 %v106
    %403 = vmatprep.subr.mxu0 %v111
    %404 = vmatpush1.msra.mxu0 %v110
    %405 = vmatprep.subr.mxu0 %v115
    %406 = vmatpush1.msra.mxu0 %v114
    %407 = vmatprep.subr.mxu0 0.0
    %408 = vmatpush1.msra.mxu0 0.0
    %409 = vmatprep.subr.mxu0 0.0
    %410 = vmatpush1.msra.mxu0 0.0
    %411 = vmatprep.subr.mxu0 0.0
    %412 = vmatpush1.msra.mxu0 0.0
    %413 = vmatprep.subr.mxu0 0.0
    %414 = vmatpush1.msra.mxu0 0.0
    %415 = vmatprep.subr.mxu0 0.0
    %416 = vmatpush1.msra.mxu0 0.0
    %417 = vmatprep.subr.mxu0 0.0
    %418 = vmatpush1.msra.mxu0 0.0
    %419 = vmatprep.subr.mxu0 0.0
    %420 = vmatpush1.msra.mxu0 0.0
    %421 = vmatprep.subr.mxu0 0.0
    %422 = vmatpush1.msra.mxu0 0.0
    %423 = vmatprep.subr.mxu0 0.0
    %424 = vmatpush1.msra.mxu0 0.0
    %425 = vmatprep.subr.mxu0 0.0
    %426 = vmatpush1.msra.mxu0 0.0
    %427 = vmatprep.subr.mxu0 0.0
    %428 = vmatpush1.msra.mxu0 0.0
    %429 = vmatprep.subr.mxu0 0.0
    %430 = vmatpush1.msra.mxu0 0.0
    %431 = vmatprep.subr.mxu0 0.0
    %432 = vmatpush1.msra.mxu0 0.0
    %433 = vmatprep.subr.mxu0 0.0
    %434 = vmatpush1.msra.mxu0 0.0
    %435 = vmatprep.subr.mxu0 0.0
    %436 = vmatpush1.msra.mxu0 0.0
    %437 = vmatprep.subr.mxu0 0.0
    %438 = vmatpush1.msra.mxu0 0.0
    %439 = vmatprep.mubr.f32.mxu0 0.0
    %440 = vmatmul.mubr.f32.gmra.mrb[0].mxu0 %v293
    %v441 = vpop.f32.mrb[0].mxu0
    %v442 = vadd.f32 0.0, %v441
    %v443 = vpop.f32.mrb[0].mxu0
    %v444 = vadd.f32 0.0, %v443
    %445 = vdwg.mxu0
    %v446 = vadd.f32 %v300, %v371
    %v447 = vadd.f32 %v301, %v373
    %v448 = vadd.f32 %v302, %v442
    %v449 = vadd.f32 %v303, %v444
    %v450 = vmul.f32 %v446, 0.5
    %v451 = vmul.f32 %v447, 0.5
    %v452 = vmul.f32 %v448, 0.5
    %v453 = vtanh.pop %v450
    %v454 = vtanh.pop %v451
    %v455 = vtanh.pop %v452
    %v456 = vmul.f32 %v453, 0.5
    %v457 = vmul.f32 %v454, 0.5
    %v458 = vmul.f32 %v455, 0.5
    %v459 = vadd.f32 %v456, 0.5
    %v460 = vadd.f32 %v457, 0.5
    %v461 = vadd.f32 %v458, 0.5
    %v462 = vtanh.pop %v449
    %v463 = vmul.f32 %v460, %v291
    %v464 = vmul.f32 %v459, %v462
    %v465 = vadd.f32 %v463, %v464
    %v466 = vtanh.pop %v465
    %v467 = vmul.f32 %v461, %v466
    %s468 = scalar_lea.vmem [#allocation4], 8
    %469 = vst [vmem:[%s468] sm:$0xff] %v467
    %s470 = scalar_lea.vmem %s0, 64
    %v471 = vld [vmem:[%s470] sm:$0xff]
    %v472 = vld [vmem:[%s470 + $0x8] sm:$0xff]
    %v473 = vld [vmem:[%s470 + $0x10] sm:$0xff]
    %v474 = vld [vmem:[%s470 + $0x18] sm:$0xff]
    %v475 = vadd.f32 %v471, %v116
    %v476 = vadd.f32 %v472, %v117
    %v477 = vadd.f32 %v473, %v118
    %v478 = vadd.f32 %v474, %v119
    %479 = vmatprep.subr.mxu0 %v53
    %480 = vmatpush1.msra.mxu0 %v52
    %481 = vmatprep.subr.mxu0 %v57
    %482 = vmatpush1.msra.mxu0 %v56
    %483 = vmatprep.subr.mxu0 %v61
    %484 = vmatpush1.msra.mxu0 %v60
    %485 = vmatprep.subr.mxu0 %v65
    %486 = vmatpush1.msra.mxu0 %v64
    %487 = vmatprep.subr.mxu0 %v69
    %488 = vmatpush1.msra.mxu0 %v68
    %489 = vmatprep.subr.mxu0 %v73
    %490 = vmatpush1.msra.mxu0 %v72
    %491 = vmatprep.subr.mxu0 %v77
    %492 = vmatpush1.msra.mxu0 %v76
    %493 = vmatprep.subr.mxu0 %v81
    %494 = vmatpush1.msra.mxu0 %v80
    %495 = vmatprep.subr.mxu0 %v85
    %496 = vmatpush1.msra.mxu0 %v84
    %497 = vmatprep.subr.mxu0 %v89
    %498 = vmatpush1.msra.mxu0 %v88
    %499 = vmatprep.subr.mxu0 %v93
    %500 = vmatpush1.msra.mxu0 %v92
    %501 = vmatprep.subr.mxu0 %v97
    %502 = vmatpush1.msra.mxu0 %v96
    %503 = vmatprep.subr.mxu0 %v101
    %504 = vmatpush1.msra.mxu0 %v100
    %505 = vmatprep.subr.mxu0 %v105
    %506 = vmatpush1.msra.mxu0 %v104
    %507 = vmatprep.subr.mxu0 %v109
    %508 = vmatpush1.msra.mxu0 %v108
    %509 = vmatprep.subr.mxu0 %v113
    %510 = vmatpush1.msra.mxu0 %v112
    %511 = vmatprep.subr.mxu0 0.0
    %512 = vmatpush1.msra.mxu0 0.0
    %513 = vmatprep.subr.mxu0 0.0
    %514 = vmatpush1.msra.mxu0 0.0
    %515 = vmatprep.subr.mxu0 0.0
    %516 = vmatpush1.msra.mxu0 0.0
    %517 = vmatprep.subr.mxu0 0.0
    %518 = vmatpush1.msra.mxu0 0.0
    %519 = vmatprep.subr.mxu0 0.0
    %520 = vmatpush1.msra.mxu0 0.0
    %521 = vmatprep.subr.mxu0 0.0
    %522 = vmatpush1.msra.mxu0 0.0
    %523 = vmatprep.subr.mxu0 0.0
    %524 = vmatpush1.msra.mxu0 0.0
    %525 = vmatprep.subr.mxu0 0.0
    %526 = vmatpush1.msra.mxu0 0.0
    %527 = vmatprep.subr.mxu0 0.0
    %528 = vmatpush1.msra.mxu0 0.0
    %529 = vmatprep.subr.mxu0 0.0
    %530 = vmatpush1.msra.mxu0 0.0
    %531 = vmatprep.subr.mxu0 0.0
    %532 = vmatpush1.msra.mxu0 0.0
    %533 = vmatprep.subr.mxu0 0.0
    %534 = vmatpush1.msra.mxu0 0.0
    %535 = vmatprep.subr.mxu0 0.0
    %536 = vmatpush1.msra.mxu0 0.0
    %537 = vmatprep.subr.mxu0 0.0
    %538 = vmatpush1.msra.mxu0 0.0
    %539 = vmatprep.subr.mxu0 0.0
    %540 = vmatpush1.msra.mxu0 0.0
    %541 = vmatprep.subr.mxu0 0.0
    %542 = vmatpush1.msra.mxu0 0.0
    %543 = vmatprep.mubr.f32.mxu0 0.0
    %544 = vmatmul.mubr.f32.gmra.mrb[0].mxu0 %v467
    %v545 = vpop.f32.mrb[0].mxu0
    %v546 = vadd.f32 0.0, %v545
    %v547 = vpop.f32.mrb[0].mxu0
    %v548 = vadd.f32 0.0, %v547
    %549 = vdwg.mxu0
    %550 = vmatprep.subr.mxu0 %v55
    %551 = vmatpush1.msra.mxu0 %v54
    %552 = vmatprep.subr.mxu0 %v59
    %553 = vmatpush1.msra.mxu0 %v58
    %554 = vmatprep.subr.mxu0 %v63
    %555 = vmatpush1.msra.mxu0 %v62
    %556 = vmatprep.subr.mxu0 %v67
    %557 = vmatpush1.msra.mxu0 %v66
    %558 = vmatprep.subr.mxu0 %v71
    %559 = vmatpush1.msra.mxu0 %v70
    %560 = vmatprep.subr.mxu0 %v75
    %561 = vmatpush1.msra.mxu0 %v74
    %562 = vmatprep.subr.mxu0 %v79
    %563 = vmatpush1.msra.mxu0 %v78
    %564 = vmatprep.subr.mxu0 %v83
    %565 = vmatpush1.msra.mxu0 %v82
    %566 = vmatprep.subr.mxu0 %v87
    %567 = vmatpush1.msra.mxu0 %v86
    %568 = vmatprep.subr.mxu0 %v91
    %569 = vmatpush1.msra.mxu0 %v90
    %570 = vmatprep.subr.mxu0 %v95
    %571 = vmatpush1.msra.mxu0 %v94
    %572 = vmatprep.subr.mxu0 %v99
    %573 = vmatpush1.msra.mxu0 %v98
    %574 = vmatprep.subr.mxu0 %v103
    %575 = vmatpush1.msra.mxu0 %v102
    %576 = vmatprep.subr.mxu0 %v107
    %577 = vmatpush1.msra.mxu0 %v106
    %578 = vmatprep.subr.mxu0 %v111
    %579 = vmatpush1.msra.mxu0 %v110
    %580 = vmatprep.subr.mxu0 %v115
    %581 = vmatpush1.msra.mxu0 %v114
    %582 = vmatprep.subr.mxu0 0.0
    %583 = vmatpush1.msra.mxu0 0.0
    %584 = vmatprep.subr.mxu0 0.0
    %585 = vmatpush1.msra.mxu0 0.0
    %586 = vmatprep.subr.mxu0 0.0
    %587 = vmatpush1.msra.mxu0 0.0
    %588 = vmatprep.subr.mxu0 0.0
    %589 = vmatpush1.msra.mxu0 0.0
    %590 = vmatprep.subr.mxu0 0.0
    %591 = vmatpush1.msra.mxu0 0.0
    %592 = vmatprep.subr.mxu0 0.0
    %593 = vmatpush1.msra.mxu0 0.0
    %594 = vmatprep.subr.mxu0 0.0
    %595 = vmatpush1.msra.mxu0 0.0
    %596 = vmatprep.subr.mxu0 0.0
    %597 = vmatpush1.msra.mxu0 0.0
    %598 = vmatprep.subr.mxu0 0.0
    %599 = vmatpush1.msra.mxu0 0.0
    %600 = vmatprep.subr.mxu0 0.0
    %601 = vmatpush1.msra.mxu0 0.0
    %602 = vmatprep.subr.mxu0 0.0
    %603 = vmatpush1.msra.mxu0 0.0
    %604 = vmatprep.subr.mxu0 0.0
    %605 = vmatpush1.msra.mxu0 0.0
    %606 = vmatprep.subr.mxu0 0.0
    %607 = vmatpush1.msra.mxu0 0.0
    %608 = vmatprep.subr.mxu0 0.0
    %609 = vmatpush1.msra.mxu0 0.0
    %610 = vmatprep.subr.mxu0 0.0
    %611 = vmatpush1.msra.mxu0 0.0
    %612 = vmatprep.subr.mxu0 0.0
    %613 = vmatpush1.msra.mxu0 0.0
    %614 = vmatprep.mubr.f32.mxu0 0.0
    %615 = vmatmul.mubr.f32.gmra.mrb[0].mxu0 %v467
    %v616 = vpop.f32.mrb[0].mxu0
    %v617 = vadd.f32 0.0, %v616
    %v618 = vpop.f32.mrb[0].mxu0
    %v619 = vadd.f32 0.0, %v618
    %620 = vdwg.mxu0
    %v621 = vadd.f32 %v475, %v546
    %v622 = vadd.f32 %v476, %v548
    %v623 = vadd.f32 %v477, %v617
    %v624 = vadd.f32 %v478, %v619
    %v625 = vmul.f32 %v621, 0.5
    %v626 = vmul.f32 %v622, 0.5
    %v627 = vmul.f32 %v623, 0.5
    %v628 = vtanh.pop %v625
    %v629 = vtanh.pop %v626
    %v630 = vtanh.pop %v627
    %v631 = vmul.f32 %v628, 0.5
    %v632 = vmul.f32 %v629, 0.5
    %v633 = vmul.f32 %v630, 0.5
    %v634 = vadd.f32 %v631, 0.5
    %v635 = vadd.f32 %v632, 0.5
    %v636 = vadd.f32 %v633, 0.5
    %v637 = vtanh.pop %v624
    %v638 = vmul.f32 %v635, %v465
    %v639 = vmul.f32 %v634, %v637
    %v640 = vadd.f32 %v638, %v639
    %v641 = vtanh.pop %v640
    %v642 = vmul.f32 %v636, %v641
    %s643 = scalar_lea.vmem [#allocation4], 16
    %644 = vst [vmem:[%s643] sm:$0xff] %v642
    %s645 = scalar_lea.vmem %s0, 96
    %v646 = vld [vmem:[%s645] sm:$0xff]
    %v647 = vld [vmem:[%s645 + $0x8] sm:$0xff]
    %v648 = vld [vmem:[%s645 + $0x10] sm:$0xff]
    %v649 = vld [vmem:[%s645 + $0x18] sm:$0xff]
    %v650 = vadd.f32 %v646, %v116
    %v651 = vadd.f32 %v647, %v117
    %v652 = vadd.f32 %v648, %v118
    %v653 = vadd.f32 %v649, %v119
    %654 = vmatprep.subr.mxu0 %v53
    %655 = vmatpush1.msra.mxu0 %v52
    %656 = vmatprep.subr.mxu0 %v57
    %657 = vmatpush1.msra.mxu0 %v56
    %658 = vmatprep.subr.mxu0 %v61
    %659 = vmatpush1.msra.mxu0 %v60
    %660 = vmatprep.subr.mxu0 %v65
    %661 = vmatpush1.msra.mxu0 %v64
    %662 = vmatprep.subr.mxu0 %v69
    %663 = vmatpush1.msra.mxu0 %v68
    %664 = vmatprep.subr.mxu0 %v73
    %665 = vmatpush1.msra.mxu0 %v72
    %666 = vmatprep.subr.mxu0 %v77
    %667 = vmatpush1.msra.mxu0 %v76
    %668 = vmatprep.subr.mxu0 %v81
    %669 = vmatpush1.msra.mxu0 %v80
    %670 = vmatprep.subr.mxu0 %v85
    %671 = vmatpush1.msra.mxu0 %v84
    %672 = vmatprep.subr.mxu0 %v89
    %673 = vmatpush1.msra.mxu0 %v88
    %674 = vmatprep.subr.mxu0 %v93
    %675 = vmatpush1.msra.mxu0 %v92
    %676 = vmatprep.subr.mxu0 %v97
    %677 = vmatpush1.msra.mxu0 %v96
    %678 = vmatprep.subr.mxu0 %v101
    %679 = vmatpush1.msra.mxu0 %v100
    %680 = vmatprep.subr.mxu0 %v105
    %681 = vmatpush1.msra.mxu0 %v104
    %682 = vmatprep.subr.mxu0 %v109
    %683 = vmatpush1.msra.mxu0 %v108
    %684 = vmatprep.subr.mxu0 %v113
    %685 = vmatpush1.msra.mxu0 %v112
    %686 = vmatprep.subr.mxu0 0.0
    %687 = vmatpush1.msra.mxu0 0.0
    %688 = vmatprep.subr.mxu0 0.0
    %689 = vmatpush1.msra.mxu0 0.0
    %690 = vmatprep.subr.mxu0 0.0
    %691 = vmatpush1.msra.mxu0 0.0
    %692 = vmatprep.subr.mxu0 0.0
    %693 = vmatpush1.msra.mxu0 0.0
    %694 = vmatprep.subr.mxu0 0.0
    %695 = vmatpush1.msra.mxu0 0.0
    %696 = vmatprep.subr.mxu0 0.0
    %697 = vmatpush1.msra.mxu0 0.0
    %698 = vmatprep.subr.mxu0 0.0
    %699 = vmatpush1.msra.mxu0 0.0
    %700 = vmatprep.subr.mxu0 0.0
    %701 = vmatpush1.msra.mxu0 0.0
    %702 = vmatprep.subr.mxu0 0.0
    %703 = vmatpush1.msra.mxu0 0.0
    %704 = vmatprep.subr.mxu0 0.0
    %705 = vmatpush1.msra.mxu0 0.0
    %706 = vmatprep.subr.mxu0 0.0
    %707 = vmatpush1.msra.mxu0 0.0
    %708 = vmatprep.subr.mxu0 0.0
    %709 = vmatpush1.msra.mxu0 0.0
    %710 = vmatprep.subr.mxu0 0.0
    %711 = vmatpush1.msra.mxu0 0.0
    %712 = vmatprep.subr.mxu0 0.0
    %713 = vmatpush1.msra.mxu0 0.0
    %714 = vmatprep.subr.mxu0 0.0
    %715 = vmatpush1.msra.mxu0 0.0
    %716 = vmatprep.subr.mxu0 0.0
    %717 = vmatpush1.msra.mxu0 0.0
    %718 = vmatprep.mubr.f32.mxu0 0.0
    %719 = vmatmul.mubr.f32.gmra.mrb[0].mxu0 %v642
    %v720 = vpop.f32.mrb[0].mxu0
    %v721 = vadd.f32 0.0, %v720
    %v722 = vpop.f32.mrb[0].mxu0
    %v723 = vadd.f32 0.0, %v722
    %724 = vdwg.mxu0
    %725 = vmatprep.subr.mxu0 %v55
    %726 = vmatpush1.msra.mxu0 %v54
    %727 = vmatprep.subr.mxu0 %v59
    %728 = vmatpush1.msra.mxu0 %v58
    %729 = vmatprep.subr.mxu0 %v63
    %730 = vmatpush1.msra.mxu0 %v62
    %731 = vmatprep.subr.mxu0 %v67
    %732 = vmatpush1.msra.mxu0 %v66
    %733 = vmatprep.subr.mxu0 %v71
    %734 = vmatpush1.msra.mxu0 %v70
    %735 = vmatprep.subr.mxu0 %v75
    %736 = vmatpush1.msra.mxu0 %v74
    %737 = vmatprep.subr.mxu0 %v79
    %738 = vmatpush1.msra.mxu0 %v78
    %739 = vmatprep.subr.mxu0 %v83
    %740 = vmatpush1.msra.mxu0 %v82
    %741 = vmatprep.subr.mxu0 %v87
    %742 = vmatpush1.msra.mxu0 %v86
    %743 = vmatprep.subr.mxu0 %v91
    %744 = vmatpush1.msra.mxu0 %v90
    %745 = vmatprep.subr.mxu0 %v95
    %746 = vmatpush1.msra.mxu0 %v94
    %747 = vmatprep.subr.mxu0 %v99
    %748 = vmatpush1.msra.mxu0 %v98
    %749 = vmatprep.subr.mxu0 %v103
    %750 = vmatpush1.msra.mxu0 %v102
    %751 = vmatprep.subr.mxu0 %v107
    %752 = vmatpush1.msra.mxu0 %v106
    %753 = vmatprep.subr.mxu0 %v111
    %754 = vmatpush1.msra.mxu0 %v110
    %755 = vmatprep.subr.mxu0 %v115
    %756 = vmatpush1.msra.mxu0 %v114
    %757 = vmatprep.subr.mxu0 0.0
    %758 = vmatpush1.msra.mxu0 0.0
    %759 = vmatprep.subr.mxu0 0.0
    %760 = vmatpush1.msra.mxu0 0.0
    %761 = vmatprep.subr.mxu0 0.0
    %762 = vmatpush1.msra.mxu0 0.0
    %763 = vmatprep.subr.mxu0 0.0
    %764 = vmatpush1.msra.mxu0 0.0
    %765 = vmatprep.subr.mxu0 0.0
    %766 = vmatpush1.msra.mxu0 0.0
    %767 = vmatprep.subr.mxu0 0.0
    %768 = vmatpush1.msra.mxu0 0.0
    %769 = vmatprep.subr.mxu0 0.0
    %770 = vmatpush1.msra.mxu0 0.0
    %771 = vmatprep.subr.mxu0 0.0
    %772 = vmatpush1.msra.mxu0 0.0
    %773 = vmatprep.subr.mxu0 0.0
    %774 = vmatpush1.msra.mxu0 0.0
    %775 = vmatprep.subr.mxu0 0.0
    %776 = vmatpush1.msra.mxu0 0.0
    %777 = vmatprep.subr.mxu0 0.0
    %778 = vmatpush1.msra.mxu0 0.0
    %779 = vmatprep.subr.mxu0 0.0
    %780 = vmatpush1.msra.mxu0 0.0
    %781 = vmatprep.subr.mxu0 0.0
    %782 = vmatpush1.msra.mxu0 0.0
    %783 = vmatprep.subr.mxu0 0.0
    %784 = vmatpush1.msra.mxu0 0.0
    %785 = vmatprep.subr.mxu0 0.0
    %786 = vmatpush1.msra.mxu0 0.0
    %787 = vmatprep.subr.mxu0 0.0
    %788 = vmatpush1.msra.mxu0 0.0
    %789 = vmatprep.mubr.f32.mxu0 0.0
    %790 = vmatmul.mubr.f32.gmra.mrb[0].mxu0 %v642
    %v791 = vpop.f32.mrb[0].mxu0
    %v792 = vadd.f32 0.0, %v791
    %v793 = vpop.f32.mrb[0].mxu0
    %v794 = vadd.f32 0.0, %v793
    %795 = vdwg.mxu0
    %v796 = vadd.f32 %v650, %v721
    %v797 = vadd.f32 %v651, %v723
    %v798 = vadd.f32 %v652, %v792
    %v799 = vadd.f32 %v653, %v794
    %v800 = vmul.f32 %v796, 0.5
    %v801 = vmul.f32 %v797, 0.5
    %v802 = vmul.f32 %v798, 0.5
    %v803 = vtanh.pop %v800
    %v804 = vtanh.pop %v801
    %v805 = vtanh.pop %v802
    %v806 = vmul.f32 %v803, 0.5
    %v807 = vmul.f32 %v804, 0.5
    %v808 = vmul.f32 %v805, 0.5
    %v809 = vadd.f32 %v806, 0.5
    %v810 = vadd.f32 %v807, 0.5
    %v811 = vadd.f32 %v808, 0.5
    %v812 = vtanh.pop %v799
    %v813 = vmul.f32 %v810, %v640
    %v814 = vmul.f32 %v809, %v812
    %v815 = vadd.f32 %v813, %v814
    %v816 = vtanh.pop %v815
    %v817 = vmul.f32 %v811, %v816
    %s818 = scalar_lea.vmem [#allocation4], 24
    %819 = vst [vmem:[%s818] sm:$0xff] %v817
    %s820 = scalar_lea.vmem %s0, 128
    %v821 = vld [vmem:[%s820] sm:$0xff]
    %v822 = vld [vmem:[%s820 + $0x8] sm:$0xff]
    %v823 = vld [vmem:[%s820 + $0x10] sm:$0xff]
    %v824 = vld [vmem:[%s820 + $0x18] sm:$0xff]
    %v825 = vadd.f32 %v821, %v116
    %v826 = vadd.f32 %v822, %v117
    %v827 = vadd.f32 %v823, %v118
    %v828 = vadd.f32 %v824, %v119
    %829 = vmatprep.subr.mxu0 %v53
    %830 = vmatpush1.msra.mxu0 %v52
    %831 = vmatprep.subr.mxu0 %v57
    %832 = vmatpush1.msra.mxu0 %v56
    %833 = vmatprep.subr.mxu0 %v61
    %834 = vmatpush1.msra.mxu0 %v60
    %835 = vmatprep.subr.mxu0 %v65
    %836 = vmatpush1.msra.mxu0 %v64
    %837 = vmatprep.subr.mxu0 %v69
    %838 = vmatpush1.msra.mxu0 %v68
    %839 = vmatprep.subr.mxu0 %v73
    %840 = vmatpush1.msra.mxu0 %v72
    %841 = vmatprep.subr.mxu0 %v77
    %842 = vmatpush1.msra.mxu0 %v76
    %843 = vmatprep.subr.mxu0 %v81
    %844 = vmatpush1.msra.mxu0 %v80
    %845 = vmatprep.subr.mxu0 %v85
    %846 = vmatpush1.msra.mxu0 %v84
    %847 = vmatprep.subr.mxu0 %v89
    %848 = vmatpush1.msra.mxu0 %v88
    %849 = vmatprep.subr.mxu0 %v93
    %850 = vmatpush1.msra.mxu0 %v92
    %851 = vmatprep.subr.mxu0 %v97
    %852 = vmatpush1.msra.mxu0 %v96
    %853 = vmatprep.subr.mxu0 %v101
    %854 = vmatpush1.msra.mxu0 %v100
    %855 = vmatprep.subr.mxu0 %v105
    %856 = vmatpush1.msra.mxu0 %v104
    %857 = vmatprep.subr.mxu0 %v109
    %858 = vmatpush1.msra.mxu0 %v108
    %859 = vmatprep.subr.mxu0 %v113
    %860 = vmatpush1.msra.mxu0 %v112
    %861 = vmatprep.subr.mxu0 0.0
    %862 = vmatpush1.msra.mxu0 0.0
    %863 = vmatprep.subr.mxu0 0.0
    %864 = vmatpush1.msra.mxu0 0.0
    %865 = vmatprep.subr.mxu0 0.0
    %866 = vmatpush1.msra.mxu0 0.0
    %867 = vmatprep.subr.mxu0 0.0
    %868 = vmatpush1.msra.mxu0 0.0
    %869 = vmatprep.subr.mxu0 0.0
    %870 = vmatpush1.msra.mxu0 0.0
    %871 = vmatprep.subr.mxu0 0.0
    %872 = vmatpush1.msra.mxu0 0.0
    %873 = vmatprep.subr.mxu0 0.0
    %874 = vmatpush1.msra.mxu0 0.0
    %875 = vmatprep.subr.mxu0 0.0
    %876 = vmatpush1.msra.mxu0 0.0
    %877 = vmatprep.subr.mxu0 0.0
    %878 = vmatpush1.msra.mxu0 0.0
    %879 = vmatprep.subr.mxu0 0.0
    %880 = vmatpush1.msra.mxu0 0.0
    %881 = vmatprep.subr.mxu0 0.0
    %882 = vmatpush1.msra.mxu0 0.0
    %883 = vmatprep.subr.mxu0 0.0
    %884 = vmatpush1.msra.mxu0 0.0
    %885 = vmatprep.subr.mxu0 0.0
    %886 = vmatpush1.msra.mxu0 0.0
    %887 = vmatprep.subr.mxu0 0.0
    %888 = vmatpush1.msra.mxu0 0.0
    %889 = vmatprep.subr.mxu0 0.0
    %890 = vmatpush1.msra.mxu0 0.0
    %891 = vmatprep.subr.mxu0 0.0
    %892 = vmatpush1.msra.mxu0 0.0
    %893 = vmatprep.mubr.f32.mxu0 0.0
    %894 = vmatmul.mubr.f32.gmra.mrb[0].mxu0 %v817
    %v895 = vpop.f32.mrb[0].mxu0
    %v896 = vadd.f32 0.0, %v895
    %v897 = vpop.f32.mrb[0].mxu0
    %v898 = vadd.f32 0.0, %v897
    %899 = vdwg.mxu0
    %900 = vmatprep.subr.mxu0 %v55
    %901 = vmatpush1.msra.mxu0 %v54
    %902 = vmatprep.subr.mxu0 %v59
    %903 = vmatpush1.msra.mxu0 %v58
    %904 = vmatprep.subr.mxu0 %v63
    %905 = vmatpush1.msra.mxu0 %v62
    %906 = vmatprep.subr.mxu0 %v67
    %907 = vmatpush1.msra.mxu0 %v66
    %908 = vmatprep.subr.mxu0 %v71
    %909 = vmatpush1.msra.mxu0 %v70
    %910 = vmatprep.subr.mxu0 %v75
    %911 = vmatpush1.msra.mxu0 %v74
    %912 = vmatprep.subr.mxu0 %v79
    %913 = vmatpush1.msra.mxu0 %v78
    %914 = vmatprep.subr.mxu0 %v83
    %915 = vmatpush1.msra.mxu0 %v82
    %916 = vmatprep.subr.mxu0 %v87
    %917 = vmatpush1.msra.mxu0 %v86
    %918 = vmatprep.subr.mxu0 %v91
    %919 = vmatpush1.msra.mxu0 %v90
    %920 = vmatprep.subr.mxu0 %v95
    %921 = vmatpush1.msra.mxu0 %v94
    %922 = vmatprep.subr.mxu0 %v99
    %923 = vmatpush1.msra.mxu0 %v98
    %924 = vmatprep.subr.mxu0 %v103
    %925 = vmatpush1.msra.mxu0 %v102
    %926 = vmatprep.subr.mxu0 %v107
    %927 = vmatpush1.msra.mxu0 %v106
    %928 = vmatprep.subr.mxu0 %v111
    %929 = vmatpush1.msra.mxu0 %v110
    %930 = vmatprep.subr.mxu0 %v115
    %931 = vmatpush1.msra.mxu0 %v114
    %932 = vmatprep.subr.mxu0 0.0
    %933 = vmatpush1.msra.mxu0 0.0
    %934 = vmatprep.subr.mxu0 0.0
    %935 = vmatpush1.msra.mxu0 0.0
    %936 = vmatprep.subr.mxu0 0.0
    %937 = vmatpush1.msra.mxu0 0.0
    %938 = vmatprep.subr.mxu0 0.0
    %939 = vmatpush1.msra.mxu0 0.0
    %940 = vmatprep.subr.mxu0 0.0
    %941 = vmatpush1.msra.mxu0 0.0
    %942 = vmatprep.subr.mxu0 0.0
    %943 = vmatpush1.msra.mxu0 0.0
    %944 = vmatprep.subr.mxu0 0.0
    %945 = vmatpush1.msra.mxu0 0.0
    %946 = vmatprep.subr.mxu0 0.0
    %947 = vmatpush1.msra.mxu0 0.0
    %948 = vmatprep.subr.mxu0 0.0
    %949 = vmatpush1.msra.mxu0 0.0
    %950 = vmatprep.subr.mxu0 0.0
    %951 = vmatpush1.msra.mxu0 0.0
    %952 = vmatprep.subr.mxu0 0.0
    %953 = vmatpush1.msra.mxu0 0.0
    %954 = vmatprep.subr.mxu0 0.0
    %955 = vmatpush1.msra.mxu0 0.0
    %956 = vmatprep.subr.mxu0 0.0
    %957 = vmatpush1.msra.mxu0 0.0
    %958 = vmatprep.subr.mxu0 0.0
    %959 = vmatpush1.msra.mxu0 0.0
    %960 = vmatprep.subr.mxu0 0.0
    %961 = vmatpush1.msra.mxu0 0.0
    %962 = vmatprep.subr.mxu0 0.0
    %963 = vmatpush1.msra.mxu0 0.0
    %964 = vmatprep.mubr.f32.mxu0 0.0
    %965 = vmatmul.mubr.f32.gmra.mrb[0].mxu0 %v817
    %v966 = vpop.f32.mrb[0].mxu0
    %v967 = vadd.f32 0.0, %v966
    %v968 = vpop.f32.mrb[0].mxu0
    %v969 = vadd.f32 0.0, %v968
    %970 = vdwg.mxu0
    %v971 = vadd.f32 %v825, %v896
    %v972 = vadd.f32 %v826, %v898
    %v973 = vadd.f32 %v827, %v967
    %v974 = vadd.f32 %v828, %v969
    %v975 = vmul.f32 %v971, 0.5
    %v976 = vmul.f32 %v972, 0.5
    %v977 = vmul.f32 %v973, 0.5
    %v978 = vtanh.pop %v975
    %v979 = vtanh.pop %v976
    %v980 = vtanh.pop %v977
    %v981 = vmul.f32 %v978, 0.5
    %v982 = vmul.f32 %v979, 0.5
    %v983 = vmul.f32 %v980, 0.5
    %v984 = vadd.f32 %v981, 0.5
    %v985 = vadd.f32 %v982, 0.5
    %v986 = vadd.f32 %v983, 0.5
    %v987 = vtanh.pop %v974
    %v988 = vmul.f32 %v985, %v815
    %v989 = vmul.f32 %v984, %v987
    %v990 = vadd.f32 %v988, %v989
    %v991 = vtanh.pop %v990
    %v992 = vmul.f32 %v986, %v991
    %s993 = scalar_lea.vmem [#allocation4], 32
    %994 = vst [vmem:[%s993] sm:$0xff] %v992
    %s995 = scalar_lea.vmem %s0, 160
    %v996 = vld [vmem:[%s995] sm:$0xff]
    %v997 = vld [vmem:[%s995 + $0x8] sm:$0xff]
    %v998 = vld [vmem:[%s995 + $0x10] sm:$0xff]
    %v999 = vld [vmem:[%s995 + $0x18] sm:$0xff]
    %v1000 = vadd.f32 %v996, %v116
    %v1001 = vadd.f32 %v997, %v117
    %v1002 = vadd.f32 %v998, %v118
    %v1003 = vadd.f32 %v999, %v119
    %1004 = vmatprep.subr.mxu0 %v53
    %1005 = vmatpush1.msra.mxu0 %v52
    %1006 = vmatprep.subr.mxu0 %v57
    %1007 = vmatpush1.msra.mxu0 %v56
    %1008 = vmatprep.subr.mxu0 %v61
    %1009 = vmatpush1.msra.mxu0 %v60
    %1010 = vmatprep.subr.mxu0 %v65
    %1011 = vmatpush1.msra.mxu0 %v64
    %1012 = vmatprep.subr.mxu0 %v69
    %1013 = vmatpush1.msra.mxu0 %v68
    %1014 = vmatprep.subr.mxu0 %v73
    %1015 = vmatpush1.msra.mxu0 %v72
    %1016 = vmatprep.subr.mxu0 %v77
    %1017 = vmatpush1.msra.mxu0 %v76
    %1018 = vmatprep.subr.mxu0 %v81
    %1019 = vmatpush1.msra.mxu0 %v80
    %1020 = vmatprep.subr.mxu0 %v85
    %1021 = vmatpush1.msra.mxu0 %v84
    %1022 = vmatprep.subr.mxu0 %v89
    %1023 = vmatpush1.msra.mxu0 %v88
    %1024 = vmatprep.subr.mxu0 %v93
    %1025 = vmatpush1.msra.mxu0 %v92
    %1026 = vmatprep.subr.mxu0 %v97
    %1027 = vmatpush1.msra.mxu0 %v96
    %1028 = vmatprep.subr.mxu0 %v101
    %1029 = vmatpush1.msra.mxu0 %v100
    %1030 = vmatprep.subr.mxu0 %v105
    %1031 = vmatpush1.msra.mxu0 %v104
    %1032 = vmatprep.subr.mxu0 %v109
    %1033 = vmatpush1.msra.mxu0 %v108
    %1034 = vmatprep.subr.mxu0 %v113
    %1035 = vmatpush1.msra.mxu0 %v112
    %1036 = vmatprep.subr.mxu0 0.0
    %1037 = vmatpush1.msra.mxu0 0.0
    %1038 = vmatprep.subr.mxu0 0.0
    %1039 = vmatpush1.msra.mxu0 0.0
    %1040 = vmatprep.subr.mxu0 0.0
    %1041 = vmatpush1.msra.mxu0 0.0
    %1042 = vmatprep.subr.mxu0 0.0
    %1043 = vmatpush1.msra.mxu0 0.0
    %1044 = vmatprep.subr.mxu0 0.0
    %1045 = vmatpush1.msra.mxu0 0.0
    %1046 = vmatprep.subr.mxu0 0.0
    %1047 = vmatpush1.msra.mxu0 0.0
    %1048 = vmatprep.subr.mxu0 0.0
    %1049 = vmatpush1.msra.mxu0 0.0
    %1050 = vmatprep.subr.mxu0 0.0
    %1051 = vmatpush1.msra.mxu0 0.0
    %1052 = vmatprep.subr.mxu0 0.0
    %1053 = vmatpush1.msra.mxu0 0.0
    %1054 = vmatprep.subr.mxu0 0.0
    %1055 = vmatpush1.msra.mxu0 0.0
    %1056 = vmatprep.subr.mxu0 0.0
    %1057 = vmatpush1.msra.mxu0 0.0
    %1058 = vmatprep.subr.mxu0 0.0
    %1059 = vmatpush1.msra.mxu0 0.0
    %1060 = vmatprep.subr.mxu0 0.0
    %1061 = vmatpush1.msra.mxu0 0.0
    %1062 = vmatprep.subr.mxu0 0.0
    %1063 = vmatpush1.msra.mxu0 0.0
    %1064 = vmatprep.subr.mxu0 0.0
    %1065 = vmatpush1.msra.mxu0 0.0
    %1066 = vmatprep.subr.mxu0 0.0
    %1067 = vmatpush1.msra.mxu0 0.0
    %1068 = vmatprep.mubr.f32.mxu0 0.0
    %1069 = vmatmul.mubr.f32.gmra.mrb[0].mxu0 %v992
    %v1070 = vpop.f32.mrb[0].mxu0
    %v1071 = vadd.f32 0.0, %v1070
    %v1072 = vpop.f32.mrb[0].mxu0
    %v1073 = vadd.f32 0.0, %v1072
    %1074 = vdwg.mxu0
    %1075 = vmatprep.subr.mxu0 %v55
    %1076 = vmatpush1.msra.mxu0 %v54
    %1077 = vmatprep.subr.mxu0 %v59
    %1078 = vmatpush1.msra.mxu0 %v58
    %1079 = vmatprep.subr.mxu0 %v63
    %1080 = vmatpush1.msra.mxu0 %v62
    %1081 = vmatprep.subr.mxu0 %v67
    %1082 = vmatpush1.msra.mxu0 %v66
    %1083 = vmatprep.subr.mxu0 %v71
    %1084 = vmatpush1.msra.mxu0 %v70
    %1085 = vmatprep.subr.mxu0 %v75
    %1086 = vmatpush1.msra.mxu0 %v74
    %1087 = vmatprep.subr.mxu0 %v79
    %1088 = vmatpush1.msra.mxu0 %v78
    %1089 = vmatprep.subr.mxu0 %v83
    %1090 = vmatpush1.msra.mxu0 %v82
    %1091 = vmatprep.subr.mxu0 %v87
    %1092 = vmatpush1.msra.mxu0 %v86
    %1093 = vmatprep.subr.mxu0 %v91
    %1094 = vmatpush1.msra.mxu0 %v90
    %1095 = vmatprep.subr.mxu0 %v95
    %1096 = vmatpush1.msra.mxu0 %v94
    %1097 = vmatprep.subr.mxu0 %v99
    %1098 = vmatpush1.msra.mxu0 %v98
    %1099 = vmatprep.subr.mxu0 %v103
    %1100 = vmatpush1.msra.mxu0 %v102
    %1101 = vmatprep.subr.mxu0 %v107
    %1102 = vmatpush1.msra.mxu0 %v106
    %1103 = vmatprep.subr.mxu0 %v111
    %1104 = vmatpush1.msra.mxu0 %v110
    %1105 = vmatprep.subr.mxu0 %v115
    %1106 = vmatpush1.msra.mxu0 %v114
    %1107 = vmatprep.subr.mxu0 0.0
    %1108 = vmatpush1.msra.mxu0 0.0
    %1109 = vmatprep.subr.mxu0 0.0
    %1110 = vmatpush1.msra.mxu0 0.0
    %1111 = vmatprep.subr.mxu0 0.0
    %1112 = vmatpush1.msra.mxu0 0.0
    %1113 = vmatprep.subr.mxu0 0.0
    %1114 = vmatpush1.msra.mxu0 0.0
    %1115 = vmatprep.subr.mxu0 0.0
    %1116 = vmatpush1.msra.mxu0 0.0
    %1117 = vmatprep.subr.mxu0 0.0
    %1118 = vmatpush1.msra.mxu0 0.0
    %1119 = vmatprep.subr.mxu0 0.0
    %1120 = vmatpush1.msra.mxu0 0.0
    %1121 = vmatprep.subr.mxu0 0.0
    %1122 = vmatpush1.msra.mxu0 0.0
    %1123 = vmatprep.subr.mxu0 0.0
    %1124 = vmatpush1.msra.mxu0 0.0
    %1125 = vmatprep.subr.mxu0 0.0
    %1126 = vmatpush1.msra.mxu0 0.0
    %1127 = vmatprep.subr.mxu0 0.0
    %1128 = vmatpush1.msra.mxu0 0.0
    %1129 = vmatprep.subr.mxu0 0.0
    %1130 = vmatpush1.msra.mxu0 0.0
    %1131 = vmatprep.subr.mxu0 0.0
    %1132 = vmatpush1.msra.mxu0 0.0
    %1133 = vmatprep.subr.mxu0 0.0
    %1134 = vmatpush1.msra.mxu0 0.0
    %1135 = vmatprep.subr.mxu0 0.0
    %1136 = vmatpush1.msra.mxu0 0.0
    %1137 = vmatprep.subr.mxu0 0.0
    %1138 = vmatpush1.msra.mxu0 0.0
    %1139 = vmatprep.mubr.f32.mxu0 0.0
    %1140 = vmatmul.mubr.f32.gmra.mrb[0].mxu0 %v992
    %v1141 = vpop.f32.mrb[0].mxu0
    %v1142 = vadd.f32 0.0, %v1141
    %v1143 = vpop.f32.mrb[0].mxu0
    %v1144 = vadd.f32 0.0, %v1143
    %1145 = vdwg.mxu0
    %v1146 = vadd.f32 %v1000, %v1071
    %v1147 = vadd.f32 %v1001, %v1073
    %v1148 = vadd.f32 %v1002, %v1142
    %v1149 = vadd.f32 %v1003, %v1144
    %v1150 = vmul.f32 %v1146, 0.5
    %v1151 = vmul.f32 %v1147, 0.5
    %v1152 = vmul.f32 %v1148, 0.5
    %v1153 = vtanh.pop %v1150
    %v1154 = vtanh.pop %v1151
    %v1155 = vtanh.pop %v1152
    %v1156 = vmul.f32 %v1153, 0.5
    %v1157 = vmul.f32 %v1154, 0.5
    %v1158 = vmul.f32 %v1155, 0.5
    %v1159 = vadd.f32 %v1156, 0.5
    %v1160 = vadd.f32 %v1157, 0.5
    %v1161 = vadd.f32 %v1158, 0.5
    %v1162 = vtanh.pop %v1149
    %v1163 = vmul.f32 %v1160, %v990
    %v1164 = vmul.f32 %v1159, %v1162
    %v1165 = vadd.f32 %v1163, %v1164
    %v1166 = vtanh.pop %v1165
    %v1167 = vmul.f32 %v1161, %v1166
    %s1168 = scalar_lea.vmem [#allocation4], 40
    %1169 = vst [vmem:[%s1168] sm:$0xff] %v1167
    %s1170 = scalar_lea.vmem %s0, 192
    %v1171 = vld [vmem:[%s1170] sm:$0xff]
    %v1172 = vld [vmem:[%s1170 + $0x8] sm:$0xff]
    %v1173 = vld [vmem:[%s1170 + $0x10] sm:$0xff]
    %v1174 = vld [vmem:[%s1170 + $0x18] sm:$0xff]
    %v1175 = vadd.f32 %v1171, %v116
    %v1176 = vadd.f32 %v1172, %v117
    %v1177 = vadd.f32 %v1173, %v118
    %v1178 = vadd.f32 %v1174, %v119
    %1179 = vmatprep.subr.mxu0 %v53
    %1180 = vmatpush1.msra.mxu0 %v52
    %1181 = vmatprep.subr.mxu0 %v57
    %1182 = vmatpush1.msra.mxu0 %v56
    %1183 = vmatprep.subr.mxu0 %v61
    %1184 = vmatpush1.msra.mxu0 %v60
    %1185 = vmatprep.subr.mxu0 %v65
    %1186 = vmatpush1.msra.mxu0 %v64
    %1187 = vmatprep.subr.mxu0 %v69
    %1188 = vmatpush1.msra.mxu0 %v68
    %1189 = vmatprep.subr.mxu0 %v73
    %1190 = vmatpush1.msra.mxu0 %v72
    %1191 = vmatprep.subr.mxu0 %v77
    %1192 = vmatpush1.msra.mxu0 %v76
    %1193 = vmatprep.subr.mxu0 %v81
    %1194 = vmatpush1.msra.mxu0 %v80
    %1195 = vmatprep.subr.mxu0 %v85
    %1196 = vmatpush1.msra.mxu0 %v84
    %1197 = vmatprep.subr.mxu0 %v89
    %1198 = vmatpush1.msra.mxu0 %v88
    %1199 = vmatprep.subr.mxu0 %v93
    %1200 = vmatpush1.msra.mxu0 %v92
    %1201 = vmatprep.subr.mxu0 %v97
    %1202 = vmatpush1.msra.mxu0 %v96
    %1203 = vmatprep.subr.mxu0 %v101
    %1204 = vmatpush1.msra.mxu0 %v100
    %1205 = vmatprep.subr.mxu0 %v105
    %1206 = vmatpush1.msra.mxu0 %v104
    %1207 = vmatprep.subr.mxu0 %v109
    %1208 = vmatpush1.msra.mxu0 %v108
    %1209 = vmatprep.subr.mxu0 %v113
    %1210 = vmatpush1.msra.mxu0 %v112
    %1211 = vmatprep.subr.mxu0 0.0
    %1212 = vmatpush1.msra.mxu0 0.0
    %1213 = vmatprep.subr.mxu0 0.0
    %1214 = vmatpush1.msra.mxu0 0.0
    %1215 = vmatprep.subr.mxu0 0.0
    %1216 = vmatpush1.msra.mxu0 0.0
    %1217 = vmatprep.subr.mxu0 0.0
    %1218 = vmatpush1.msra.mxu0 0.0
    %1219 = vmatprep.subr.mxu0 0.0
    %1220 = vmatpush1.msra.mxu0 0.0
    %1221 = vmatprep.subr.mxu0 0.0
    %1222 = vmatpush1.msra.mxu0 0.0
    %1223 = vmatprep.subr.mxu0 0.0
    %1224 = vmatpush1.msra.mxu0 0.0
    %1225 = vmatprep.subr.mxu0 0.0
    %1226 = vmatpush1.msra.mxu0 0.0
    %1227 = vmatprep.subr.mxu0 0.0
    %1228 = vmatpush1.msra.mxu0 0.0
    %1229 = vmatprep.subr.mxu0 0.0
    %1230 = vmatpush1.msra.mxu0 0.0
    %1231 = vmatprep.subr.mxu0 0.0
    %1232 = vmatpush1.msra.mxu0 0.0
    %1233 = vmatprep.subr.mxu0 0.0
    %1234 = vmatpush1.msra.mxu0 0.0
    %1235 = vmatprep.subr.mxu0 0.0
    %1236 = vmatpush1.msra.mxu0 0.0
    %1237 = vmatprep.subr.mxu0 0.0
    %1238 = vmatpush1.msra.mxu0 0.0
    %1239 = vmatprep.subr.mxu0 0.0
    %1240 = vmatpush1.msra.mxu0 0.0
    %1241 = vmatprep.subr.mxu0 0.0
    %1242 = vmatpush1.msra.mxu0 0.0
    %1243 = vmatprep.mubr.f32.mxu0 0.0
    %1244 = vmatmul.mubr.f32.gmra.mrb[0].mxu0 %v1167
    %v1245 = vpop.f32.mrb[0].mxu0
    %v1246 = vadd.f32 0.0, %v1245
    %v1247 = vpop.f32.mrb[0].mxu0
    %v1248 = vadd.f32 0.0, %v1247
    %1249 = vdwg.mxu0
    %1250 = vmatprep.subr.mxu0 %v55
    %1251 = vmatpush1.msra.mxu0 %v54
    %1252 = vmatprep.subr.mxu0 %v59
    %1253 = vmatpush1.msra.mxu0 %v58
    %1254 = vmatprep.subr.mxu0 %v63
    %1255 = vmatpush1.msra.mxu0 %v62
    %1256 = vmatprep.subr.mxu0 %v67
    %1257 = vmatpush1.msra.mxu0 %v66
    %1258 = vmatprep.subr.mxu0 %v71
    %1259 = vmatpush1.msra.mxu0 %v70
    %1260 = vmatprep.subr.mxu0 %v75
    %1261 = vmatpush1.msra.mxu0 %v74
    %1262 = vmatprep.subr.mxu0 %v79
    %1263 = vmatpush1.msra.mxu0 %v78
    %1264 = vmatprep.subr.mxu0 %v83
    %1265 = vmatpush1.msra.mxu0 %v82
    %1266 = vmatprep.subr.mxu0 %v87
    %1267 = vmatpush1.msra.mxu0 %v86
    %1268 = vmatprep.subr.mxu0 %v91
    %1269 = vmatpush1.msra.mxu0 %v90
    %1270 = vmatprep.subr.mxu0 %v95
    %1271 = vmatpush1.msra.mxu0 %v94
    %1272 = vmatprep.subr.mxu0 %v99
    %1273 = vmatpush1.msra.mxu0 %v98
    %1274 = vmatprep.subr.mxu0 %v103
    %1275 = vmatpush1.msra.mxu0 %v102
    %1276 = vmatprep.subr.mxu0 %v107
    %1277 = vmatpush1.msra.mxu0 %v106
    %1278 = vmatprep.subr.mxu0 %v111
    %1279 = vmatpush1.msra.mxu0 %v110
    %1280 = vmatprep.subr.mxu0 %v115
    %1281 = vmatpush1.msra.mxu0 %v114
    %1282 = vmatprep.subr.mxu0 0.0
    %1283 = vmatpush1.msra.mxu0 0.0
    %1284 = vmatprep.subr.mxu0 0.0
    %1285 = vmatpush1.msra.mxu0 0.0
    %1286 = vmatprep.subr.mxu0 0.0
    %1287 = vmatpush1.msra.mxu0 0.0
    %1288 = vmatprep.subr.mxu0 0.0
    %1289 = vmatpush1.msra.mxu0 0.0
    %1290 = vmatprep.subr.mxu0 0.0
    %1291 = vmatpush1.msra.mxu0 0.0
    %1292 = vmatprep.subr.mxu0 0.0
    %1293 = vmatpush1.msra.mxu0 0.0
    %1294 = vmatprep.subr.mxu0 0.0
    %1295 = vmatpush1.msra.mxu0 0.0
    %1296 = vmatprep.subr.mxu0 0.0
    %1297 = vmatpush1.msra.mxu0 0.0
    %1298 = vmatprep.subr.mxu0 0.0
    %1299 = vmatpush1.msra.mxu0 0.0
    %1300 = vmatprep.subr.mxu0 0.0
    %1301 = vmatpush1.msra.mxu0 0.0
    %1302 = vmatprep.subr.mxu0 0.0
    %1303 = vmatpush1.msra.mxu0 0.0
    %1304 = vmatprep.subr.mxu0 0.0
    %1305 = vmatpush1.msra.mxu0 0.0
    %1306 = vmatprep.subr.mxu0 0.0
    %1307 = vmatpush1.msra.mxu0 0.0
    %1308 = vmatprep.subr.mxu0 0.0
    %1309 = vmatpush1.msra.mxu0 0.0
    %1310 = vmatprep.subr.mxu0 0.0
    %1311 = vmatpush1.msra.mxu0 0.0
    %1312 = vmatprep.subr.mxu0 0.0
    %1313 = vmatpush1.msra.mxu0 0.0
    %1314 = vmatprep.mubr.f32.mxu0 0.0
    %1315 = vmatmul.mubr.f32.gmra.mrb[0].mxu0 %v1167
    %v1316 = vpop.f32.mrb[0].mxu0
    %v1317 = vadd.f32 0.0, %v1316
    %v1318 = vpop.f32.mrb[0].mxu0
    %v1319 = vadd.f32 0.0, %v1318
    %1320 = vdwg.mxu0
    %v1321 = vadd.f32 %v1175, %v1246
    %v1322 = vadd.f32 %v1176, %v1248
    %v1323 = vadd.f32 %v1177, %v1317
    %v1324 = vadd.f32 %v1178, %v1319
    %v1325 = vmul.f32 %v1321, 0.5
    %v1326 = vmul.f32 %v1322, 0.5
    %v1327 = vmul.f32 %v1323, 0.5
    %v1328 = vtanh.pop %v1325
    %v1329 = vtanh.pop %v1326
    %v1330 = vtanh.pop %v1327
    %v1331 = vmul.f32 %v1328, 0.5
    %v1332 = vmul.f32 %v1329, 0.5
    %v1333 = vmul.f32 %v1330, 0.5
    %v1334 = vadd.f32 %v1331, 0.5
    %v1335 = vadd.f32 %v1332, 0.5
    %v1336 = vadd.f32 %v1333, 0.5
    %v1337 = vtanh.pop %v1324
    %v1338 = vmul.f32 %v1335, %v1165
    %v1339 = vmul.f32 %v1334, %v1337
    %v1340 = vadd.f32 %v1338, %v1339
    %v1341 = vtanh.pop %v1340
    %v1342 = vmul.f32 %v1336, %v1341
    %s1343 = scalar_lea.vmem [#allocation4], 48
    %1344 = vst [vmem:[%s1343] sm:$0xff] %v1342
    %s1345 = scalar_lea.vmem %s0, 224
    %v1346 = vld [vmem:[%s1345] sm:$0xff]
    %v1347 = vld [vmem:[%s1345 + $0x8] sm:$0xff]
    %v1348 = vld [vmem:[%s1345 + $0x10] sm:$0xff]
    %v1349 = vld [vmem:[%s1345 + $0x18] sm:$0xff]
    %v1350 = vadd.f32 %v1346, %v116
    %v1351 = vadd.f32 %v1347, %v117
    %v1352 = vadd.f32 %v1348, %v118
    %v1353 = vadd.f32 %v1349, %v119
    %1354 = vmatprep.subr.mxu0 %v53
    %1355 = vmatpush1.msra.mxu0 %v52
    %1356 = vmatprep.subr.mxu0 %v57
    %1357 = vmatpush1.msra.mxu0 %v56
    %1358 = vmatprep.subr.mxu0 %v61
    %1359 = vmatpush1.msra.mxu0 %v60
    %1360 = vmatprep.subr.mxu0 %v65
    %1361 = vmatpush1.msra.mxu0 %v64
    %1362 = vmatprep.subr.mxu0 %v69
    %1363 = vmatpush1.msra.mxu0 %v68
    %1364 = vmatprep.subr.mxu0 %v73
    %1365 = vmatpush1.msra.mxu0 %v72
    %1366 = vmatprep.subr.mxu0 %v77
    %1367 = vmatpush1.msra.mxu0 %v76
    %1368 = vmatprep.subr.mxu0 %v81
    %1369 = vmatpush1.msra.mxu0 %v80
    %1370 = vmatprep.subr.mxu0 %v85
    %1371 = vmatpush1.msra.mxu0 %v84
    %1372 = vmatprep.subr.mxu0 %v89
    %1373 = vmatpush1.msra.mxu0 %v88
    %1374 = vmatprep.subr.mxu0 %v93
    %1375 = vmatpush1.msra.mxu0 %v92
    %1376 = vmatprep.subr.mxu0 %v97
    %1377 = vmatpush1.msra.mxu0 %v96
    %1378 = vmatprep.subr.mxu0 %v101
    %1379 = vmatpush1.msra.mxu0 %v100
    %1380 = vmatprep.subr.mxu0 %v105
    %1381 = vmatpush1.msra.mxu0 %v104
    %1382 = vmatprep.subr.mxu0 %v109
    %1383 = vmatpush1.msra.mxu0 %v108
    %1384 = vmatprep.subr.mxu0 %v113
    %1385 = vmatpush1.msra.mxu0 %v112
    %1386 = vmatprep.subr.mxu0 0.0
    %1387 = vmatpush1.msra.mxu0 0.0
    %1388 = vmatprep.subr.mxu0 0.0
    %1389 = vmatpush1.msra.mxu0 0.0
    %1390 = vmatprep.subr.mxu0 0.0
    %1391 = vmatpush1.msra.mxu0 0.0
    %1392 = vmatprep.subr.mxu0 0.0
    %1393 = vmatpush1.msra.mxu0 0.0
    %1394 = vmatprep.subr.mxu0 0.0
    %1395 = vmatpush1.msra.mxu0 0.0
    %1396 = vmatprep.subr.mxu0 0.0
    %1397 = vmatpush1.msra.mxu0 0.0
    %1398 = vmatprep.subr.mxu0 0.0
    %1399 = vmatpush1.msra.mxu0 0.0
    %1400 = vmatprep.subr.mxu0 0.0
    %1401 = vmatpush1.msra.mxu0 0.0
    %1402 = vmatprep.subr.mxu0 0.0
    %1403 = vmatpush1.msra.mxu0 0.0
    %1404 = vmatprep.subr.mxu0 0.0
    %1405 = vmatpush1.msra.mxu0 0.0
    %1406 = vmatprep.subr.mxu0 0.0
    %1407 = vmatpush1.msra.mxu0 0.0
    %1408 = vmatprep.subr.mxu0 0.0
    %1409 = vmatpush1.msra.mxu0 0.0
    %1410 = vmatprep.subr.mxu0 0.0
    %1411 = vmatpush1.msra.mxu0 0.0
    %1412 = vmatprep.subr.mxu0 0.0
    %1413 = vmatpush1.msra.mxu0 0.0
    %1414 = vmatprep.subr.mxu0 0.0
    %1415 = vmatpush1.msra.mxu0 0.0
    %1416 = vmatprep.subr.mxu0 0.0
    %1417 = vmatpush1.msra.mxu0 0.0
    %1418 = vmatprep.mubr.f32.mxu0 0.0
    %1419 = vmatmul.mubr.f32.gmra.mrb[0].mxu0 %v1342
    %v1420 = vpop.f32.mrb[0].mxu0
    %v1421 = vadd.f32 0.0, %v1420
    %v1422 = vpop.f32.mrb[0].mxu0
    %v1423 = vadd.f32 0.0, %v1422
    %1424 = vdwg.mxu0
    %1425 = vmatprep.subr.mxu0 %v55
    %1426 = vmatpush1.msra.mxu0 %v54
    %1427 = vmatprep.subr.mxu0 %v59
    %1428 = vmatpush1.msra.mxu0 %v58
    %1429 = vmatprep.subr.mxu0 %v63
    %1430 = vmatpush1.msra.mxu0 %v62
    %1431 = vmatprep.subr.mxu0 %v67
    %1432 = vmatpush1.msra.mxu0 %v66
    %1433 = vmatprep.subr.mxu0 %v71
    %1434 = vmatpush1.msra.mxu0 %v70
    %1435 = vmatprep.subr.mxu0 %v75
    %1436 = vmatpush1.msra.mxu0 %v74
    %1437 = vmatprep.subr.mxu0 %v79
    %1438 = vmatpush1.msra.mxu0 %v78
    %1439 = vmatprep.subr.mxu0 %v83
    %1440 = vmatpush1.msra.mxu0 %v82
    %1441 = vmatprep.subr.mxu0 %v87
    %1442 = vmatpush1.msra.mxu0 %v86
    %1443 = vmatprep.subr.mxu0 %v91
    %1444 = vmatpush1.msra.mxu0 %v90
    %1445 = vmatprep.subr.mxu0 %v95
    %1446 = vmatpush1.msra.mxu0 %v94
    %1447 = vmatprep.subr.mxu0 %v99
    %1448 = vmatpush1.msra.mxu0 %v98
    %1449 = vmatprep.subr.mxu0 %v103
    %1450 = vmatpush1.msra.mxu0 %v102
    %1451 = vmatprep.subr.mxu0 %v107
    %1452 = vmatpush1.msra.mxu0 %v106
    %1453 = vmatprep.subr.mxu0 %v111
    %1454 = vmatpush1.msra.mxu0 %v110
    %1455 = vmatprep.subr.mxu0 %v115
    %1456 = vmatpush1.msra.mxu0 %v114
    %1457 = vmatprep.subr.mxu0 0.0
    %1458 = vmatpush1.msra.mxu0 0.0
    %1459 = vmatprep.subr.mxu0 0.0
    %1460 = vmatpush1.msra.mxu0 0.0
    %1461 = vmatprep.subr.mxu0 0.0
    %1462 = vmatpush1.msra.mxu0 0.0
    %1463 = vmatprep.subr.mxu0 0.0
    %1464 = vmatpush1.msra.mxu0 0.0
    %1465 = vmatprep.subr.mxu0 0.0
    %1466 = vmatpush1.msra.mxu0 0.0
    %1467 = vmatprep.subr.mxu0 0.0
    %1468 = vmatpush1.msra.mxu0 0.0
    %1469 = vmatprep.subr.mxu0 0.0
    %1470 = vmatpush1.msra.mxu0 0.0
    %1471 = vmatprep.subr.mxu0 0.0
    %1472 = vmatpush1.msra.mxu0 0.0
    %1473 = vmatprep.subr.mxu0 0.0
    %1474 = vmatpush1.msra.mxu0 0.0
    %1475 = vmatprep.subr.mxu0 0.0
    %1476 = vmatpush1.msra.mxu0 0.0
    %1477 = vmatprep.subr.mxu0 0.0
    %1478 = vmatpush1.msra.mxu0 0.0
    %1479 = vmatprep.subr.mxu0 0.0
    %1480 = vmatpush1.msra.mxu0 0.0
    %1481 = vmatprep.subr.mxu0 0.0
    %1482 = vmatpush1.msra.mxu0 0.0
    %1483 = vmatprep.subr.mxu0 0.0
    %1484 = vmatpush1.msra.mxu0 0.0
    %1485 = vmatprep.subr.mxu0 0.0
    %1486 = vmatpush1.msra.mxu0 0.0
    %1487 = vmatprep.subr.mxu0 0.0
    %1488 = vmatpush1.msra.mxu0 0.0
    %1489 = vmatprep.mubr.f32.mxu0 0.0
    %1490 = vmatmul.mubr.f32.gmra.mrb[0].mxu0 %v1342
    %v1491 = vpop.f32.mrb[0].mxu0
    %v1492 = vadd.f32 0.0, %v1491
    %v1493 = vpop.f32.mrb[0].mxu0
    %v1494 = vadd.f32 0.0, %v1493
    %1495 = vdwg.mxu0
    %v1496 = vadd.f32 %v1350, %v1421
    %v1497 = vadd.f32 %v1351, %v1423
    %v1498 = vadd.f32 %v1352, %v1492
    %v1499 = vadd.f32 %v1353, %v1494
    %v1500 = vmul.f32 %v1496, 0.5
    %v1501 = vmul.f32 %v1497, 0.5
    %v1502 = vmul.f32 %v1498, 0.5
    %v1503 = vtanh.pop %v1500
    %v1504 = vtanh.pop %v1501
    %v1505 = vtanh.pop %v1502
    %v1506 = vmul.f32 %v1503, 0.5
    %v1507 = vmul.f32 %v1504, 0.5
    %v1508 = vmul.f32 %v1505, 0.5
    %v1509 = vadd.f32 %v1506, 0.5
    %v1510 = vadd.f32 %v1507, 0.5
    %v1511 = vadd.f32 %v1508, 0.5
    %v1512 = vtanh.pop %v1499
    %v1513 = vmul.f32 %v1510, %v1340
    %v1514 = vmul.f32 %v1509, %v1512
    %v1515 = vadd.f32 %v1513, %v1514
    %v1516 = vtanh.pop %v1515
    %v1517 = vmul.f32 %v1511, %v1516
    %s1518 = scalar_lea.vmem [#allocation4], 56
    %1519 = vst [vmem:[%s1518] sm:$0xff] %v1517
    %1520 = vst [vmem:[#allocation2] sm:$0xff] %v1517
    %1521 = vst [vmem:[#allocation3] sm:$0xff] %v1515
    %v1522 = vld [vmem:[#allocation4] sm:$0xff]
    %v1523 = vld [vmem:[#allocation4 + $0x8] sm:$0xff]
    %v1524 = vld [vmem:[#allocation4 + $0x10] sm:$0xff]
    %v1525 = vld [vmem:[#allocation4 + $0x18] sm:$0xff]
    %v1526 = vld [vmem:[#allocation4 + $0x20] sm:$0xff]
    %v1527 = vld [vmem:[#allocation4 + $0x28] sm:$0xff]
    %v1528 = vld [vmem:[#allocation4 + $0x30] sm:$0xff]
    %v1529 = vld [vmem:[#allocation4 + $0x38] sm:$0xff]
    %v1530 = vld [vmem:[%s3] sm:$0xff]
    %v1531 = vld [vmem:[%s3 + $0x8] sm:$0xff]
    %v1532 = vld [vmem:[%s3 + $0x10] sm:$0xff]
    %v1533 = vld [vmem:[%s3 + $0x18] sm:$0xff]
    %v1534 = vld [vmem:[%s3 + $0x20] sm:$0xff]
    %v1535 = vld [vmem:[%s3 + $0x28] sm:$0xff]
    %v1536 = vld [vmem:[%s3 + $0x30] sm:$0xff]
    %v1537 = vld [vmem:[%s3 + $0x38] sm:$0xff]
    %v1538 = vld [vmem:[%s3 + $0x40] sm:$0xff]
    %v1539 = vld [vmem:[%s3 + $0x48] sm:$0xff]
    %v1540 = vld [vmem:[%s3 + $0x50] sm:$0xff]
    %v1541 = vld [vmem:[%s3 + $0x58] sm:$0xff]
    %v1542 = vld [vmem:[%s3 + $0x60] sm:$0xff]
    %v1543 = vld [vmem:[%s3 + $0x68] sm:$0xff]
    %v1544 = vld [vmem:[%s3 + $0x70] sm:$0xff]
    %v1545 = vld [vmem:[%s3 + $0x78] sm:$0xff]
    %v1546 = vld [vmem:[%s3 + $0x80] sm:$0xff]
    %v1547 = vld [vmem:[%s3 + $0x88] sm:$0xff]
    %v1548 = vld [vmem:[%s3 + $0x90] sm:$0xff]
    %v1549 = vld [vmem:[%s3 + $0x98] sm:$0xff]
    %v1550 = vld [vmem:[%s3 + $0xa0] sm:$0xff]
    %v1551 = vld [vmem:[%s3 + $0xa8] sm:$0xff]
    %v1552 = vld [vmem:[%s3 + $0xb0] sm:$0xff]
    %v1553 = vld [vmem:[%s3 + $0xb8] sm:$0xff]
    %v1554 = vld [vmem:[%s3 + $0xc0] sm:$0xff]
    %v1555 = vld [vmem:[%s3 + $0xc8] sm:$0xff]
    %v1556 = vld [vmem:[%s3 + $0xd0] sm:$0xff]
    %v1557 = vld [vmem:[%s3 + $0xd8] sm:$0xff]
    %v1558 = vld [vmem:[%s3 + $0xe0] sm:$0xff]
    %v1559 = vld [vmem:[%s3 + $0xe8] sm:$0xff]
    %v1560 = vld [vmem:[%s3 + $0xf0] sm:$0xff]
    %v1561 = vld [vmem:[%s3 + $0xf8] sm:$0xff]
    %v1562 = vld [vmem:[%s3 + $0x100] sm:$0xff]
    %v1563 = vld [vmem:[%s3 + $0x108] sm:$0xff]
    %v1564 = vld [vmem:[%s3 + $0x110] sm:$0xff]
    %v1565 = vld [vmem:[%s3 + $0x118] sm:$0xff]
    %v1566 = vld [vmem:[%s3 + $0x120] sm:$0xff]
    %v1567 = vld [vmem:[%s3 + $0x128] sm:$0xff]
    %v1568 = vld [vmem:[%s3 + $0x130] sm:$0xff]
    %v1569 = vld [vmem:[%s3 + $0x138] sm:$0xff]
    %v1570 = vld [vmem:[%s3 + $0x140] sm:$0xff]
    %v1571 = vld [vmem:[%s3 + $0x148] sm:$0xff]
    %v1572 = vld [vmem:[%s3 + $0x150] sm:$0xff]
    %v1573 = vld [vmem:[%s3 + $0x158] sm:$0xff]
    %v1574 = vld [vmem:[%s3 + $0x160] sm:$0xff]
    %v1575 = vld [vmem:[%s3 + $0x168] sm:$0xff]
    %v1576 = vld [vmem:[%s3 + $0x170] sm:$0xff]
    %v1577 = vld [vmem:[%s3 + $0x178] sm:$0xff]
    %v1578 = vld [vmem:[%s3 + $0x180] sm:$0xff]
    %v1579 = vld [vmem:[%s3 + $0x188] sm:$0xff]
    %v1580 = vld [vmem:[%s3 + $0x190] sm:$0xff]
    %v1581 = vld [vmem:[%s3 + $0x198] sm:$0xff]
    %v1582 = vld [vmem:[%s3 + $0x1a0] sm:$0xff]
    %v1583 = vld [vmem:[%s3 + $0x1a8] sm:$0xff]
    %v1584 = vld [vmem:[%s3 + $0x1b0] sm:$0xff]
    %v1585 = vld [vmem:[%s3 + $0x1b8] sm:$0xff]
    %v1586 = vld [vmem:[%s3 + $0x1c0] sm:$0xff]
    %v1587 = vld [vmem:[%s3 + $0x1c8] sm:$0xff]
    %v1588 = vld [vmem:[%s3 + $0x1d0] sm:$0xff]
    %v1589 = vld [vmem:[%s3 + $0x1d8] sm:$0xff]
    %v1590 = vld [vmem:[%s3 + $0x1e0] sm:$0xff]
    %v1591 = vld [vmem:[%s3 + $0x1e8] sm:$0xff]
    %v1592 = vld [vmem:[%s3 + $0x1f0] sm:$0xff]
    %v1593 = vld [vmem:[%s3 + $0x1f8] sm:$0xff]
    %1594 = vmatprep.subr.mxu0 %v1531
    %1595 = vmatpush1.msra.mxu0 %v1530
    %1596 = vmatprep.subr.mxu0 %v1535
    %1597 = vmatpush1.msra.mxu0 %v1534
    %1598 = vmatprep.subr.mxu0 %v1539
    %1599 = vmatpush1.msra.mxu0 %v1538
    %1600 = vmatprep.subr.mxu0 %v1543
    %1601 = vmatpush1.msra.mxu0 %v1542
    %1602 = vmatprep.subr.mxu0 %v1547
    %1603 = vmatpush1.msra.mxu0 %v1546
    %1604 = vmatprep.subr.mxu0 %v1551
    %1605 = vmatpush1.msra.mxu0 %v1550
    %1606 = vmatprep.subr.mxu0 %v1555
    %1607 = vmatpush1.msra.mxu0 %v1554
    %1608 = vmatprep.subr.mxu0 %v1559
    %1609 = vmatpush1.msra.mxu0 %v1558
    %1610 = vmatprep.subr.mxu0 %v1563
    %1611 = vmatpush1.msra.mxu0 %v1562
    %1612 = vmatprep.subr.mxu0 %v1567
    %1613 = vmatpush1.msra.mxu0 %v1566
    %1614 = vmatprep.subr.mxu0 %v1571
    %1615 = vmatpush1.msra.mxu0 %v1570
    %1616 = vmatprep.subr.mxu0 %v1575
    %1617 = vmatpush1.msra.mxu0 %v1574
    %1618 = vmatprep.subr.mxu0 %v1579
    %1619 = vmatpush1.msra.mxu0 %v1578
    %1620 = vmatprep.subr.mxu0 %v1583
    %1621 = vmatpush1.msra.mxu0 %v1582
    %1622 = vmatprep.subr.mxu0 %v1587
    %1623 = vmatpush1.msra.mxu0 %v1586
    %1624 = vmatprep.subr.mxu0 %v1591
    %1625 = vmatpush1.msra.mxu0 %v1590
    %1626 = vmatprep.subr.mxu0 0.0
    %1627 = vmatpush1.msra.mxu0 0.0
    %1628 = vmatprep.subr.mxu0 0.0
    %1629 = vmatpush1.msra.mxu0 0.0
    %1630 = vmatprep.subr.mxu0 0.0
    %1631 = vmatpush1.msra.mxu0 0.0
    %1632 = vmatprep.subr.mxu0 0.0
    %1633 = vmatpush1.msra.mxu0 0.0
    %1634 = vmatprep.subr.mxu0 0.0
    %1635 = vmatpush1.msra.mxu0 0.0
    %1636 = vmatprep.subr.mxu0 0.0
    %1637 = vmatpush1.msra.mxu0 0.0
    %1638 = vmatprep.subr.mxu0 0.0
    %1639 = vmatpush1.msra.mxu0 0.0
    %1640 = vmatprep.subr.mxu0 0.0
    %1641 = vmatpush1.msra.mxu0 0.0
    %1642 = vmatprep.subr.mxu0 0.0
    %1643 = vmatpush1.msra.mxu0 0.0
    %1644 = vmatprep.subr.mxu0 0.0
    %1645 = vmatpush1.msra.mxu0 0.0
    %1646 = vmatprep.subr.mxu0 0.0
    %1647 = vmatpush1.msra.mxu0 0.0
    %1648 = vmatprep.subr.mxu0 0.0
    %1649 = vmatpush1.msra.mxu0 0.0
    %1650 = vmatprep.subr.mxu0 0.0
    %1651 = vmatpush1.msra.mxu0 0.0
    %1652 = vmatprep.subr.mxu0 0.0
    %1653 = vmatpush1.msra.mxu0 0.0
    %1654 = vmatprep.subr.mxu0 0.0
    %1655 = vmatpush1.msra.mxu0 0.0
    %1656 = vmatprep.subr.mxu0 0.0
    %1657 = vmatpush1.msra.mxu0 0.0
    %1658 = vmatprep.mubr.f32.mxu0 0.0
    %1659 = vmatmul.mubr.f32.gmra.mrb[0].mxu0 %v1522
    %v1660 = vpop.f32.mrb[0].mxu0
    %v1661 = vadd.f32 0.0, %v1660
    %v1662 = vpop.f32.mrb[0].mxu0
    %v1663 = vadd.f32 0.0, %v1662
    %1664 = vmatprep.mubr.f32.mxu0 0.0
    %1665 = vmatmul.mubr.f32.gmra.mrb[0].mxu0 %v1523
    %v1666 = vpop.f32.mrb[0].mxu0
    %v1667 = vadd.f32 0.0, %v1666
    %v1668 = vpop.f32.mrb[0].mxu0
    %v1669 = vadd.f32 0.0, %v1668
    %1670 = vmatprep.mubr.f32.mxu0 0.0
    %1671 = vmatmul.mubr.f32.gmra.mrb[0].mxu0 %v1524
    %v1672 = vpop.f32.mrb[0].mxu0
    %v1673 = vadd.f32 0.0, %v1672
    %v1674 = vpop.f32.mrb[0].mxu0
    %v1675 = vadd.f32 0.0, %v1674
    %1676 = vmatprep.mubr.f32.mxu0 0.0
    %1677 = vmatmul.mubr.f32.gmra.mrb[0].mxu0 %v1525
    %v1678 = vpop.f32.mrb[0].mxu0
    %v1679 = vadd.f32 0.0, %v1678
    %v1680 = vpop.f32.mrb[0].mxu0
    %v1681 = vadd.f32 0.0, %v1680
    %1682 = vmatprep.mubr.f32.mxu0 0.0
    %1683 = vmatmul.mubr.f32.gmra.mrb[0].mxu0 %v1526
    %v1684 = vpop.f32.mrb[0].mxu0
    %v1685 = vadd.f32 0.0, %v1684
    %v1686 = vpop.f32.mrb[0].mxu0
    %v1687 = vadd.f32 0.0, %v1686
    %1688 = vmatprep.mubr.f32.mxu0 0.0
    %1689 = vmatmul.mubr.f32.gmra.mrb[0].mxu0 %v1527
    %v1690 = vpop.f32.mrb[0].mxu0
    %v1691 = vadd.f32 0.0, %v1690
    %v1692 = vpop.f32.mrb[0].mxu0
    %v1693 = vadd.f32 0.0, %v1692
    %1694 = vmatprep.mubr.f32.mxu0 0.0
    %1695 = vmatmul.mubr.f32.gmra.mrb[0].mxu0 %v1528
    %v1696 = vpop.f32.mrb[0].mxu0
    %v1697 = vadd.f32 0.0, %v1696
    %v1698 = vpop.f32.mrb[0].mxu0
    %v1699 = vadd.f32 0.0, %v1698
    %1700 = vmatprep.mubr.f32.mxu0 0.0
    %1701 = vmatmul.mubr.f32.gmra.mrb[0].mxu0 %v1529
    %v1702 = vpop.f32.mrb[0].mxu0
    %v1703 = vadd.f32 0.0, %v1702
    %v1704 = vpop.f32.mrb[0].mxu0
    %v1705 = vadd.f32 0.0, %v1704
    %1706 = vdwg.mxu0
    %1707 = vmatprep.subr.mxu0 %v1533
    %1708 = vmatpush1.msra.mxu0 %v1532
    %1709 = vmatprep.subr.mxu0 %v1537
    %1710 = vmatpush1.msra.mxu0 %v1536
    %1711 = vmatprep.subr.mxu0 %v1541
    %1712 = vmatpush1.msra.mxu0 %v1540
    %1713 = vmatprep.subr.mxu0 %v1545
    %1714 = vmatpush1.msra.mxu0 %v1544
    %1715 = vmatprep.subr.mxu0 %v1549
    %1716 = vmatpush1.msra.mxu0 %v1548
    %1717 = vmatprep.subr.mxu0 %v1553
    %1718 = vmatpush1.msra.mxu0 %v1552
    %1719 = vmatprep.subr.mxu0 %v1557
    %1720 = vmatpush1.msra.mxu0 %v1556
    %1721 = vmatprep.subr.mxu0 %v1561
    %1722 = vmatpush1.msra.mxu0 %v1560
    %1723 = vmatprep.subr.mxu0 %v1565
    %1724 = vmatpush1.msra.mxu0 %v1564
    %1725 = vmatprep.subr.mxu0 %v1569
    %1726 = vmatpush1.msra.mxu0 %v1568
    %1727 = vmatprep.subr.mxu0 %v1573
    %1728 = vmatpush1.msra.mxu0 %v1572
    %1729 = vmatprep.subr.mxu0 %v1577
    %1730 = vmatpush1.msra.mxu0 %v1576
    %1731 = vmatprep.subr.mxu0 %v1581
    %1732 = vmatpush1.msra.mxu0 %v1580
    %1733 = vmatprep.subr.mxu0 %v1585
    %1734 = vmatpush1.msra.mxu0 %v1584
    %1735 = vmatprep.subr.mxu0 %v1589
    %1736 = vmatpush1.msra.mxu0 %v1588
    %1737 = vmatprep.subr.mxu0 %v1593
    %1738 = vmatpush1.msra.mxu0 %v1592
    %1739 = vmatprep.subr.mxu0 0.0
    %1740 = vmatpush1.msra.mxu0 0.0
    %1741 = vmatprep.subr.mxu0 0.0
    %1742 = vmatpush1.msra.mxu0 0.0
    %1743 = vmatprep.subr.mxu0 0.0
    %1744 = vmatpush1.msra.mxu0 0.0
    %1745 = vmatprep.subr.mxu0 0.0
    %1746 = vmatpush1.msra.mxu0 0.0
    %1747 = vmatprep.subr.mxu0 0.0
    %1748 = vmatpush1.msra.mxu0 0.0
    %1749 = vmatprep.subr.mxu0 0.0
    %1750 = vmatpush1.msra.mxu0 0.0
    %1751 = vmatprep.subr.mxu0 0.0
    %1752 = vmatpush1.msra.mxu0 0.0
    %1753 = vmatprep.subr.mxu0 0.0
    %1754 = vmatpush1.msra.mxu0 0.0
    %1755 = vmatprep.subr.mxu0 0.0
    %1756 = vmatpush1.msra.mxu0 0.0
    %1757 = vmatprep.subr.mxu0 0.0
    %1758 = vmatpush1.msra.mxu0 0.0
    %1759 = vmatprep.subr.mxu0 0.0
    %1760 = vmatpush1.msra.mxu0 0.0
    %1761 = vmatprep.subr.mxu0 0.0
    %1762 = vmatpush1.msra.mxu0 0.0
    %1763 = vmatprep.subr.mxu0 0.0
    %1764 = vmatpush1.msra.mxu0 0.0
    %1765 = vmatprep.subr.mxu0 0.0
    %1766 = vmatpush1.msra.mxu0 0.0
    %1767 = vmatprep.subr.mxu0 0.0
    %1768 = vmatpush1.msra.mxu0 0.0
    %1769 = vmatprep.subr.mxu0 0.0
    %1770 = vmatpush1.msra.mxu0 0.0
    %1771 = vmatprep.mubr.f32.mxu0 0.0
    %1772 = vmatmul.mubr.f32.gmra.mrb[0].mxu0 %v1522
    %v1773 = vpop.f32.mrb[0].mxu0
    %v1774 = vadd.f32 0.0, %v1773
    %v1775 = vpop.f32.mrb[0].mxu0
    %v1776 = vadd.f32 0.0, %v1775
    %1777 = vmatprep.mubr.f32.mxu0 0.0
    %1778 = vmatmul.mubr.f32.gmra.mrb[0].mxu0 %v1523
    %v1779 = vpop.f32.mrb[0].mxu0
    %v1780 = vadd.f32 0.0, %v1779
    %v1781 = vpop.f32.mrb[0].mxu0
    %v1782 = vadd.f32 0.0, %v1781
    %1783 = vmatprep.mubr.f32.mxu0 0.0
    %1784 = vmatmul.mubr.f32.gmra.mrb[0].mxu0 %v1524
    %v1785 = vpop.f32.mrb[0].mxu0
    %v1786 = vadd.f32 0.0, %v1785
    %v1787 = vpop.f32.mrb[0].mxu0
    %v1788 = vadd.f32 0.0, %v1787
    %1789 = vmatprep.mubr.f32.mxu0 0.0
    %1790 = vmatmul.mubr.f32.gmra.mrb[0].mxu0 %v1525
    %v1791 = vpop.f32.mrb[0].mxu0
    %v1792 = vadd.f32 0.0, %v1791
    %v1793 = vpop.f32.mrb[0].mxu0
    %v1794 = vadd.f32 0.0, %v1793
    %1795 = vmatprep.mubr.f32.mxu0 0.0
    %1796 = vmatmul.mubr.f32.gmra.mrb[0].mxu0 %v1526
    %v1797 = vpop.f32.mrb[0].mxu0
    %v1798 = vadd.f32 0.0, %v1797
    %v1799 = vpop.f32.mrb[0].mxu0
    %v1800 = vadd.f32 0.0, %v1799
    %1801 = vmatprep.mubr.f32.mxu0 0.0
    %1802 = vmatmul.mubr.f32.gmra.mrb[0].mxu0 %v1527
    %v1803 = vpop.f32.mrb[0].mxu0
    %v1804 = vadd.f32 0.0, %v1803
    %v1805 = vpop.f32.mrb[0].mxu0
    %v1806 = vadd.f32 0.0, %v1805
    %1807 = vmatprep.mubr.f32.mxu0 0.0
    %1808 = vmatmul.mubr.f32.gmra.mrb[0].mxu0 %v1528
    %v1809 = vpop.f32.mrb[0].mxu0
    %v1810 = vadd.f32 0.0, %v1809
    %v1811 = vpop.f32.mrb[0].mxu0
    %v1812 = vadd.f32 0.0, %v1811
    %1813 = vmatprep.mubr.f32.mxu0 0.0
    %1814 = vmatmul.mubr.f32.gmra.mrb[0].mxu0 %v1529
    %v1815 = vpop.f32.mrb[0].mxu0
    %v1816 = vadd.f32 0.0, %v1815
    %v1817 = vpop.f32.mrb[0].mxu0
    %v1818 = vadd.f32 0.0, %v1817
    %1819 = vdwg.mxu0
    %1820 = vst [vmem:[#allocation5] sm:$0xff] %v1661
    %1821 = vst [vmem:[#allocation5 + $0x8] sm:$0xff] %v1663
    %1822 = vst [vmem:[#allocation5 + $0x10] sm:$0xff] %v1774
    %1823 = vst [vmem:[#allocation5 + $0x18] sm:$0xff] %v1776
    %1824 = vst [vmem:[#allocation5 + $0x20] sm:$0xff] %v1667
    %1825 = vst [vmem:[#allocation5 + $0x28] sm:$0xff] %v1669
    %1826 = vst [vmem:[#allocation5 + $0x30] sm:$0xff] %v1780
    %1827 = vst [vmem:[#allocation5 + $0x38] sm:$0xff] %v1782
    %1828 = vst [vmem:[#allocation5 + $0x40] sm:$0xff] %v1673
    %1829 = vst [vmem:[#allocation5 + $0x48] sm:$0xff] %v1675
    %1830 = vst [vmem:[#allocation5 + $0x50] sm:$0xff] %v1786
    %1831 = vst [vmem:[#allocation5 + $0x58] sm:$0xff] %v1788
    %1832 = vst [vmem:[#allocation5 + $0x60] sm:$0xff] %v1679
    %1833 = vst [vmem:[#allocation5 + $0x68] sm:$0xff] %v1681
    %1834 = vst [vmem:[#allocation5 + $0x70] sm:$0xff] %v1792
    %1835 = vst [vmem:[#allocation5 + $0x78] sm:$0xff] %v1794
    %1836 = vst [vmem:[#allocation5 + $0x80] sm:$0xff] %v1685
    %1837 = vst [vmem:[#allocation5 + $0x88] sm:$0xff] %v1687
    %1838 = vst [vmem:[#allocation5 + $0x90] sm:$0xff] %v1798
    %1839 = vst [vmem:[#allocation5 + $0x98] sm:$0xff] %v1800
    %1840 = vst [vmem:[#allocation5 + $0xa0] sm:$0xff] %v1691
    %1841 = vst [vmem:[#allocation5 + $0xa8] sm:$0xff] %v1693
    %1842 = vst [vmem:[#allocation5 + $0xb0] sm:$0xff] %v1804
    %1843 = vst [vmem:[#allocation5 + $0xb8] sm:$0xff] %v1806
    %1844 = vst [vmem:[#allocation5 + $0xc0] sm:$0xff] %v1697
    %1845 = vst [vmem:[#allocation5 + $0xc8] sm:$0xff] %v1699
    %1846 = vst [vmem:[#allocation5 + $0xd0] sm:$0xff] %v1810
    %1847 = vst [vmem:[#allocation5 + $0xd8] sm:$0xff] %v1812
    %1848 = vst [vmem:[#allocation5 + $0xe0] sm:$0xff] %v1703
    %1849 = vst [vmem:[#allocation5 + $0xe8] sm:$0xff] %v1705
    %1850 = vst [vmem:[#allocation5 + $0xf0] sm:$0xff] %v1816
    %1851 = vst [vmem:[#allocation5 + $0xf8] sm:$0xff] %v1818
    %s1852 = scalar_lea.vmem [#allocation6], 512
    %v1853 = vld [vmem:[%s1852] sm:$0xff]
    %v1854 = vld [vmem:[%s1852 + $0x8] sm:$0xff]
    %v1855 = vld [vmem:[%s1852 + $0x10] sm:$0xff]
    %v1856 = vld [vmem:[%s1852 + $0x18] sm:$0xff]
    %v1857 = vld [vmem:[%s1852 + $0x20] sm:$0xff]
    %v1858 = vld [vmem:[%s1852 + $0x28] sm:$0xff]
    %v1859 = vld [vmem:[%s1852 + $0x30] sm:$0xff]
    %v1860 = vld [vmem:[%s1852 + $0x38] sm:$0xff]
    %v1861 = vld [vmem:[%s1852 + $0x40] sm:$0xff]
    %v1862 = vld [vmem:[%s1852 + $0x48] sm:$0xff]
    %v1863 = vld [vmem:[%s1852 + $0x50] sm:$0xff]
    %v1864 = vld [vmem:[%s1852 + $0x58] sm:$0xff]
    %v1865 = vld [vmem:[%s1852 + $0x60] sm:$0xff]
    %v1866 = vld [vmem:[%s1852 + $0x68] sm:$0xff]
    %v1867 = vld [vmem:[%s1852 + $0x70] sm:$0xff]
    %v1868 = vld [vmem:[%s1852 + $0x78] sm:$0xff]
    %v1869 = vld [vmem:[%s1852 + $0x80] sm:$0xff]
    %v1870 = vld [vmem:[%s1852 + $0x88] sm:$0xff]
    %v1871 = vld [vmem:[%s1852 + $0x90] sm:$0xff]
    %v1872 = vld [vmem:[%s1852 + $0x98] sm:$0xff]
    %v1873 = vld [vmem:[%s1852 + $0xa0] sm:$0xff]
    %v1874 = vld [vmem:[%s1852 + $0xa8] sm:$0xff]
    %v1875 = vld [vmem:[%s1852 + $0xb0] sm:$0xff]
    %v1876 = vld [vmem:[%s1852 + $0xb8] sm:$0xff]
    %v1877 = vld [vmem:[%s1852 + $0xc0] sm:$0xff]
    %v1878 = vld [vmem:[%s1852 + $0xc8] sm:$0xff]
    %v1879 = vld [vmem:[%s1852 + $0xd0] sm:$0xff]
    %v1880 = vld [vmem:[%s1852 + $0xd8] sm:$0xff]
    %v1881 = vld [vmem:[%s1852 + $0xe0] sm:$0xff]
    %v1882 = vld [vmem:[%s1852 + $0xe8] sm:$0xff]
    %v1883 = vld [vmem:[%s1852 + $0xf0] sm:$0xff]
    %v1884 = vld [vmem:[%s1852 + $0xf8] sm:$0xff]
    %v1885 = vld [vmem:[%s1852 + $0x100] sm:$0xff]
    %v1886 = vld [vmem:[%s1852 + $0x108] sm:$0xff]
    %v1887 = vld [vmem:[%s1852 + $0x110] sm:$0xff]
    %v1888 = vld [vmem:[%s1852 + $0x118] sm:$0xff]
    %v1889 = vld [vmem:[%s1852 + $0x120] sm:$0xff]
    %v1890 = vld [vmem:[%s1852 + $0x128] sm:$0xff]
    %v1891 = vld [vmem:[%s1852 + $0x130] sm:$0xff]
    %v1892 = vld [vmem:[%s1852 + $0x138] sm:$0xff]
    %v1893 = vld [vmem:[%s1852 + $0x140] sm:$0xff]
    %v1894 = vld [vmem:[%s1852 + $0x148] sm:$0xff]
    %v1895 = vld [vmem:[%s1852 + $0x150] sm:$0xff]
    %v1896 = vld [vmem:[%s1852 + $0x158] sm:$0xff]
    %v1897 = vld [vmem:[%s1852 + $0x160] sm:$0xff]
    %v1898 = vld [vmem:[%s1852 + $0x168] sm:$0xff]
    %v1899 = vld [vmem:[%s1852 + $0x170] sm:$0xff]
    %v1900 = vld [vmem:[%s1852 + $0x178] sm:$0xff]
    %v1901 = vld [vmem:[%s1852 + $0x180] sm:$0xff]
    %v1902 = vld [vmem:[%s1852 + $0x188] sm:$0xff]
    %v1903 = vld [vmem:[%s1852 + $0x190] sm:$0xff]
    %v1904 = vld [vmem:[%s1852 + $0x198] sm:$0xff]
    %v1905 = vld [vmem:[%s1852 + $0x1a0] sm:$0xff]
    %v1906 = vld [vmem:[%s1852 + $0x1a8] sm:$0xff]
    %v1907 = vld [vmem:[%s1852 + $0x1b0] sm:$0xff]
    %v1908 = vld [vmem:[%s1852 + $0x1b8] sm:$0xff]
    %v1909 = vld [vmem:[%s1852 + $0x1c0] sm:$0xff]
    %v1910 = vld [vmem:[%s1852 + $0x1c8] sm:$0xff]
    %v1911 = vld [vmem:[%s1852 + $0x1d0] sm:$0xff]
    %v1912 = vld [vmem:[%s1852 + $0x1d8] sm:$0xff]
    %v1913 = vld [vmem:[%s1852 + $0x1e0] sm:$0xff]
    %v1914 = vld [vmem:[%s1852 + $0x1e8] sm:$0xff]
    %v1915 = vld [vmem:[%s1852 + $0x1f0] sm:$0xff]
    %v1916 = vld [vmem:[%s1852 + $0x1f8] sm:$0xff]
    %s1917 = scalar_lea.vmem %s5, 32
    %v1918 = vld [vmem:[%s1917] sm:$0xff]
    %v1919 = vld [vmem:[%s1917 + $0x8] sm:$0xff]
    %v1920 = vld [vmem:[%s1917 + $0x10] sm:$0xff]
    %v1921 = vld [vmem:[%s1917 + $0x18] sm:$0xff]
    %s1922 = scalar_lea.vmem [#allocation2], 8
    %v1923 = vld [vmem:[%s1922] sm:$0xff]
    %s1924 = scalar_lea.vmem [#allocation3], 8
    %v1925 = vld [vmem:[%s1924] sm:$0xff]
    %s1926 = smul.u32 0, 4
    %s1927 = smul.addr %s1926, 8
    %s1928 = scalar_lea.vmem [#allocation5], %s1927
    %v1929 = vld [vmem:[%s1928] sm:$0xff]
    %v1930 = vld [vmem:[%s1928 + $0x8] sm:$0xff]
    %v1931 = vld [vmem:[%s1928 + $0x10] sm:$0xff]
    %v1932 = vld [vmem:[%s1928 + $0x18] sm:$0xff]
    %v1933 = vadd.f32 %v1929, %v1918
    %v1934 = vadd.f32 %v1930, %v1919
    %v1935 = vadd.f32 %v1931, %v1920
    %v1936 = vadd.f32 %v1932, %v1921
    %1937 = vmatprep.subr.mxu0 %v1854
    %1938 = vmatpush1.msra.mxu0 %v1853
    %1939 = vmatprep.subr.mxu0 %v1858
    %1940 = vmatpush1.msra.mxu0 %v1857
    %1941 = vmatprep.subr.mxu0 %v1862
    %1942 = vmatpush1.msra.mxu0 %v1861
    %1943 = vmatprep.subr.mxu0 %v1866
    %1944 = vmatpush1.msra.mxu0 %v1865
    %1945 = vmatprep.subr.mxu0 %v1870
    %1946 = vmatpush1.msra.mxu0 %v1869
    %1947 = vmatprep.subr.mxu0 %v1874
    %1948 = vmatpush1.msra.mxu0 %v1873
    %1949 = vmatprep.subr.mxu0 %v1878
    %1950 = vmatpush1.msra.mxu0 %v1877
    %1951 = vmatprep.subr.mxu0 %v1882
    %1952 = vmatpush1.msra.mxu0 %v1881
    %1953 = vmatprep.subr.mxu0 %v1886
    %1954 = vmatpush1.msra.mxu0 %v1885
    %1955 = vmatprep.subr.mxu0 %v1890
    %1956 = vmatpush1.msra.mxu0 %v1889
    %1957 = vmatprep.subr.mxu0 %v1894
    %1958 = vmatpush1.msra.mxu0 %v1893
    %1959 = vmatprep.subr.mxu0 %v1898
    %1960 = vmatpush1.msra.mxu0 %v1897
    %1961 = vmatprep.subr.mxu0 %v1902
    %1962 = vmatpush1.msra.mxu0 %v1901
    %1963 = vmatprep.subr.mxu0 %v1906
    %1964 = vmatpush1.msra.mxu0 %v1905
    %1965 = vmatprep.subr.mxu0 %v1910
    %1966 = vmatpush1.msra.mxu0 %v1909
    %1967 = vmatprep.subr.mxu0 %v1914
    %1968 = vmatpush1.msra.mxu0 %v1913
    %1969 = vmatprep.subr.mxu0 0.0
    %1970 = vmatpush1.msra.mxu0 0.0
    %1971 = vmatprep.subr.mxu0 0.0
    %1972 = vmatpush1.msra.mxu0 0.0
    %1973 = vmatprep.subr.mxu0 0.0
    %1974 = vmatpush1.msra.mxu0 0.0
    %1975 = vmatprep.subr.mxu0 0.0
    %1976 = vmatpush1.msra.mxu0 0.0
    %1977 = vmatprep.subr.mxu0 0.0
    %1978 = vmatpush1.msra.mxu0 0.0
    %1979 = vmatprep.subr.mxu0 0.0
    %1980 = vmatpush1.msra.mxu0 0.0
    %1981 = vmatprep.subr.mxu0 0.0
    %1982 = vmatpush1.msra.mxu0 0.0
    %1983 = vmatprep.subr.mxu0 0.0
    %1984 = vmatpush1.msra.mxu0 0.0
    %1985 = vmatprep.subr.mxu0 0.0
    %1986 = vmatpush1.msra.mxu0 0.0
    %1987 = vmatprep.subr.mxu0 0.0
    %1988 = vmatpush1.msra.mxu0 0.0
    %1989 = vmatprep.subr.mxu0 0.0
    %1990 = vmatpush1.msra.mxu0 0.0
    %1991 = vmatprep.subr.mxu0 0.0
    %1992 = vmatpush1.msra.mxu0 0.0
    %1993 = vmatprep.subr.mxu0 0.0
    %1994 = vmatpush1.msra.mxu0 0.0
    %1995 = vmatprep.subr.mxu0 0.0
    %1996 = vmatpush1.msra.mxu0 0.0
    %1997 = vmatprep.subr.mxu0 0.0
    %1998 = vmatpush1.msra.mxu0 0.0
    %1999 = vmatprep.subr.mxu0 0.0
    %2000 = vmatpush1.msra.mxu0 0.0
    %2001 = vmatprep.mubr.f32.mxu0 0.0
    %2002 = vmatmul.mubr.f32.gmra.mrb[0].mxu0 %v1923
    %v2003 = vpop.f32.mrb[0].mxu0
    %v2004 = vadd.f32 0.0, %v2003
    %v2005 = vpop.f32.mrb[0].mxu0
    %v2006 = vadd.f32 0.0, %v2005
    %2007 = vdwg.mxu0
    %2008 = vmatprep.subr.mxu0 %v1856
    %2009 = vmatpush1.msra.mxu0 %v1855
    %2010 = vmatprep.subr.mxu0 %v1860
    %2011 = vmatpush1.msra.mxu0 %v1859
    %2012 = vmatprep.subr.mxu0 %v1864
    %2013 = vmatpush1.msra.mxu0 %v1863
    %2014 = vmatprep.subr.mxu0 %v1868
    %2015 = vmatpush1.msra.mxu0 %v1867
    %2016 = vmatprep.subr.mxu0 %v1872
    %2017 = vmatpush1.msra.mxu0 %v1871
    %2018 = vmatprep.subr.mxu0 %v1876
    %2019 = vmatpush1.msra.mxu0 %v1875
    %2020 = vmatprep.subr.mxu0 %v1880
    %2021 = vmatpush1.msra.mxu0 %v1879
    %2022 = vmatprep.subr.mxu0 %v1884
    %2023 = vmatpush1.msra.mxu0 %v1883
    %2024 = vmatprep.subr.mxu0 %v1888
    %2025 = vmatpush1.msra.mxu0 %v1887
    %2026 = vmatprep.subr.mxu0 %v1892
    %2027 = vmatpush1.msra.mxu0 %v1891
    %2028 = vmatprep.subr.mxu0 %v1896
    %2029 = vmatpush1.msra.mxu0 %v1895
    %2030 = vmatprep.subr.mxu0 %v1900
    %2031 = vmatpush1.msra.mxu0 %v1899
    %2032 = vmatprep.subr.mxu0 %v1904
    %2033 = vmatpush1.msra.mxu0 %v1903
    %2034 = vmatprep.subr.mxu0 %v1908
    %2035 = vmatpush1.msra.mxu0 %v1907
    %2036 = vmatprep.subr.mxu0 %v1912
    %2037 = vmatpush1.msra.mxu0 %v1911
    %2038 = vmatprep.subr.mxu0 %v1916
    %2039 = vmatpush1.msra.mxu0 %v1915
    %2040 = vmatprep.subr.mxu0 0.0
    %2041 = vmatpush1.msra.mxu0 0.0
    %2042 = vmatprep.subr.mxu0 0.0
    %2043 = vmatpush1.msra.mxu0 0.0
    %2044 = vmatprep.subr.mxu0 0.0
    %2045 = vmatpush1.msra.mxu0 0.0
    %2046 = vmatprep.subr.mxu0 0.0
    %2047 = vmatpush1.msra.mxu0 0.0
    %2048 = vmatprep.subr.mxu0 0.0
    %2049 = vmatpush1.msra.mxu0 0.0
    %2050 = vmatprep.subr.mxu0 0.0
    %2051 = vmatpush1.msra.mxu0 0.0
    %2052 = vmatprep.subr.mxu0 0.0
    %2053 = vmatpush1.msra.mxu0 0.0
    %2054 = vmatprep.subr.mxu0 0.0
    %2055 = vmatpush1.msra.mxu0 0.0
    %2056 = vmatprep.subr.mxu0 0.0
    %2057 = vmatpush1.msra.mxu0 0.0
    %2058 = vmatprep.subr.mxu0 0.0
    %2059 = vmatpush1.msra.mxu0 0.0
    %2060 = vmatprep.subr.mxu0 0.0
    %2061 = vmatpush1.msra.mxu0 0.0
    %2062 = vmatprep.subr.mxu0 0.0
    %2063 = vmatpush1.msra.mxu0 0.0
    %2064 = vmatprep.subr.mxu0 0.0
    %2065 = vmatpush1.msra.mxu0 0.0
    %2066 = vmatprep.subr.mxu0 0.0
    %2067 = vmatpush1.msra.mxu0 0.0
    %2068 = vmatprep.subr.mxu0 0.0
    %2069 = vmatpush1.msra.mxu0 0.0
    %2070 = vmatprep.subr.mxu0 0.0
    %2071 = vmatpush1.msra.mxu0 0.0
    %2072 = vmatprep.mubr.f32.mxu0 0.0
    %2073 = vmatmul.mubr.f32.gmra.mrb[0].mxu0 %v1923
    %v2074 = vpop.f32.mrb[0].mxu0
    %v2075 = vadd.f32 0.0, %v2074
    %v2076 = vpop.f32.mrb[0].mxu0
    %v2077 = vadd.f32 0.0, %v2076
    %2078 = vdwg.mxu0
    %v2079 = vadd.f32 %v1933, %v2004
    %v2080 = vadd.f32 %v1934, %v2006
    %v2081 = vadd.f32 %v1935, %v2075
    %v2082 = vadd.f32 %v1936, %v2077
    %v2083 = vmul.f32 %v2079, 0.5
    %v2084 = vmul.f32 %v2080, 0.5
    %v2085 = vmul.f32 %v2081, 0.5
    %v2086 = vtanh.pop %v2083
    %v2087 = vtanh.pop %v2084
    %v2088 = vtanh.pop %v2085
    %v2089 = vmul.f32 %v2086, 0.5
    %v2090 = vmul.f32 %v2087, 0.5
    %v2091 = vmul.f32 %v2088, 0.5
    %v2092 = vadd.f32 %v2089, 0.5
    %v2093 = vadd.f32 %v2090, 0.5
    %v2094 = vadd.f32 %v2091, 0.5
    %v2095 = vtanh.pop %v2082
    %v2096 = vmul.f32 %v2093, %v1925
    %v2097 = vmul.f32 %v2092, %v2095
    %v2098 = vadd.f32 %v2096, %v2097
    %v2099 = vtanh.pop %v2098
    %v2100 = vmul.f32 %v2094, %v2099
    %2101 = vst [vmem:[%s6] sm:$0xff] %v2100
    %s2102 = smul.u32 1, 4
    %s2103 = smul.addr %s2102, 8
    %s2104 = scalar_lea.vmem [#allocation5], %s2103
    %v2105 = vld [vmem:[%s2104] sm:$0xff]
    %v2106 = vld [vmem:[%s2104 + $0x8] sm:$0xff]
    %v2107 = vld [vmem:[%s2104 + $0x10] sm:$0xff]
    %v2108 = vld [vmem:[%s2104 + $0x18] sm:$0xff]
    %v2109 = vadd.f32 %v2105, %v1918
    %v2110 = vadd.f32 %v2106, %v1919
    %v2111 = vadd.f32 %v2107, %v1920
    %v2112 = vadd.f32 %v2108, %v1921
    %2113 = vmatprep.subr.mxu0 %v1854
    %2114 = vmatpush1.msra.mxu0 %v1853
    %2115 = vmatprep.subr.mxu0 %v1858
    %2116 = vmatpush1.msra.mxu0 %v1857
    %2117 = vmatprep.subr.mxu0 %v1862
    %2118 = vmatpush1.msra.mxu0 %v1861
    %2119 = vmatprep.subr.mxu0 %v1866
    %2120 = vmatpush1.msra.mxu0 %v1865
    %2121 = vmatprep.subr.mxu0 %v1870
    %2122 = vmatpush1.msra.mxu0 %v1869
    %2123 = vmatprep.subr.mxu0 %v1874
    %2124 = vmatpush1.msra.mxu0 %v1873
    %2125 = vmatprep.subr.mxu0 %v1878
    %2126 = vmatpush1.msra.mxu0 %v1877
    %2127 = vmatprep.subr.mxu0 %v1882
    %2128 = vmatpush1.msra.mxu0 %v1881
    %2129 = vmatprep.subr.mxu0 %v1886
    %2130 = vmatpush1.msra.mxu0 %v1885
    %2131 = vmatprep.subr.mxu0 %v1890
    %2132 = vmatpush1.msra.mxu0 %v1889
    %2133 = vmatprep.subr.mxu0 %v1894
    %2134 = vmatpush1.msra.mxu0 %v1893
    %2135 = vmatprep.subr.mxu0 %v1898
    %2136 = vmatpush1.msra.mxu0 %v1897
    %2137 = vmatprep.subr.mxu0 %v1902
    %2138 = vmatpush1.msra.mxu0 %v1901
    %2139 = vmatprep.subr.mxu0 %v1906
    %2140 = vmatpush1.msra.mxu0 %v1905
    %2141 = vmatprep.subr.mxu0 %v1910
    %2142 = vmatpush1.msra.mxu0 %v1909
    %2143 = vmatprep.subr.mxu0 %v1914
    %2144 = vmatpush1.msra.mxu0 %v1913
    %2145 = vmatprep.subr.mxu0 0.0
    %2146 = vmatpush1.msra.mxu0 0.0
    %2147 = vmatprep.subr.mxu0 0.0
    %2148 = vmatpush1.msra.mxu0 0.0
    %2149 = vmatprep.subr.mxu0 0.0
    %2150 = vmatpush1.msra.mxu0 0.0
    %2151 = vmatprep.subr.mxu0 0.0
    %2152 = vmatpush1.msra.mxu0 0.0
    %2153 = vmatprep.subr.mxu0 0.0
    %2154 = vmatpush1.msra.mxu0 0.0
    %2155 = vmatprep.subr.mxu0 0.0
    %2156 = vmatpush1.msra.mxu0 0.0
    %2157 = vmatprep.subr.mxu0 0.0
    %2158 = vmatpush1.msra.mxu0 0.0
    %2159 = vmatprep.subr.mxu0 0.0
    %2160 = vmatpush1.msra.mxu0 0.0
    %2161 = vmatprep.subr.mxu0 0.0
    %2162 = vmatpush1.msra.mxu0 0.0
    %2163 = vmatprep.subr.mxu0 0.0
    %2164 = vmatpush1.msra.mxu0 0.0
    %2165 = vmatprep.subr.mxu0 0.0
    %2166 = vmatpush1.msra.mxu0 0.0
    %2167 = vmatprep.subr.mxu0 0.0
    %2168 = vmatpush1.msra.mxu0 0.0
    %2169 = vmatprep.subr.mxu0 0.0
    %2170 = vmatpush1.msra.mxu0 0.0
    %2171 = vmatprep.subr.mxu0 0.0
    %2172 = vmatpush1.msra.mxu0 0.0
    %2173 = vmatprep.subr.mxu0 0.0
    %2174 = vmatpush1.msra.mxu0 0.0
    %2175 = vmatprep.subr.mxu0 0.0
    %2176 = vmatpush1.msra.mxu0 0.0
    %2177 = vmatprep.mubr.f32.mxu0 0.0
    %2178 = vmatmul.mubr.f32.gmra.mrb[0].mxu0 %v2100
    %v2179 = vpop.f32.mrb[0].mxu0
    %v2180 = vadd.f32 0.0, %v2179
    %v2181 = vpop.f32.mrb[0].mxu0
    %v2182 = vadd.f32 0.0, %v2181
    %2183 = vdwg.mxu0
    %2184 = vmatprep.subr.mxu0 %v1856
    %2185 = vmatpush1.msra.mxu0 %v1855
    %2186 = vmatprep.subr.mxu0 %v1860
    %2187 = vmatpush1.msra.mxu0 %v1859
    %2188 = vmatprep.subr.mxu0 %v1864
    %2189 = vmatpush1.msra.mxu0 %v1863
    %2190 = vmatprep.subr.mxu0 %v1868
    %2191 = vmatpush1.msra.mxu0 %v1867
    %2192 = vmatprep.subr.mxu0 %v1872
    %2193 = vmatpush1.msra.mxu0 %v1871
    %2194 = vmatprep.subr.mxu0 %v1876
    %2195 = vmatpush1.msra.mxu0 %v1875
    %2196 = vmatprep.subr.mxu0 %v1880
    %2197 = vmatpush1.msra.mxu0 %v1879
    %2198 = vmatprep.subr.mxu0 %v1884
    %2199 = vmatpush1.msra.mxu0 %v1883
    %2200 = vmatprep.subr.mxu0 %v1888
    %2201 = vmatpush1.msra.mxu0 %v1887
    %2202 = vmatprep.subr.mxu0 %v1892
    %2203 = vmatpush1.msra.mxu0 %v1891
    %2204 = vmatprep.subr.mxu0 %v1896
    %2205 = vmatpush1.msra.mxu0 %v1895
    %2206 = vmatprep.subr.mxu0 %v1900
    %2207 = vmatpush1.msra.mxu0 %v1899
    %2208 = vmatprep.subr.mxu0 %v1904
    %2209 = vmatpush1.msra.mxu0 %v1903
    %2210 = vmatprep.subr.mxu0 %v1908
    %2211 = vmatpush1.msra.mxu0 %v1907
    %2212 = vmatprep.subr.mxu0 %v1912
    %2213 = vmatpush1.msra.mxu0 %v1911
    %2214 = vmatprep.subr.mxu0 %v1916
    %2215 = vmatpush1.msra.mxu0 %v1915
    %2216 = vmatprep.subr.mxu0 0.0
    %2217 = vmatpush1.msra.mxu0 0.0
    %2218 = vmatprep.subr.mxu0 0.0
    %2219 = vmatpush1.msra.mxu0 0.0
    %2220 = vmatprep.subr.mxu0 0.0
    %2221 = vmatpush1.msra.mxu0 0.0
    %2222 = vmatprep.subr.mxu0 0.0
    %2223 = vmatpush1.msra.mxu0 0.0
    %2224 = vmatprep.subr.mxu0 0.0
    %2225 = vmatpush1.msra.mxu0 0.0
    %2226 = vmatprep.subr.mxu0 0.0
    %2227 = vmatpush1.msra.mxu0 0.0
    %2228 = vmatprep.subr.mxu0 0.0
    %2229 = vmatpush1.msra.mxu0 0.0
    %2230 = vmatprep.subr.mxu0 0.0
    %2231 = vmatpush1.msra.mxu0 0.0
    %2232 = vmatprep.subr.mxu0 0.0
    %2233 = vmatpush1.msra.mxu0 0.0
    %2234 = vmatprep.subr.mxu0 0.0
    %2235 = vmatpush1.msra.mxu0 0.0
    %2236 = vmatprep.subr.mxu0 0.0
    %2237 = vmatpush1.msra.mxu0 0.0
    %2238 = vmatprep.subr.mxu0 0.0
    %2239 = vmatpush1.msra.mxu0 0.0
    %2240 = vmatprep.subr.mxu0 0.0
    %2241 = vmatpush1.msra.mxu0 0.0
    %2242 = vmatprep.subr.mxu0 0.0
    %2243 = vmatpush1.msra.mxu0 0.0
    %2244 = vmatprep.subr.mxu0 0.0
    %2245 = vmatpush1.msra.mxu0 0.0
    %2246 = vmatprep.subr.mxu0 0.0
    %2247 = vmatpush1.msra.mxu0 0.0
    %2248 = vmatprep.mubr.f32.mxu0 0.0
    %2249 = vmatmul.mubr.f32.gmra.mrb[0].mxu0 %v2100
    %v2250 = vpop.f32.mrb[0].mxu0
    %v2251 = vadd.f32 0.0, %v2250
    %v2252 = vpop.f32.mrb[0].mxu0
    %v2253 = vadd.f32 0.0, %v2252
    %2254 = vdwg.mxu0
    %v2255 = vadd.f32 %v2109, %v2180
    %v2256 = vadd.f32 %v2110, %v2182
    %v2257 = vadd.f32 %v2111, %v2251
    %v2258 = vadd.f32 %v2112, %v2253
    %v2259 = vmul.f32 %v2255, 0.5
    %v2260 = vmul.f32 %v2256, 0.5
    %v2261 = vmul.f32 %v2257, 0.5
    %v2262 = vtanh.pop %v2259
    %v2263 = vtanh.pop %v2260
    %v2264 = vtanh.pop %v2261
    %v2265 = vmul.f32 %v2262, 0.5
    %v2266 = vmul.f32 %v2263, 0.5
    %v2267 = vmul.f32 %v2264, 0.5
    %v2268 = vadd.f32 %v2265, 0.5
    %v2269 = vadd.f32 %v2266, 0.5
    %v2270 = vadd.f32 %v2267, 0.5
    %v2271 = vtanh.pop %v2258
    %v2272 = vmul.f32 %v2269, %v2098
    %v2273 = vmul.f32 %v2268, %v2271
    %v2274 = vadd.f32 %v2272, %v2273
    %v2275 = vtanh.pop %v2274
    %v2276 = vmul.f32 %v2270, %v2275
    %s2277 = scalar_lea.vmem %s6, 8
    %2278 = vst [vmem:[%s2277] sm:$0xff] %v2276
    %s2279 = smul.u32 2, 4
    %s2280 = smul.addr %s2279, 8
    %s2281 = scalar_lea.vmem [#allocation5], %s2280
    %v2282 = vld [vmem:[%s2281] sm:$0xff]
    %v2283 = vld [vmem:[%s2281 + $0x8] sm:$0xff]
    %v2284 = vld [vmem:[%s2281 + $0x10] sm:$0xff]
    %v2285 = vld [vmem:[%s2281 + $0x18] sm:$0xff]
    %v2286 = vadd.f32 %v2282, %v1918
    %v2287 = vadd.f32 %v2283, %v1919
    %v2288 = vadd.f32 %v2284, %v1920
    %v2289 = vadd.f32 %v2285, %v1921
    %2290 = vmatprep.subr.mxu0 %v1854
    %2291 = vmatpush1.msra.mxu0 %v1853
    %2292 = vmatprep.subr.mxu0 %v1858
    %2293 = vmatpush1.msra.mxu0 %v1857
    %2294 = vmatprep.subr.mxu0 %v1862
    %2295 = vmatpush1.msra.mxu0 %v1861
    %2296 = vmatprep.subr.mxu0 %v1866
    %2297 = vmatpush1.msra.mxu0 %v1865
    %2298 = vmatprep.subr.mxu0 %v1870
    %2299 = vmatpush1.msra.mxu0 %v1869
    %2300 = vmatprep.subr.mxu0 %v1874
    %2301 = vmatpush1.msra.mxu0 %v1873
    %2302 = vmatprep.subr.mxu0 %v1878
    %2303 = vmatpush1.msra.mxu0 %v1877
    %2304 = vmatprep.subr.mxu0 %v1882
    %2305 = vmatpush1.msra.mxu0 %v1881
    %2306 = vmatprep.subr.mxu0 %v1886
    %2307 = vmatpush1.msra.mxu0 %v1885
    %2308 = vmatprep.subr.mxu0 %v1890
    %2309 = vmatpush1.msra.mxu0 %v1889
    %2310 = vmatprep.subr.mxu0 %v1894
    %2311 = vmatpush1.msra.mxu0 %v1893
    %2312 = vmatprep.subr.mxu0 %v1898
    %2313 = vmatpush1.msra.mxu0 %v1897
    %2314 = vmatprep.subr.mxu0 %v1902
    %2315 = vmatpush1.msra.mxu0 %v1901
    %2316 = vmatprep.subr.mxu0 %v1906
    %2317 = vmatpush1.msra.mxu0 %v1905
    %2318 = vmatprep.subr.mxu0 %v1910
    %2319 = vmatpush1.msra.mxu0 %v1909
    %2320 = vmatprep.subr.mxu0 %v1914
    %2321 = vmatpush1.msra.mxu0 %v1913
    %2322 = vmatprep.subr.mxu0 0.0
    %2323 = vmatpush1.msra.mxu0 0.0
    %2324 = vmatprep.subr.mxu0 0.0
    %2325 = vmatpush1.msra.mxu0 0.0
    %2326 = vmatprep.subr.mxu0 0.0
    %2327 = vmatpush1.msra.mxu0 0.0
    %2328 = vmatprep.subr.mxu0 0.0
    %2329 = vmatpush1.msra.mxu0 0.0
    %2330 = vmatprep.subr.mxu0 0.0
    %2331 = vmatpush1.msra.mxu0 0.0
    %2332 = vmatprep.subr.mxu0 0.0
    %2333 = vmatpush1.msra.mxu0 0.0
    %2334 = vmatprep.subr.mxu0 0.0
    %2335 = vmatpush1.msra.mxu0 0.0
    %2336 = vmatprep.subr.mxu0 0.0
    %2337 = vmatpush1.msra.mxu0 0.0
    %2338 = vmatprep.subr.mxu0 0.0
    %2339 = vmatpush1.msra.mxu0 0.0
    %2340 = vmatprep.subr.mxu0 0.0
    %2341 = vmatpush1.msra.mxu0 0.0
    %2342 = vmatprep.subr.mxu0 0.0
    %2343 = vmatpush1.msra.mxu0 0.0
    %2344 = vmatprep.subr.mxu0 0.0
    %2345 = vmatpush1.msra.mxu0 0.0
    %2346 = vmatprep.subr.mxu0 0.0
    %2347 = vmatpush1.msra.mxu0 0.0
    %2348 = vmatprep.subr.mxu0 0.0
    %2349 = vmatpush1.msra.mxu0 0.0
    %2350 = vmatprep.subr.mxu0 0.0
    %2351 = vmatpush1.msra.mxu0 0.0
    %2352 = vmatprep.subr.mxu0 0.0
    %2353 = vmatpush1.msra.mxu0 0.0
    %2354 = vmatprep.mubr.f32.mxu0 0.0
    %2355 = vmatmul.mubr.f32.gmra.mrb[0].mxu0 %v2276
    %v2356 = vpop.f32.mrb[0].mxu0
    %v2357 = vadd.f32 0.0, %v2356
    %v2358 = vpop.f32.mrb[0].mxu0
    %v2359 = vadd.f32 0.0, %v2358
    %2360 = vdwg.mxu0
    %2361 = vmatprep.subr.mxu0 %v1856
    %2362 = vmatpush1.msra.mxu0 %v1855
    %2363 = vmatprep.subr.mxu0 %v1860
    %2364 = vmatpush1.msra.mxu0 %v1859
    %2365 = vmatprep.subr.mxu0 %v1864
    %2366 = vmatpush1.msra.mxu0 %v1863
    %2367 = vmatprep.subr.mxu0 %v1868
    %2368 = vmatpush1.msra.mxu0 %v1867
    %2369 = vmatprep.subr.mxu0 %v1872
    %2370 = vmatpush1.msra.mxu0 %v1871
    %2371 = vmatprep.subr.mxu0 %v1876
    %2372 = vmatpush1.msra.mxu0 %v1875
    %2373 = vmatprep.subr.mxu0 %v1880
    %2374 = vmatpush1.msra.mxu0 %v1879
    %2375 = vmatprep.subr.mxu0 %v1884
    %2376 = vmatpush1.msra.mxu0 %v1883
    %2377 = vmatprep.subr.mxu0 %v1888
    %2378 = vmatpush1.msra.mxu0 %v1887
    %2379 = vmatprep.subr.mxu0 %v1892
    %2380 = vmatpush1.msra.mxu0 %v1891
    %2381 = vmatprep.subr.mxu0 %v1896
    %2382 = vmatpush1.msra.mxu0 %v1895
    %2383 = vmatprep.subr.mxu0 %v1900
    %2384 = vmatpush1.msra.mxu0 %v1899
    %2385 = vmatprep.subr.mxu0 %v1904
    %2386 = vmatpush1.msra.mxu0 %v1903
    %2387 = vmatprep.subr.mxu0 %v1908
    %2388 = vmatpush1.msra.mxu0 %v1907
    %2389 = vmatprep.subr.mxu0 %v1912
    %2390 = vmatpush1.msra.mxu0 %v1911
    %2391 = vmatprep.subr.mxu0 %v1916
    %2392 = vmatpush1.msra.mxu0 %v1915
    %2393 = vmatprep.subr.mxu0 0.0
    %2394 = vmatpush1.msra.mxu0 0.0
    %2395 = vmatprep.subr.mxu0 0.0
    %2396 = vmatpush1.msra.mxu0 0.0
    %2397 = vmatprep.subr.mxu0 0.0
    %2398 = vmatpush1.msra.mxu0 0.0
    %2399 = vmatprep.subr.mxu0 0.0
    %2400 = vmatpush1.msra.mxu0 0.0
    %2401 = vmatprep.subr.mxu0 0.0
    %2402 = vmatpush1.msra.mxu0 0.0
    %2403 = vmatprep.subr.mxu0 0.0
    %2404 = vmatpush1.msra.mxu0 0.0
    %2405 = vmatprep.subr.mxu0 0.0
    %2406 = vmatpush1.msra.mxu0 0.0
    %2407 = vmatprep.subr.mxu0 0.0
    %2408 = vmatpush1.msra.mxu0 0.0
    %2409 = vmatprep.subr.mxu0 0.0
    %2410 = vmatpush1.msra.mxu0 0.0
    %2411 = vmatprep.subr.mxu0 0.0
    %2412 = vmatpush1.msra.mxu0 0.0
    %2413 = vmatprep.subr.mxu0 0.0
    %2414 = vmatpush1.msra.mxu0 0.0
    %2415 = vmatprep.subr.mxu0 0.0
    %2416 = vmatpush1.msra.mxu0 0.0
    %2417 = vmatprep.subr.mxu0 0.0
    %2418 = vmatpush1.msra.mxu0 0.0
    %2419 = vmatprep.subr.mxu0 0.0
    %2420 = vmatpush1.msra.mxu0 0.0
    %2421 = vmatprep.subr.mxu0 0.0
    %2422 = vmatpush1.msra.mxu0 0.0
    %2423 = vmatprep.subr.mxu0 0.0
    %2424 = vmatpush1.msra.mxu0 0.0
    %2425 = vmatprep.mubr.f32.mxu0 0.0
    %2426 = vmatmul.mubr.f32.gmra.mrb[0].mxu0 %v2276
    %v2427 = vpop.f32.mrb[0].mxu0
    %v2428 = vadd.f32 0.0, %v2427
    %v2429 = vpop.f32.mrb[0].mxu0
    %v2430 = vadd.f32 0.0, %v2429
    %2431 = vdwg.mxu0
    %v2432 = vadd.f32 %v2286, %v2357
    %v2433 = vadd.f32 %v2287, %v2359
    %v2434 = vadd.f32 %v2288, %v2428
    %v2435 = vadd.f32 %v2289, %v2430
    %v2436 = vmul.f32 %v2432, 0.5
    %v2437 = vmul.f32 %v2433, 0.5
    %v2438 = vmul.f32 %v2434, 0.5
    %v2439 = vtanh.pop %v2436
    %v2440 = vtanh.pop %v2437
    %v2441 = vtanh.pop %v2438
    %v2442 = vmul.f32 %v2439, 0.5
    %v2443 = vmul.f32 %v2440, 0.5
    %v2444 = vmul.f32 %v2441, 0.5
    %v2445 = vadd.f32 %v2442, 0.5
    %v2446 = vadd.f32 %v2443, 0.5
    %v2447 = vadd.f32 %v2444, 0.5
    %v2448 = vtanh.pop %v2435
    %v2449 = vmul.f32 %v2446, %v2274
    %v2450 = vmul.f32 %v2445, %v2448
    %v2451 = vadd.f32 %v2449, %v2450
    %v2452 = vtanh.pop %v2451
    %v2453 = vmul.f32 %v2447, %v2452
    %s2454 = scalar_lea.vmem %s6, 16
    %2455 = vst [vmem:[%s2454] sm:$0xff] %v2453
    %s2456 = smul.u32 3, 4
    %s2457 = smul.addr %s2456, 8
    %s2458 = scalar_lea.vmem [#allocation5], %s2457
    %v2459 = vld [vmem:[%s2458] sm:$0xff]
    %v2460 = vld [vmem:[%s2458 + $0x8] sm:$0xff]
    %v2461 = vld [vmem:[%s2458 + $0x10] sm:$0xff]
    %v2462 = vld [vmem:[%s2458 + $0x18] sm:$0xff]
    %v2463 = vadd.f32 %v2459, %v1918
    %v2464 = vadd.f32 %v2460, %v1919
    %v2465 = vadd.f32 %v2461, %v1920
    %v2466 = vadd.f32 %v2462, %v1921
    %2467 = vmatprep.subr.mxu0 %v1854
    %2468 = vmatpush1.msra.mxu0 %v1853
    %2469 = vmatprep.subr.mxu0 %v1858
    %2470 = vmatpush1.msra.mxu0 %v1857
    %2471 = vmatprep.subr.mxu0 %v1862
    %2472 = vmatpush1.msra.mxu0 %v1861
    %2473 = vmatprep.subr.mxu0 %v1866
    %2474 = vmatpush1.msra.mxu0 %v1865
    %2475 = vmatprep.subr.mxu0 %v1870
    %2476 = vmatpush1.msra.mxu0 %v1869
    %2477 = vmatprep.subr.mxu0 %v1874
    %2478 = vmatpush1.msra.mxu0 %v1873
    %2479 = vmatprep.subr.mxu0 %v1878
    %2480 = vmatpush1.msra.mxu0 %v1877
    %2481 = vmatprep.subr.mxu0 %v1882
    %2482 = vmatpush1.msra.mxu0 %v1881
    %2483 = vmatprep.subr.mxu0 %v1886
    %2484 = vmatpush1.msra.mxu0 %v1885
    %2485 = vmatprep.subr.mxu0 %v1890
    %2486 = vmatpush1.msra.mxu0 %v1889
    %2487 = vmatprep.subr.mxu0 %v1894
    %2488 = vmatpush1.msra.mxu0 %v1893
    %2489 = vmatprep.subr.mxu0 %v1898
    %2490 = vmatpush1.msra.mxu0 %v1897
    %2491 = vmatprep.subr.mxu0 %v1902
    %2492 = vmatpush1.msra.mxu0 %v1901
    %2493 = vmatprep.subr.mxu0 %v1906
    %2494 = vmatpush1.msra.mxu0 %v1905
    %2495 = vmatprep.subr.mxu0 %v1910
    %2496 = vmatpush1.msra.mxu0 %v1909
    %2497 = vmatprep.subr.mxu0 %v1914
    %2498 = vmatpush1.msra.mxu0 %v1913
    %2499 = vmatprep.subr.mxu0 0.0
    %2500 = vmatpush1.msra.mxu0 0.0
    %2501 = vmatprep.subr.mxu0 0.0
    %2502 = vmatpush1.msra.mxu0 0.0
    %2503 = vmatprep.subr.mxu0 0.0
    %2504 = vmatpush1.msra.mxu0 0.0
    %2505 = vmatprep.subr.mxu0 0.0
    %2506 = vmatpush1.msra.mxu0 0.0
    %2507 = vmatprep.subr.mxu0 0.0
    %2508 = vmatpush1.msra.mxu0 0.0
    %2509 = vmatprep.subr.mxu0 0.0
    %2510 = vmatpush1.msra.mxu0 0.0
    %2511 = vmatprep.subr.mxu0 0.0
    %2512 = vmatpush1.msra.mxu0 0.0
    %2513 = vmatprep.subr.mxu0 0.0
    %2514 = vmatpush1.msra.mxu0 0.0
    %2515 = vmatprep.subr.mxu0 0.0
    %2516 = vmatpush1.msra.mxu0 0.0
    %2517 = vmatprep.subr.mxu0 0.0
    %2518 = vmatpush1.msra.mxu0 0.0
    %2519 = vmatprep.subr.mxu0 0.0
    %2520 = vmatpush1.msra.mxu0 0.0
    %2521 = vmatprep.subr.mxu0 0.0
    %2522 = vmatpush1.msra.mxu0 0.0
    %2523 = vmatprep.subr.mxu0 0.0
    %2524 = vmatpush1.msra.mxu0 0.0
    %2525 = vmatprep.subr.mxu0 0.0
    %2526 = vmatpush1.msra.mxu0 0.0
    %2527 = vmatprep.subr.mxu0 0.0
    %2528 = vmatpush1.msra.mxu0 0.0
    %2529 = vmatprep.subr.mxu0 0.0
    %2530 = vmatpush1.msra.mxu0 0.0
    %2531 = vmatprep.mubr.f32.mxu0 0.0
    %2532 = vmatmul.mubr.f32.gmra.mrb[0].mxu0 %v2453
    %v2533 = vpop.f32.mrb[0].mxu0
    %v2534 = vadd.f32 0.0, %v2533
    %v2535 = vpop.f32.mrb[0].mxu0
    %v2536 = vadd.f32 0.0, %v2535
    %2537 = vdwg.mxu0
    %2538 = vmatprep.subr.mxu0 %v1856
    %2539 = vmatpush1.msra.mxu0 %v1855
    %2540 = vmatprep.subr.mxu0 %v1860
    %2541 = vmatpush1.msra.mxu0 %v1859
    %2542 = vmatprep.subr.mxu0 %v1864
    %2543 = vmatpush1.msra.mxu0 %v1863
    %2544 = vmatprep.subr.mxu0 %v1868
    %2545 = vmatpush1.msra.mxu0 %v1867
    %2546 = vmatprep.subr.mxu0 %v1872
    %2547 = vmatpush1.msra.mxu0 %v1871
    %2548 = vmatprep.subr.mxu0 %v1876
    %2549 = vmatpush1.msra.mxu0 %v1875
    %2550 = vmatprep.subr.mxu0 %v1880
    %2551 = vmatpush1.msra.mxu0 %v1879
    %2552 = vmatprep.subr.mxu0 %v1884
    %2553 = vmatpush1.msra.mxu0 %v1883
    %2554 = vmatprep.subr.mxu0 %v1888
    %2555 = vmatpush1.msra.mxu0 %v1887
    %2556 = vmatprep.subr.mxu0 %v1892
    %2557 = vmatpush1.msra.mxu0 %v1891
    %2558 = vmatprep.subr.mxu0 %v1896
    %2559 = vmatpush1.msra.mxu0 %v1895
    %2560 = vmatprep.subr.mxu0 %v1900
    %2561 = vmatpush1.msra.mxu0 %v1899
    %2562 = vmatprep.subr.mxu0 %v1904
    %2563 = vmatpush1.msra.mxu0 %v1903
    %2564 = vmatprep.subr.mxu0 %v1908
    %2565 = vmatpush1.msra.mxu0 %v1907
    %2566 = vmatprep.subr.mxu0 %v1912
    %2567 = vmatpush1.msra.mxu0 %v1911
    %2568 = vmatprep.subr.mxu0 %v1916
    %2569 = vmatpush1.msra.mxu0 %v1915
    %2570 = vmatprep.subr.mxu0 0.0
    %2571 = vmatpush1.msra.mxu0 0.0
    %2572 = vmatprep.subr.mxu0 0.0
    %2573 = vmatpush1.msra.mxu0 0.0
    %2574 = vmatprep.subr.mxu0 0.0
    %2575 = vmatpush1.msra.mxu0 0.0
    %2576 = vmatprep.subr.mxu0 0.0
    %2577 = vmatpush1.msra.mxu0 0.0
    %2578 = vmatprep.subr.mxu0 0.0
    %2579 = vmatpush1.msra.mxu0 0.0
    %2580 = vmatprep.subr.mxu0 0.0
    %2581 = vmatpush1.msra.mxu0 0.0
    %2582 = vmatprep.subr.mxu0 0.0
    %2583 = vmatpush1.msra.mxu0 0.0
    %2584 = vmatprep.subr.mxu0 0.0
    %2585 = vmatpush1.msra.mxu0 0.0
    %2586 = vmatprep.subr.mxu0 0.0
    %2587 = vmatpush1.msra.mxu0 0.0
    %2588 = vmatprep.subr.mxu0 0.0
    %2589 = vmatpush1.msra.mxu0 0.0
    %2590 = vmatprep.subr.mxu0 0.0
    %2591 = vmatpush1.msra.mxu0 0.0
    %2592 = vmatprep.subr.mxu0 0.0
    %2593 = vmatpush1.msra.mxu0 0.0
    %2594 = vmatprep.subr.mxu0 0.0
    %2595 = vmatpush1.msra.mxu0 0.0
    %2596 = vmatprep.subr.mxu0 0.0
    %2597 = vmatpush1.msra.mxu0 0.0
    %2598 = vmatprep.subr.mxu0 0.0
    %2599 = vmatpush1.msra.mxu0 0.0
    %2600 = vmatprep.subr.mxu0 0.0
    %2601 = vmatpush1.msra.mxu0 0.0
    %2602 = vmatprep.mubr.f32.mxu0 0.0
    %2603 = vmatmul.mubr.f32.gmra.mrb[0].mxu0 %v2453
    %v2604 = vpop.f32.mrb[0].mxu0
    %v2605 = vadd.f32 0.0, %v2604
    %v2606 = vpop.f32.mrb[0].mxu0
    %v2607 = vadd.f32 0.0, %v2606
    %2608 = vdwg.mxu0
    %v2609 = vadd.f32 %v2463, %v2534
    %v2610 = vadd.f32 %v2464, %v2536
    %v2611 = vadd.f32 %v2465, %v2605
    %v2612 = vadd.f32 %v2466, %v2607
    %v2613 = vmul.f32 %v2609, 0.5
    %v2614 = vmul.f32 %v2610, 0.5
    %v2615 = vmul.f32 %v2611, 0.5
    %v2616 = vtanh.pop %v2613
    %v2617 = vtanh.pop %v2614
    %v2618 = vtanh.pop %v2615
    %v2619 = vmul.f32 %v2616, 0.5
    %v2620 = vmul.f32 %v2617, 0.5
    %v2621 = vmul.f32 %v2618, 0.5
    %v2622 = vadd.f32 %v2619, 0.5
    %v2623 = vadd.f32 %v2620, 0.5
    %v2624 = vadd.f32 %v2621, 0.5
    %v2625 = vtanh.pop %v2612
    %v2626 = vmul.f32 %v2623, %v2451
    %v2627 = vmul.f32 %v2622, %v2625
    %v2628 = vadd.f32 %v2626, %v2627
    %v2629 = vtanh.pop %v2628
    %v2630 = vmul.f32 %v2624, %v2629
    %s2631 = scalar_lea.vmem %s6, 24
    %2632 = vst [vmem:[%s2631] sm:$0xff] %v2630
    %s2633 = smul.u32 4, 4
    %s2634 = smul.addr %s2633, 8
    %s2635 = scalar_lea.vmem [#allocation5], %s2634
    %v2636 = vld [vmem:[%s2635] sm:$0xff]
    %v2637 = vld [vmem:[%s2635 + $0x8] sm:$0xff]
    %v2638 = vld [vmem:[%s2635 + $0x10] sm:$0xff]
    %v2639 = vld [vmem:[%s2635 + $0x18] sm:$0xff]
    %v2640 = vadd.f32 %v2636, %v1918
    %v2641 = vadd.f32 %v2637, %v1919
    %v2642 = vadd.f32 %v2638, %v1920
    %v2643 = vadd.f32 %v2639, %v1921
    %2644 = vmatprep.subr.mxu0 %v1854
    %2645 = vmatpush1.msra.mxu0 %v1853
    %2646 = vmatprep.subr.mxu0 %v1858
    %2647 = vmatpush1.msra.mxu0 %v1857
    %2648 = vmatprep.subr.mxu0 %v1862
    %2649 = vmatpush1.msra.mxu0 %v1861
    %2650 = vmatprep.subr.mxu0 %v1866
    %2651 = vmatpush1.msra.mxu0 %v1865
    %2652 = vmatprep.subr.mxu0 %v1870
    %2653 = vmatpush1.msra.mxu0 %v1869
    %2654 = vmatprep.subr.mxu0 %v1874
    %2655 = vmatpush1.msra.mxu0 %v1873
    %2656 = vmatprep.subr.mxu0 %v1878
    %2657 = vmatpush1.msra.mxu0 %v1877
    %2658 = vmatprep.subr.mxu0 %v1882
    %2659 = vmatpush1.msra.mxu0 %v1881
    %2660 = vmatprep.subr.mxu0 %v1886
    %2661 = vmatpush1.msra.mxu0 %v1885
    %2662 = vmatprep.subr.mxu0 %v1890
    %2663 = vmatpush1.msra.mxu0 %v1889
    %2664 = vmatprep.subr.mxu0 %v1894
    %2665 = vmatpush1.msra.mxu0 %v1893
    %2666 = vmatprep.subr.mxu0 %v1898
    %2667 = vmatpush1.msra.mxu0 %v1897
    %2668 = vmatprep.subr.mxu0 %v1902
    %2669 = vmatpush1.msra.mxu0 %v1901
    %2670 = vmatprep.subr.mxu0 %v1906
    %2671 = vmatpush1.msra.mxu0 %v1905
    %2672 = vmatprep.subr.mxu0 %v1910
    %2673 = vmatpush1.msra.mxu0 %v1909
    %2674 = vmatprep.subr.mxu0 %v1914
    %2675 = vmatpush1.msra.mxu0 %v1913
    %2676 = vmatprep.subr.mxu0 0.0
    %2677 = vmatpush1.msra.mxu0 0.0
    %2678 = vmatprep.subr.mxu0 0.0
    %2679 = vmatpush1.msra.mxu0 0.0
    %2680 = vmatprep.subr.mxu0 0.0
    %2681 = vmatpush1.msra.mxu0 0.0
    %2682 = vmatprep.subr.mxu0 0.0
    %2683 = vmatpush1.msra.mxu0 0.0
    %2684 = vmatprep.subr.mxu0 0.0
    %2685 = vmatpush1.msra.mxu0 0.0
    %2686 = vmatprep.subr.mxu0 0.0
    %2687 = vmatpush1.msra.mxu0 0.0
    %2688 = vmatprep.subr.mxu0 0.0
    %2689 = vmatpush1.msra.mxu0 0.0
    %2690 = vmatprep.subr.mxu0 0.0
    %2691 = vmatpush1.msra.mxu0 0.0
    %2692 = vmatprep.subr.mxu0 0.0
    %2693 = vmatpush1.msra.mxu0 0.0
    %2694 = vmatprep.subr.mxu0 0.0
    %2695 = vmatpush1.msra.mxu0 0.0
    %2696 = vmatprep.subr.mxu0 0.0
    %2697 = vmatpush1.msra.mxu0 0.0
    %2698 = vmatprep.subr.mxu0 0.0
    %2699 = vmatpush1.msra.mxu0 0.0
    %2700 = vmatprep.subr.mxu0 0.0
    %2701 = vmatpush1.msra.mxu0 0.0
    %2702 = vmatprep.subr.mxu0 0.0
    %2703 = vmatpush1.msra.mxu0 0.0
    %2704 = vmatprep.subr.mxu0 0.0
    %2705 = vmatpush1.msra.mxu0 0.0
    %2706 = vmatprep.subr.mxu0 0.0
    %2707 = vmatpush1.msra.mxu0 0.0
    %2708 = vmatprep.mubr.f32.mxu0 0.0
    %2709 = vmatmul.mubr.f32.gmra.mrb[0].mxu0 %v2630
    %v2710 = vpop.f32.mrb[0].mxu0
    %v2711 = vadd.f32 0.0, %v2710
    %v2712 = vpop.f32.mrb[0].mxu0
    %v2713 = vadd.f32 0.0, %v2712
    %2714 = vdwg.mxu0
    %2715 = vmatprep.subr.mxu0 %v1856
    %2716 = vmatpush1.msra.mxu0 %v1855
    %2717 = vmatprep.subr.mxu0 %v1860
    %2718 = vmatpush1.msra.mxu0 %v1859
    %2719 = vmatprep.subr.mxu0 %v1864
    %2720 = vmatpush1.msra.mxu0 %v1863
    %2721 = vmatprep.subr.mxu0 %v1868
    %2722 = vmatpush1.msra.mxu0 %v1867
    %2723 = vmatprep.subr.mxu0 %v1872
    %2724 = vmatpush1.msra.mxu0 %v1871
    %2725 = vmatprep.subr.mxu0 %v1876
    %2726 = vmatpush1.msra.mxu0 %v1875
    %2727 = vmatprep.subr.mxu0 %v1880
    %2728 = vmatpush1.msra.mxu0 %v1879
    %2729 = vmatprep.subr.mxu0 %v1884
    %2730 = vmatpush1.msra.mxu0 %v1883
    %2731 = vmatprep.subr.mxu0 %v1888
    %2732 = vmatpush1.msra.mxu0 %v1887
    %2733 = vmatprep.subr.mxu0 %v1892
    %2734 = vmatpush1.msra.mxu0 %v1891
    %2735 = vmatprep.subr.mxu0 %v1896
    %2736 = vmatpush1.msra.mxu0 %v1895
    %2737 = vmatprep.subr.mxu0 %v1900
    %2738 = vmatpush1.msra.mxu0 %v1899
    %2739 = vmatprep.subr.mxu0 %v1904
    %2740 = vmatpush1.msra.mxu0 %v1903
    %2741 = vmatprep.subr.mxu0 %v1908
    %2742 = vmatpush1.msra.mxu0 %v1907
    %2743 = vmatprep.subr.mxu0 %v1912
    %2744 = vmatpush1.msra.mxu0 %v1911
    %2745 = vmatprep.subr.mxu0 %v1916
    %2746 = vmatpush1.msra.mxu0 %v1915
    %2747 = vmatprep.subr.mxu0 0.0
    %2748 = vmatpush1.msra.mxu0 0.0
    %2749 = vmatprep.subr.mxu0 0.0
    %2750 = vmatpush1.msra.mxu0 0.0
    %2751 = vmatprep.subr.mxu0 0.0
    %2752 = vmatpush1.msra.mxu0 0.0
    %2753 = vmatprep.subr.mxu0 0.0
    %2754 = vmatpush1.msra.mxu0 0.0
    %2755 = vmatprep.subr.mxu0 0.0
    %2756 = vmatpush1.msra.mxu0 0.0
    %2757 = vmatprep.subr.mxu0 0.0
    %2758 = vmatpush1.msra.mxu0 0.0
    %2759 = vmatprep.subr.mxu0 0.0
    %2760 = vmatpush1.msra.mxu0 0.0
    %2761 = vmatprep.subr.mxu0 0.0
    %2762 = vmatpush1.msra.mxu0 0.0
    %2763 = vmatprep.subr.mxu0 0.0
    %2764 = vmatpush1.msra.mxu0 0.0
    %2765 = vmatprep.subr.mxu0 0.0
    %2766 = vmatpush1.msra.mxu0 0.0
    %2767 = vmatprep.subr.mxu0 0.0
    %2768 = vmatpush1.msra.mxu0 0.0
    %2769 = vmatprep.subr.mxu0 0.0
    %2770 = vmatpush1.msra.mxu0 0.0
    %2771 = vmatprep.subr.mxu0 0.0
    %2772 = vmatpush1.msra.mxu0 0.0
    %2773 = vmatprep.subr.mxu0 0.0
    %2774 = vmatpush1.msra.mxu0 0.0
    %2775 = vmatprep.subr.mxu0 0.0
    %2776 = vmatpush1.msra.mxu0 0.0
    %2777 = vmatprep.subr.mxu0 0.0
    %2778 = vmatpush1.msra.mxu0 0.0
    %2779 = vmatprep.mubr.f32.mxu0 0.0
    %2780 = vmatmul.mubr.f32.gmra.mrb[0].mxu0 %v2630
    %v2781 = vpop.f32.mrb[0].mxu0
    %v2782 = vadd.f32 0.0, %v2781
    %v2783 = vpop.f32.mrb[0].mxu0
    %v2784 = vadd.f32 0.0, %v2783
    %2785 = vdwg.mxu0
    %v2786 = vadd.f32 %v2640, %v2711
    %v2787 = vadd.f32 %v2641, %v2713
    %v2788 = vadd.f32 %v2642, %v2782
    %v2789 = vadd.f32 %v2643, %v2784
    %v2790 = vmul.f32 %v2786, 0.5
    %v2791 = vmul.f32 %v2787, 0.5
    %v2792 = vmul.f32 %v2788, 0.5
    %v2793 = vtanh.pop %v2790
    %v2794 = vtanh.pop %v2791
    %v2795 = vtanh.pop %v2792
    %v2796 = vmul.f32 %v2793, 0.5
    %v2797 = vmul.f32 %v2794, 0.5
    %v2798 = vmul.f32 %v2795, 0.5
    %v2799 = vadd.f32 %v2796, 0.5
    %v2800 = vadd.f32 %v2797, 0.5
    %v2801 = vadd.f32 %v2798, 0.5
    %v2802 = vtanh.pop %v2789
    %v2803 = vmul.f32 %v2800, %v2628
    %v2804 = vmul.f32 %v2799, %v2802
    %v2805 = vadd.f32 %v2803, %v2804
    %v2806 = vtanh.pop %v2805
    %v2807 = vmul.f32 %v2801, %v2806
    %s2808 = scalar_lea.vmem %s6, 32
    %2809 = vst [vmem:[%s2808] sm:$0xff] %v2807
    %s2810 = smul.u32 5, 4
    %s2811 = smul.addr %s2810, 8
    %s2812 = scalar_lea.vmem [#allocation5], %s2811
    %v2813 = vld [vmem:[%s2812] sm:$0xff]
    %v2814 = vld [vmem:[%s2812 + $0x8] sm:$0xff]
    %v2815 = vld [vmem:[%s2812 + $0x10] sm:$0xff]
    %v2816 = vld [vmem:[%s2812 + $0x18] sm:$0xff]
    %v2817 = vadd.f32 %v2813, %v1918
    %v2818 = vadd.f32 %v2814, %v1919
    %v2819 = vadd.f32 %v2815, %v1920
    %v2820 = vadd.f32 %v2816, %v1921
    %2821 = vmatprep.subr.mxu0 %v1854
    %2822 = vmatpush1.msra.mxu0 %v1853
    %2823 = vmatprep.subr.mxu0 %v1858
    %2824 = vmatpush1.msra.mxu0 %v1857
    %2825 = vmatprep.subr.mxu0 %v1862
    %2826 = vmatpush1.msra.mxu0 %v1861
    %2827 = vmatprep.subr.mxu0 %v1866
    %2828 = vmatpush1.msra.mxu0 %v1865
    %2829 = vmatprep.subr.mxu0 %v1870
    %2830 = vmatpush1.msra.mxu0 %v1869
    %2831 = vmatprep.subr.mxu0 %v1874
    %2832 = vmatpush1.msra.mxu0 %v1873
    %2833 = vmatprep.subr.mxu0 %v1878
    %2834 = vmatpush1.msra.mxu0 %v1877
    %2835 = vmatprep.subr.mxu0 %v1882
    %2836 = vmatpush1.msra.mxu0 %v1881
    %2837 = vmatprep.subr.mxu0 %v1886
    %2838 = vmatpush1.msra.mxu0 %v1885
    %2839 = vmatprep.subr.mxu0 %v1890
    %2840 = vmatpush1.msra.mxu0 %v1889
    %2841 = vmatprep.subr.mxu0 %v1894
    %2842 = vmatpush1.msra.mxu0 %v1893
    %2843 = vmatprep.subr.mxu0 %v1898
    %2844 = vmatpush1.msra.mxu0 %v1897
    %2845 = vmatprep.subr.mxu0 %v1902
    %2846 = vmatpush1.msra.mxu0 %v1901
    %2847 = vmatprep.subr.mxu0 %v1906
    %2848 = vmatpush1.msra.mxu0 %v1905
    %2849 = vmatprep.subr.mxu0 %v1910
    %2850 = vmatpush1.msra.mxu0 %v1909
    %2851 = vmatprep.subr.mxu0 %v1914
    %2852 = vmatpush1.msra.mxu0 %v1913
    %2853 = vmatprep.subr.mxu0 0.0
    %2854 = vmatpush1.msra.mxu0 0.0
    %2855 = vmatprep.subr.mxu0 0.0
    %2856 = vmatpush1.msra.mxu0 0.0
    %2857 = vmatprep.subr.mxu0 0.0
    %2858 = vmatpush1.msra.mxu0 0.0
    %2859 = vmatprep.subr.mxu0 0.0
    %2860 = vmatpush1.msra.mxu0 0.0
    %2861 = vmatprep.subr.mxu0 0.0
    %2862 = vmatpush1.msra.mxu0 0.0
    %2863 = vmatprep.subr.mxu0 0.0
    %2864 = vmatpush1.msra.mxu0 0.0
    %2865 = vmatprep.subr.mxu0 0.0
    %2866 = vmatpush1.msra.mxu0 0.0
    %2867 = vmatprep.subr.mxu0 0.0
    %2868 = vmatpush1.msra.mxu0 0.0
    %2869 = vmatprep.subr.mxu0 0.0
    %2870 = vmatpush1.msra.mxu0 0.0
    %2871 = vmatprep.subr.mxu0 0.0
    %2872 = vmatpush1.msra.mxu0 0.0
    %2873 = vmatprep.subr.mxu0 0.0
    %2874 = vmatpush1.msra.mxu0 0.0
    %2875 = vmatprep.subr.mxu0 0.0
    %2876 = vmatpush1.msra.mxu0 0.0
    %2877 = vmatprep.subr.mxu0 0.0
    %2878 = vmatpush1.msra.mxu0 0.0
    %2879 = vmatprep.subr.mxu0 0.0
    %2880 = vmatpush1.msra.mxu0 0.0
    %2881 = vmatprep.subr.mxu0 0.0
    %2882 = vmatpush1.msra.mxu0 0.0
    %2883 = vmatprep.subr.mxu0 0.0
    %2884 = vmatpush1.msra.mxu0 0.0
    %2885 = vmatprep.mubr.f32.mxu0 0.0
    %2886 = vmatmul.mubr.f32.gmra.mrb[0].mxu0 %v2807
    %v2887 = vpop.f32.mrb[0].mxu0
    %v2888 = vadd.f32 0.0, %v2887
    %v2889 = vpop.f32.mrb[0].mxu0
    %v2890 = vadd.f32 0.0, %v2889
    %2891 = vdwg.mxu0
    %2892 = vmatprep.subr.mxu0 %v1856
    %2893 = vmatpush1.msra.mxu0 %v1855
    %2894 = vmatprep.subr.mxu0 %v1860
    %2895 = vmatpush1.msra.mxu0 %v1859
    %2896 = vmatprep.subr.mxu0 %v1864
    %2897 = vmatpush1.msra.mxu0 %v1863
    %2898 = vmatprep.subr.mxu0 %v1868
    %2899 = vmatpush1.msra.mxu0 %v1867
    %2900 = vmatprep.subr.mxu0 %v1872
    %2901 = vmatpush1.msra.mxu0 %v1871
    %2902 = vmatprep.subr.mxu0 %v1876
    %2903 = vmatpush1.msra.mxu0 %v1875
    %2904 = vmatprep.subr.mxu0 %v1880
    %2905 = vmatpush1.msra.mxu0 %v1879
    %2906 = vmatprep.subr.mxu0 %v1884
    %2907 = vmatpush1.msra.mxu0 %v1883
    %2908 = vmatprep.subr.mxu0 %v1888
    %2909 = vmatpush1.msra.mxu0 %v1887
    %2910 = vmatprep.subr.mxu0 %v1892
    %2911 = vmatpush1.msra.mxu0 %v1891
    %2912 = vmatprep.subr.mxu0 %v1896
    %2913 = vmatpush1.msra.mxu0 %v1895
    %2914 = vmatprep.subr.mxu0 %v1900
    %2915 = vmatpush1.msra.mxu0 %v1899
    %2916 = vmatprep.subr.mxu0 %v1904
    %2917 = vmatpush1.msra.mxu0 %v1903
    %2918 = vmatprep.subr.mxu0 %v1908
    %2919 = vmatpush1.msra.mxu0 %v1907
    %2920 = vmatprep.subr.mxu0 %v1912
    %2921 = vmatpush1.msra.mxu0 %v1911
    %2922 = vmatprep.subr.mxu0 %v1916
    %2923 = vmatpush1.msra.mxu0 %v1915
    %2924 = vmatprep.subr.mxu0 0.0
    %2925 = vmatpush1.msra.mxu0 0.0
    %2926 = vmatprep.subr.mxu0 0.0
    %2927 = vmatpush1.msra.mxu0 0.0
    %2928 = vmatprep.subr.mxu0 0.0
    %2929 = vmatpush1.msra.mxu0 0.0
    %2930 = vmatprep.subr.mxu0 0.0
    %2931 = vmatpush1.msra.mxu0 0.0
    %2932 = vmatprep.subr.mxu0 0.0
    %2933 = vmatpush1.msra.mxu0 0.0
    %2934 = vmatprep.subr.mxu0 0.0
    %2935 = vmatpush1.msra.mxu0 0.0
    %2936 = vmatprep.subr.mxu0 0.0
    %2937 = vmatpush1.msra.mxu0 0.0
    %2938 = vmatprep.subr.mxu0 0.0
    %2939 = vmatpush1.msra.mxu0 0.0
    %2940 = vmatprep.subr.mxu0 0.0
    %2941 = vmatpush1.msra.mxu0 0.0
    %2942 = vmatprep.subr.mxu0 0.0
    %2943 = vmatpush1.msra.mxu0 0.0
    %2944 = vmatprep.subr.mxu0 0.0
    %2945 = vmatpush1.msra.mxu0 0.0
    %2946 = vmatprep.subr.mxu0 0.0
    %2947 = vmatpush1.msra.mxu0 0.0
    %2948 = vmatprep.subr.mxu0 0.0
    %2949 = vmatpush1.msra.mxu0 0.0
    %2950 = vmatprep.subr.mxu0 0.0
    %2951 = vmatpush1.msra.mxu0 0.0
    %2952 = vmatprep.subr.mxu0 0.0
    %2953 = vmatpush1.msra.mxu0 0.0
    %2954 = vmatprep.subr.mxu0 0.0
    %2955 = vmatpush1.msra.mxu0 0.0
    %2956 = vmatprep.mubr.f32.mxu0 0.0
    %2957 = vmatmul.mubr.f32.gmra.mrb[0].mxu0 %v2807
    %v2958 = vpop.f32.mrb[0].mxu0
    %v2959 = vadd.f32 0.0, %v2958
    %v2960 = vpop.f32.mrb[0].mxu0
    %v2961 = vadd.f32 0.0, %v2960
    %2962 = vdwg.mxu0
    %v2963 = vadd.f32 %v2817, %v2888
    %v2964 = vadd.f32 %v2818, %v2890
    %v2965 = vadd.f32 %v2819, %v2959
    %v2966 = vadd.f32 %v2820, %v2961
    %v2967 = vmul.f32 %v2963, 0.5
    %v2968 = vmul.f32 %v2964, 0.5
    %v2969 = vmul.f32 %v2965, 0.5
    %v2970 = vtanh.pop %v2967
    %v2971 = vtanh.pop %v2968
    %v2972 = vtanh.pop %v2969
    %v2973 = vmul.f32 %v2970, 0.5
    %v2974 = vmul.f32 %v2971, 0.5
    %v2975 = vmul.f32 %v2972, 0.5
    %v2976 = vadd.f32 %v2973, 0.5
    %v2977 = vadd.f32 %v2974, 0.5
    %v2978 = vadd.f32 %v2975, 0.5
    %v2979 = vtanh.pop %v2966
    %v2980 = vmul.f32 %v2977, %v2805
    %v2981 = vmul.f32 %v2976, %v2979
    %v2982 = vadd.f32 %v2980, %v2981
    %v2983 = vtanh.pop %v2982
    %v2984 = vmul.f32 %v2978, %v2983
    %s2985 = scalar_lea.vmem %s6, 40
    %2986 = vst [vmem:[%s2985] sm:$0xff] %v2984
    %s2987 = smul.u32 6, 4
    %s2988 = smul.addr %s2987, 8
    %s2989 = scalar_lea.vmem [#allocation5], %s2988
    %v2990 = vld [vmem:[%s2989] sm:$0xff]
    %v2991 = vld [vmem:[%s2989 + $0x8] sm:$0xff]
    %v2992 = vld [vmem:[%s2989 + $0x10] sm:$0xff]
    %v2993 = vld [vmem:[%s2989 + $0x18] sm:$0xff]
    %v2994 = vadd.f32 %v2990, %v1918
    %v2995 = vadd.f32 %v2991, %v1919
    %v2996 = vadd.f32 %v2992, %v1920
    %v2997 = vadd.f32 %v2993, %v1921
    %2998 = vmatprep.subr.mxu0 %v1854
    %2999 = vmatpush1.msra.mxu0 %v1853
    %3000 = vmatprep.subr.mxu0 %v1858
    %3001 = vmatpush1.msra.mxu0 %v1857
    %3002 = vmatprep.subr.mxu0 %v1862
    %3003 = vmatpush1.msra.mxu0 %v1861
    %3004 = vmatprep.subr.mxu0 %v1866
    %3005 = vmatpush1.msra.mxu0 %v1865
    %3006 = vmatprep.subr.mxu0 %v1870
    %3007 = vmatpush1.msra.mxu0 %v1869
    %3008 = vmatprep.subr.mxu0 %v1874
    %3009 = vmatpush1.msra.mxu0 %v1873
    %3010 = vmatprep.subr.mxu0 %v1878
    %3011 = vmatpush1.msra.mxu0 %v1877
    %3012 = vmatprep.subr.mxu0 %v1882
    %3013 = vmatpush1.msra.mxu0 %v1881
    %3014 = vmatprep.subr.mxu0 %v1886
    %3015 = vmatpush1.msra.mxu0 %v1885
    %3016 = vmatprep.subr.mxu0 %v1890
    %3017 = vmatpush1.msra.mxu0 %v1889
    %3018 = vmatprep.subr.mxu0 %v1894
    %3019 = vmatpush1.msra.mxu0 %v1893
    %3020 = vmatprep.subr.mxu0 %v1898
    %3021 = vmatpush1.msra.mxu0 %v1897
    %3022 = vmatprep.subr.mxu0 %v1902
    %3023 = vmatpush1.msra.mxu0 %v1901
    %3024 = vmatprep.subr.mxu0 %v1906
    %3025 = vmatpush1.msra.mxu0 %v1905
    %3026 = vmatprep.subr.mxu0 %v1910
    %3027 = vmatpush1.msra.mxu0 %v1909
    %3028 = vmatprep.subr.mxu0 %v1914
    %3029 = vmatpush1.msra.mxu0 %v1913
    %3030 = vmatprep.subr.mxu0 0.0
    %3031 = vmatpush1.msra.mxu0 0.0
    %3032 = vmatprep.subr.mxu0 0.0
    %3033 = vmatpush1.msra.mxu0 0.0
    %3034 = vmatprep.subr.mxu0 0.0
    %3035 = vmatpush1.msra.mxu0 0.0
    %3036 = vmatprep.subr.mxu0 0.0
    %3037 = vmatpush1.msra.mxu0 0.0
    %3038 = vmatprep.subr.mxu0 0.0
    %3039 = vmatpush1.msra.mxu0 0.0
    %3040 = vmatprep.subr.mxu0 0.0
    %3041 = vmatpush1.msra.mxu0 0.0
    %3042 = vmatprep.subr.mxu0 0.0
    %3043 = vmatpush1.msra.mxu0 0.0
    %3044 = vmatprep.subr.mxu0 0.0
    %3045 = vmatpush1.msra.mxu0 0.0
    %3046 = vmatprep.subr.mxu0 0.0
    %3047 = vmatpush1.msra.mxu0 0.0
    %3048 = vmatprep.subr.mxu0 0.0
    %3049 = vmatpush1.msra.mxu0 0.0
    %3050 = vmatprep.subr.mxu0 0.0
    %3051 = vmatpush1.msra.mxu0 0.0
    %3052 = vmatprep.subr.mxu0 0.0
    %3053 = vmatpush1.msra.mxu0 0.0
    %3054 = vmatprep.subr.mxu0 0.0
    %3055 = vmatpush1.msra.mxu0 0.0
    %3056 = vmatprep.subr.mxu0 0.0
    %3057 = vmatpush1.msra.mxu0 0.0
    %3058 = vmatprep.subr.mxu0 0.0
    %3059 = vmatpush1.msra.mxu0 0.0
    %3060 = vmatprep.subr.mxu0 0.0
    %3061 = vmatpush1.msra.mxu0 0.0
    %3062 = vmatprep.mubr.f32.mxu0 0.0
    %3063 = vmatmul.mubr.f32.gmra.mrb[0].mxu0 %v2984
    %v3064 = vpop.f32.mrb[0].mxu0
    %v3065 = vadd.f32 0.0, %v3064
    %v3066 = vpop.f32.mrb[0].mxu0
    %v3067 = vadd.f32 0.0, %v3066
    %3068 = vdwg.mxu0
    %3069 = vmatprep.subr.mxu0 %v1856
    %3070 = vmatpush1.msra.mxu0 %v1855
    %3071 = vmatprep.subr.mxu0 %v1860
    %3072 = vmatpush1.msra.mxu0 %v1859
    %3073 = vmatprep.subr.mxu0 %v1864
    %3074 = vmatpush1.msra.mxu0 %v1863
    %3075 = vmatprep.subr.mxu0 %v1868
    %3076 = vmatpush1.msra.mxu0 %v1867
    %3077 = vmatprep.subr.mxu0 %v1872
    %3078 = vmatpush1.msra.mxu0 %v1871
    %3079 = vmatprep.subr.mxu0 %v1876
    %3080 = vmatpush1.msra.mxu0 %v1875
    %3081 = vmatprep.subr.mxu0 %v1880
    %3082 = vmatpush1.msra.mxu0 %v1879
    %3083 = vmatprep.subr.mxu0 %v1884
    %3084 = vmatpush1.msra.mxu0 %v1883
    %3085 = vmatprep.subr.mxu0 %v1888
    %3086 = vmatpush1.msra.mxu0 %v1887
    %3087 = vmatprep.subr.mxu0 %v1892
    %3088 = vmatpush1.msra.mxu0 %v1891
    %3089 = vmatprep.subr.mxu0 %v1896
    %3090 = vmatpush1.msra.mxu0 %v1895
    %3091 = vmatprep.subr.mxu0 %v1900
    %3092 = vmatpush1.msra.mxu0 %v1899
    %3093 = vmatprep.subr.mxu0 %v1904
    %3094 = vmatpush1.msra.mxu0 %v1903
    %3095 = vmatprep.subr.mxu0 %v1908
    %3096 = vmatpush1.msra.mxu0 %v1907
    %3097 = vmatprep.subr.mxu0 %v1912
    %3098 = vmatpush1.msra.mxu0 %v1911
    %3099 = vmatprep.subr.mxu0 %v1916
    %3100 = vmatpush1.msra.mxu0 %v1915
    %3101 = vmatprep.subr.mxu0 0.0
    %3102 = vmatpush1.msra.mxu0 0.0
    %3103 = vmatprep.subr.mxu0 0.0
    %3104 = vmatpush1.msra.mxu0 0.0
    %3105 = vmatprep.subr.mxu0 0.0
    %3106 = vmatpush1.msra.mxu0 0.0
    %3107 = vmatprep.subr.mxu0 0.0
    %3108 = vmatpush1.msra.mxu0 0.0
    %3109 = vmatprep.subr.mxu0 0.0
    %3110 = vmatpush1.msra.mxu0 0.0
    %3111 = vmatprep.subr.mxu0 0.0
    %3112 = vmatpush1.msra.mxu0 0.0
    %3113 = vmatprep.subr.mxu0 0.0
    %3114 = vmatpush1.msra.mxu0 0.0
    %3115 = vmatprep.subr.mxu0 0.0
    %3116 = vmatpush1.msra.mxu0 0.0
    %3117 = vmatprep.subr.mxu0 0.0
    %3118 = vmatpush1.msra.mxu0 0.0
    %3119 = vmatprep.subr.mxu0 0.0
    %3120 = vmatpush1.msra.mxu0 0.0
    %3121 = vmatprep.subr.mxu0 0.0
    %3122 = vmatpush1.msra.mxu0 0.0
    %3123 = vmatprep.subr.mxu0 0.0
    %3124 = vmatpush1.msra.mxu0 0.0
    %3125 = vmatprep.subr.mxu0 0.0
    %3126 = vmatpush1.msra.mxu0 0.0
    %3127 = vmatprep.subr.mxu0 0.0
    %3128 = vmatpush1.msra.mxu0 0.0
    %3129 = vmatprep.subr.mxu0 0.0
    %3130 = vmatpush1.msra.mxu0 0.0
    %3131 = vmatprep.subr.mxu0 0.0
    %3132 = vmatpush1.msra.mxu0 0.0
    %3133 = vmatprep.mubr.f32.mxu0 0.0
    %3134 = vmatmul.mubr.f32.gmra.mrb[0].mxu0 %v2984
    %v3135 = vpop.f32.mrb[0].mxu0
    %v3136 = vadd.f32 0.0, %v3135
    %v3137 = vpop.f32.mrb[0].mxu0
    %v3138 = vadd.f32 0.0, %v3137
    %3139 = vdwg.mxu0
    %v3140 = vadd.f32 %v2994, %v3065
    %v3141 = vadd.f32 %v2995, %v3067
    %v3142 = vadd.f32 %v2996, %v3136
    %v3143 = vadd.f32 %v2997, %v3138
    %v3144 = vmul.f32 %v3140, 0.5
    %v3145 = vmul.f32 %v3141, 0.5
    %v3146 = vmul.f32 %v3142, 0.5
    %v3147 = vtanh.pop %v3144
    %v3148 = vtanh.pop %v3145
    %v3149 = vtanh.pop %v3146
    %v3150 = vmul.f32 %v3147, 0.5
    %v3151 = vmul.f32 %v3148, 0.5
    %v3152 = vmul.f32 %v3149, 0.5
    %v3153 = vadd.f32 %v3150, 0.5
    %v3154 = vadd.f32 %v3151, 0.5
    %v3155 = vadd.f32 %v3152, 0.5
    %v3156 = vtanh.pop %v3143
    %v3157 = vmul.f32 %v3154, %v2982
    %v3158 = vmul.f32 %v3153, %v3156
    %v3159 = vadd.f32 %v3157, %v3158
    %v3160 = vtanh.pop %v3159
    %v3161 = vmul.f32 %v3155, %v3160
    %s3162 = scalar_lea.vmem %s6, 48
    %3163 = vst [vmem:[%s3162] sm:$0xff] %v3161
    %s3164 = smul.u32 7, 4
    %s3165 = smul.addr %s3164, 8
    %s3166 = scalar_lea.vmem [#allocation5], %s3165
    %v3167 = vld [vmem:[%s3166] sm:$0xff]
    %v3168 = vld [vmem:[%s3166 + $0x8] sm:$0xff]
    %v3169 = vld [vmem:[%s3166 + $0x10] sm:$0xff]
    %v3170 = vld [vmem:[%s3166 + $0x18] sm:$0xff]
    %v3171 = vadd.f32 %v3167, %v1918
    %v3172 = vadd.f32 %v3168, %v1919
    %v3173 = vadd.f32 %v3169, %v1920
    %v3174 = vadd.f32 %v3170, %v1921
    %3175 = vmatprep.subr.mxu0 %v1854
    %3176 = vmatpush1.msra.mxu0 %v1853
    %3177 = vmatprep.subr.mxu0 %v1858
    %3178 = vmatpush1.msra.mxu0 %v1857
    %3179 = vmatprep.subr.mxu0 %v1862
    %3180 = vmatpush1.msra.mxu0 %v1861
    %3181 = vmatprep.subr.mxu0 %v1866
    %3182 = vmatpush1.msra.mxu0 %v1865
    %3183 = vmatprep.subr.mxu0 %v1870
    %3184 = vmatpush1.msra.mxu0 %v1869
    %3185 = vmatprep.subr.mxu0 %v1874
    %3186 = vmatpush1.msra.mxu0 %v1873
    %3187 = vmatprep.subr.mxu0 %v1878
    %3188 = vmatpush1.msra.mxu0 %v1877
    %3189 = vmatprep.subr.mxu0 %v1882
    %3190 = vmatpush1.msra.mxu0 %v1881
    %3191 = vmatprep.subr.mxu0 %v1886
    %3192 = vmatpush1.msra.mxu0 %v1885
    %3193 = vmatprep.subr.mxu0 %v1890
    %3194 = vmatpush1.msra.mxu0 %v1889
    %3195 = vmatprep.subr.mxu0 %v1894
    %3196 = vmatpush1.msra.mxu0 %v1893
    %3197 = vmatprep.subr.mxu0 %v1898
    %3198 = vmatpush1.msra.mxu0 %v1897
    %3199 = vmatprep.subr.mxu0 %v1902
    %3200 = vmatpush1.msra.mxu0 %v1901
    %3201 = vmatprep.subr.mxu0 %v1906
    %3202 = vmatpush1.msra.mxu0 %v1905
    %3203 = vmatprep.subr.mxu0 %v1910
    %3204 = vmatpush1.msra.mxu0 %v1909
    %3205 = vmatprep.subr.mxu0 %v1914
    %3206 = vmatpush1.msra.mxu0 %v1913
    %3207 = vmatprep.subr.mxu0 0.0
    %3208 = vmatpush1.msra.mxu0 0.0
    %3209 = vmatprep.subr.mxu0 0.0
    %3210 = vmatpush1.msra.mxu0 0.0
    %3211 = vmatprep.subr.mxu0 0.0
    %3212 = vmatpush1.msra.mxu0 0.0
    %3213 = vmatprep.subr.mxu0 0.0
    %3214 = vmatpush1.msra.mxu0 0.0
    %3215 = vmatprep.subr.mxu0 0.0
    %3216 = vmatpush1.msra.mxu0 0.0
    %3217 = vmatprep.subr.mxu0 0.0
    %3218 = vmatpush1.msra.mxu0 0.0
    %3219 = vmatprep.subr.mxu0 0.0
    %3220 = vmatpush1.msra.mxu0 0.0
    %3221 = vmatprep.subr.mxu0 0.0
    %3222 = vmatpush1.msra.mxu0 0.0
    %3223 = vmatprep.subr.mxu0 0.0
    %3224 = vmatpush1.msra.mxu0 0.0
    %3225 = vmatprep.subr.mxu0 0.0
    %3226 = vmatpush1.msra.mxu0 0.0
    %3227 = vmatprep.subr.mxu0 0.0
    %3228 = vmatpush1.msra.mxu0 0.0
    %3229 = vmatprep.subr.mxu0 0.0
    %3230 = vmatpush1.msra.mxu0 0.0
    %3231 = vmatprep.subr.mxu0 0.0
    %3232 = vmatpush1.msra.mxu0 0.0
    %3233 = vmatprep.subr.mxu0 0.0
    %3234 = vmatpush1.msra.mxu0 0.0
    %3235 = vmatprep.subr.mxu0 0.0
    %3236 = vmatpush1.msra.mxu0 0.0
    %3237 = vmatprep.subr.mxu0 0.0
    %3238 = vmatpush1.msra.mxu0 0.0
    %3239 = vmatprep.mubr.f32.mxu0 0.0
    %3240 = vmatmul.mubr.f32.gmra.mrb[0].mxu0 %v3161
    %v3241 = vpop.f32.mrb[0].mxu0
    %v3242 = vadd.f32 0.0, %v3241
    %v3243 = vpop.f32.mrb[0].mxu0
    %v3244 = vadd.f32 0.0, %v3243
    %3245 = vdwg.mxu0
    %3246 = vmatprep.subr.mxu0 %v1856
    %3247 = vmatpush1.msra.mxu0 %v1855
    %3248 = vmatprep.subr.mxu0 %v1860
    %3249 = vmatpush1.msra.mxu0 %v1859
    %3250 = vmatprep.subr.mxu0 %v1864
    %3251 = vmatpush1.msra.mxu0 %v1863
    %3252 = vmatprep.subr.mxu0 %v1868
    %3253 = vmatpush1.msra.mxu0 %v1867
    %3254 = vmatprep.subr.mxu0 %v1872
    %3255 = vmatpush1.msra.mxu0 %v1871
    %3256 = vmatprep.subr.mxu0 %v1876
    %3257 = vmatpush1.msra.mxu0 %v1875
    %3258 = vmatprep.subr.mxu0 %v1880
    %3259 = vmatpush1.msra.mxu0 %v1879
    %3260 = vmatprep.subr.mxu0 %v1884
    %3261 = vmatpush1.msra.mxu0 %v1883
    %3262 = vmatprep.subr.mxu0 %v1888
    %3263 = vmatpush1.msra.mxu0 %v1887
    %3264 = vmatprep.subr.mxu0 %v1892
    %3265 = vmatpush1.msra.mxu0 %v1891
    %3266 = vmatprep.subr.mxu0 %v1896
    %3267 = vmatpush1.msra.mxu0 %v1895
    %3268 = vmatprep.subr.mxu0 %v1900
    %3269 = vmatpush1.msra.mxu0 %v1899
    %3270 = vmatprep.subr.mxu0 %v1904
    %3271 = vmatpush1.msra.mxu0 %v1903
    %3272 = vmatprep.subr.mxu0 %v1908
    %3273 = vmatpush1.msra.mxu0 %v1907
    %3274 = vmatprep.subr.mxu0 %v1912
    %3275 = vmatpush1.msra.mxu0 %v1911
    %3276 = vmatprep.subr.mxu0 %v1916
    %3277 = vmatpush1.msra.mxu0 %v1915
    %3278 = vmatprep.subr.mxu0 0.0
    %3279 = vmatpush1.msra.mxu0 0.0
    %3280 = vmatprep.subr.mxu0 0.0
    %3281 = vmatpush1.msra.mxu0 0.0
    %3282 = vmatprep.subr.mxu0 0.0
    %3283 = vmatpush1.msra.mxu0 0.0
    %3284 = vmatprep.subr.mxu0 0.0
    %3285 = vmatpush1.msra.mxu0 0.0
    %3286 = vmatprep.subr.mxu0 0.0
    %3287 = vmatpush1.msra.mxu0 0.0
    %3288 = vmatprep.subr.mxu0 0.0
    %3289 = vmatpush1.msra.mxu0 0.0
    %3290 = vmatprep.subr.mxu0 0.0
    %3291 = vmatpush1.msra.mxu0 0.0
    %3292 = vmatprep.subr.mxu0 0.0
    %3293 = vmatpush1.msra.mxu0 0.0
    %3294 = vmatprep.subr.mxu0 0.0
    %3295 = vmatpush1.msra.mxu0 0.0
    %3296 = vmatprep.subr.mxu0 0.0
    %3297 = vmatpush1.msra.mxu0 0.0
    %3298 = vmatprep.subr.mxu0 0.0
    %3299 = vmatpush1.msra.mxu0 0.0
    %3300 = vmatprep.subr.mxu0 0.0
    %3301 = vmatpush1.msra.mxu0 0.0
    %3302 = vmatprep.subr.mxu0 0.0
    %3303 = vmatpush1.msra.mxu0 0.0
    %3304 = vmatprep.subr.mxu0 0.0
    %3305 = vmatpush1.msra.mxu0 0.0
    %3306 = vmatprep.subr.mxu0 0.0
    %3307 = vmatpush1.msra.mxu0 0.0
    %3308 = vmatprep.subr.mxu0 0.0
    %3309 = vmatpush1.msra.mxu0 0.0
    %3310 = vmatprep.mubr.f32.mxu0 0.0
    %3311 = vmatmul.mubr.f32.gmra.mrb[0].mxu0 %v3161
    %v3312 = vpop.f32.mrb[0].mxu0
    %v3313 = vadd.f32 0.0, %v3312
    %v3314 = vpop.f32.mrb[0].mxu0
    %v3315 = vadd.f32 0.0, %v3314
    %3316 = vdwg.mxu0
    %v3317 = vadd.f32 %v3171, %v3242
    %v3318 = vadd.f32 %v3172, %v3244
    %v3319 = vadd.f32 %v3173, %v3313
    %v3320 = vadd.f32 %v3174, %v3315
    %v3321 = vmul.f32 %v3317, 0.5
    %v3322 = vmul.f32 %v3318, 0.5
    %v3323 = vmul.f32 %v3319, 0.5
    %v3324 = vtanh.pop %v3321
    %v3325 = vtanh.pop %v3322
    %v3326 = vtanh.pop %v3323
    %v3327 = vmul.f32 %v3324, 0.5
    %v3328 = vmul.f32 %v3325, 0.5
    %v3329 = vmul.f32 %v3326, 0.5
    %v3330 = vadd.f32 %v3327, 0.5
    %v3331 = vadd.f32 %v3328, 0.5
    %v3332 = vadd.f32 %v3329, 0.5
    %v3333 = vtanh.pop %v3320
    %v3334 = vmul.f32 %v3331, %v3159
    %v3335 = vmul.f32 %v3330, %v3333
    %v3336 = vadd.f32 %v3334, %v3335
    %v3337 = vtanh.pop %v3336
    %v3338 = vmul.f32 %v3332, %v3337
    %s3339 = scalar_lea.vmem %s6, 56
    %3340 = vst [vmem:[%s3339] sm:$0xff] %v3338
    %3341 = vst [vmem:[%s1922] sm:$0xff] %v3338
    %3342 = vst [vmem:[%s1924] sm:$0xff] %v3336
    // Predicated region
    $region34: #{_forward_impl.1} parent=1 // pred_check
      %p3343 = pneg %p40
    $region35: #{_forward_impl.1} parent=1 // pred_check_branch
      %3345 = sbr.rel (%p3343) target = $region37
    $region36: #{_forward_impl.1} parent=1 // pred_region
      %v3346 = vld [vmem:[#allocation2] sm:$0xff]
      %v3347 = vld [vmem:[#allocation2 + $0x8] sm:$0xff]
      %3348 = vst [vmem:[%s7] sm:$0xff] %v3346
      %3349 = vst [vmem:[%s7 + $0x8] sm:$0xff] %v3347
      %v3350 = vld [vmem:[#allocation3] sm:$0xff]
      %v3351 = vld [vmem:[#allocation3 + $0x8] sm:$0xff]
      %3352 = vst [vmem:[%s8] sm:$0xff] %v3350
      %3353 = vst [vmem:[%s8 + $0x8] sm:$0xff] %v3351
    $region37: #{_forward_impl.1} parent=1 // pred_fallthru
      _
    // Predicated region
    $region38: #{_forward_impl.1} parent=1 // pred_check
      _
    $region39: #{_forward_impl.1} parent=1 // pred_check_branch
      %3355 = sbr.rel (0) target = $region41
    $region40: #{_forward_impl.1} parent=1 // pred_region
      _
    $region41: #{_forward_impl.1} parent=1 // pred_fallthru
      _
    // Predicated region
    $region42: #{_forward_impl.1} parent=1 // pred_check
      _
    $region43: #{_forward_impl.1} parent=1 // pred_check_branch
      %3357 = sbr.rel (0) target = $region45
    $region44: #{_forward_impl.1} parent=1 // pred_region
      _
    $region45: #{_forward_impl.1} parent=1 // pred_fallthru
      _
    // Predicated region
    $region46: #{_forward_impl.1} parent=1 // pred_check
      _
    $region47: #{_forward_impl.1} parent=1 // pred_check_branch
      %3359 = sbr.rel (0) target = $region49
    $region48: #{_forward_impl.1} parent=1 // pred_region
      _
    $region49: #{_forward_impl.1} parent=1 // pred_fallthru
      _
    // Predicated region
    $region50: #{_forward_impl.1} parent=1 // pred_check
      _
    $region51: #{_forward_impl.1} parent=1 // pred_check_branch
      %3361 = sbr.rel (0) target = $region53
    $region52: #{_forward_impl.1} parent=1 // pred_region
      _
    $region53: #{_forward_impl.1} parent=1 // pred_fallthru
      _
    // Predicated region
    $region54: #{_forward_impl.1} parent=1 // pred_check
      _
    $region55: #{_forward_impl.1} parent=1 // pred_check_branch
      %3363 = sbr.rel (0) target = $region57
    $region56: #{_forward_impl.1} parent=1 // pred_region
      _
    $region57: #{_forward_impl.1} parent=1 // pred_fallthru
      _
    // Predicated region
    $region58: #{_forward_impl.1} parent=1 // pred_check
      _
    $region59: #{_forward_impl.1} parent=1 // pred_check_branch
      %3365 = sbr.rel (0) target = $region61
    $region60: #{_forward_impl.1} parent=1 // pred_region
      _
    $region61: #{_forward_impl.1} parent=1 // pred_fallthru
      _
    %3366 = vsyncpa [#allocation7], 1

</llo_original>
